<compile_context>
chip_gen: v5e
topology: v5e:2x2
jax: 0.10.0
libtpu: 0.0.40
codegen_flags: <defaults>
</compile_context>

<pallas_src>
import jax
import jax.numpy as jnp
from jax import lax
from jax.experimental import pallas as pl
from jax.experimental.pallas import tpu as pltpu

# Model dims (fixed by the module definition)
IN_DIM = 160     # LSTM input size
HID = 100        # LSTM hidden size
B = 30           # "batch" dim seen by the LSTM (forced by fc in_features=30*100)
NCLASS = 3       # fc output
GP = 128         # per-gate lane-padded width (HID=100 -> 128, vreg aligned)
NG = 4           # gates: i, f, g, o (PyTorch order)


# --------------------------------------------------------------------------
# Fused kernel: LSTM recurrence (time loop in-kernel) + fc + log_softmax
# --------------------------------------------------------------------------
def lstm_fc_fused_kernel(xp_ref, whh_ref, wfc_ref, bfc_ref, out_ref, hseq_scr):
    """
    xp_ref  : (T, B, NG*GP)   precomputed x @ W_ih^T + (b_ih+b_hh), gate-padded
    whh_ref : (GP, NG*GP)     W_hh^T, zero padded (rows >= HID, per-gate cols >= HID)
    wfc_ref : (NCLASS, B, GP) fc weights, zero padded on the last dim
    bfc_ref : (1, 1, NCLASS)  fc bias
    out_ref : (T, 1, NCLASS)  log-probs
    hseq_scr: (T, B, GP)      VMEM scratch holding the whole hidden sequence
    """
    T = xp_ref.shape[0]
    whh = whh_ref[...]                      # VMEM-resident, hoisted once

    def step(t, h, c):
        # Only the h-recurrence matmul + activations sit on the serial path.
        gates = xp_ref[t] + jnp.dot(h, whh, preferred_element_type=jnp.float32)
        i_g = jax.nn.sigmoid(gates[:, 0 * GP:1 * GP])   # 128-aligned slabs
        f_g = jax.nn.sigmoid(gates[:, 1 * GP:2 * GP])
        g_g = jnp.tanh(gates[:, 2 * GP:3 * GP])
        o_g = jax.nn.sigmoid(gates[:, 3 * GP:4 * GP])
        c_new = f_g * c + i_g * g_g
        h_new = o_g * jnp.tanh(c_new)       # padded lanes (>=HID) stay exactly 0
        hseq_scr[t] = h_new
        return h_new, c_new

    h = jnp.zeros((B, GP), jnp.float32)
    c = jnp.zeros((B, GP), jnp.float32)
    if T <= 32:
        # Small fixed T: fully unrolled, all-static indexing (LLO visibility).
        for t in range(T):
            h, c = step(t, h, c)
    else:
        def body(t, carry):
            return step(t, *carry)
        h, c = lax.fori_loop(0, T, body, (h, c))

    # ----- fused fc (3000 -> 3) + log_softmax epilogue (VPU, lane-dense) -----
    h_all = hseq_scr[...]                   # (T, B, GP); padded lanes are 0
    lane = lax.broadcasted_iota(jnp.int32, (1, 1, NCLASS), 2)
    logits = jnp.zeros((T, 1, NCLASS), jnp.float32)
    for cls in range(NCLASS):
        w_c = wfc_ref[cls]                  # (B, GP), zero-padded cols
        prod = h_all * w_c[None, :, :]      # (T, B, GP)
        s = jnp.sum(jnp.sum(prod, axis=2, keepdims=True),
                    axis=1, keepdims=True)  # (T, 1, 1)
        logits = logits + s * (lane == cls).astype(jnp.float32)
    logits = logits + bfc_ref[...]

    m = jnp.max(logits, axis=-1, keepdims=True)
    shifted = logits - m
    lse = jnp.log(jnp.sum(jnp.exp(shifted), axis=-1, keepdims=True))
    out_ref[...] = shifted - lse


def lstm_fc_forward(x_proj, w_hh_p, wfc3, bfc):
    """x_proj: (T, B, NG*GP) -> (T, 1, NCLASS) log-probs."""
    T = x_proj.shape[0]
    return pl.pallas_call(
        lstm_fc_fused_kernel,
        out_shape=jax.ShapeDtypeStruct((T, 1, NCLASS), jnp.float32),
        grid_spec=pltpu.PrefetchScalarGridSpec(
            num_scalar_prefetch=0,
            grid=(1,),                      # single invocation: no per-step grid overhead
            in_specs=[
                pl.BlockSpec((T, B, NG * GP), lambda i: (0, 0, 0)),
                pl.BlockSpec((GP, NG * GP), lambda i: (0, 0)),
                pl.BlockSpec((NCLASS, B, GP), lambda i: (0, 0, 0)),
                pl.BlockSpec((1, 1, NCLASS), lambda i: (0, 0, 0)),
            ],
            out_specs=pl.BlockSpec((T, 1, NCLASS), lambda i: (0, 0, 0)),
            scratch_shapes=[pltpu.VMEM((T, B, GP), jnp.float32)],
        ),
        compiler_params=pltpu.CompilerParams(
            dimension_semantics=("arbitrary",),   # recurrence is inherently serial
        ),
    )(x_proj, w_hh_p, wfc3, bfc)


# --------------------------------------------------------------------------
# Weight packing (gate slabs 128-lane aligned, zero padded) + full forward
# --------------------------------------------------------------------------
def _pack_gate_weights(w, in_dim):
    """w: (4*HID, in_dim) torch layout -> (in_dim, NG*GP) with zero-padded slabs."""
    w = w.reshape(NG, HID, in_dim)
    w = jnp.transpose(w, (2, 0, 1))                      # (in_dim, NG, HID)
    w = jnp.pad(w, ((0, 0), (0, 0), (0, GP - HID)))      # pad HID -> GP with zeros
    return w.reshape(in_dim, NG * GP)


@jax.jit
def model_forward(x, params):
    T = x.shape[0]
    # LSTM weights, gate-padded / transposed once (cheap XLA prep).
    w_ih_p = _pack_gate_weights(params["w_ih"], IN_DIM)          # (160, 512)
    w_hh_p = _pack_gate_weights(params["w_hh"], HID)             # (100, 512)
    w_hh_p = jnp.pad(w_hh_p, ((0, GP - HID), (0, 0)))            # (128, 512), pad rows 0
    b = (params["b_ih"] + params["b_hh"]).reshape(NG, HID)
    b_p = jnp.pad(b, ((0, 0), (0, GP - HID))).reshape(1, NG * GP)
    # fc weights laid out lane-dense as (NCLASS, B, GP), zero padded.
    wfc3 = jnp.pad(params["w_fc"].reshape(NCLASS, B, HID),
                   ((0, 0), (0, 0), (0, GP - HID)))              # (3, 30, 128)
    bfc = params["b_fc"].reshape(1, 1, NCLASS)

    # Input projection hoisted out of the recurrence: ONE batched matmul
    # (M = T*B = 240) with the combined bias folded in.
    x_proj = jnp.dot(x.reshape(T * B, IN_DIM), w_ih_p,
                     precision=lax.Precision.HIGHEST) + b_p
    x_proj = x_proj.reshape(T, B, NG * GP)

    out = lstm_fc_forward(x_proj, w_hh_p, wfc3, bfc)             # (T, 1, NCLASS)
    return out.reshape(T, NCLASS)


# --------------------------------------------------------------------------
# Pure-JAX reference (sanity check)
# --------------------------------------------------------------------------
def reference_forward(x, params):
    hi = jax.lax.Precision.HIGHEST

    def step(carry, x_t):
        h, c = carry
        gates = (jnp.dot(x_t, params["w_ih"].T, precision=hi) + params["b_ih"]
                 + jnp.dot(h, params["w_hh"].T, precision=hi) + params["b_hh"])
        i_g, f_g, g_g, o_g = jnp.split(gates, 4, axis=-1)
        i_g = jax.nn.sigmoid(i_g)
        f_g = jax.nn.sigmoid(f_g)
        g_g = jnp.tanh(g_g)
        o_g = jax.nn.sigmoid(o_g)
        c_new = f_g * c + i_g * g_g
        h_new = o_g * jnp.tanh(c_new)
        return (h_new, c_new), h_new

    h0 = jnp.zeros((B, HID), jnp.float32)
    (_, _), h_seq = lax.scan(step, (h0, h0), x)
    h_flat = h_seq.reshape(h_seq.shape[0], -1)
    logits = jnp.dot(h_flat, params["w_fc"].T, precision=hi) + params["b_fc"]
    return jax.nn.log_softmax(logits, axis=1)


def init_params(key):
    ks = jax.random.split(key, 6)
    k_lstm = 1.0 / jnp.sqrt(HID)        # PyTorch LSTM init: U(-1/sqrt(H), 1/sqrt(H))
    k_fc = 1.0 / jnp.sqrt(B * HID)      # PyTorch Linear init
    return {
        "w_ih": jax.random.uniform(ks[0], (4 * HID, IN_DIM), jnp.float32,
                                   -k_lstm, k_lstm),
        "w_hh": jax.random.uniform(ks[1], (4 * HID, HID), jnp.float32,
                                   -k_lstm, k_lstm),
        "b_ih": jax.random.uniform(ks[2], (4 * HID,), jnp.float32,
                                   -k_lstm, k_lstm),
        "b_hh": jax.random.uniform(ks[3], (4 * HID,), jnp.float32,
                                   -k_lstm, k_lstm),
        "w_fc": jax.random.uniform(ks[4], (NCLASS, B * HID), jnp.float32,
                                   -k_fc, k_fc),
        "b_fc": jax.random.uniform(ks[5], (NCLASS,), jnp.float32,
                                   -k_fc, k_fc),
    }


if __name__ == "__main__":
    key = jax.random.PRNGKey(0)
    k_x, k_p = jax.random.split(key)

    T = 8  # sequence length (the dim the fc treats as "batch" rows)
    x = jax.random.normal(k_x, (T, B, IN_DIM), jnp.float32) * 0.1
    params = init_params(k_p)

    out = model_forward(x, params)
    out = jax.block_until_ready(out)
    assert out.shape == (T, NCLASS), out.shape

    ref = reference_forward(x, params)
    # Loose tolerance: MXU f32 passes vs HIGHEST-precision reference.
    assert jnp.allclose(out, ref, atol=2e-2, rtol=2e-2), (
        float(jnp.max(jnp.abs(out - ref))))

    print("KERNEL_OK")
</pallas_src>

<mosaic_0001>
module attributes {stable_mosaic.version = 11 : i64} {
  func.func @lstm_fc_fused_kernel(%arg0: i32, %arg1: memref<8x30x512xf32, #tpu.memory_space<vmem>>, %arg2: memref<128x512xf32, #tpu.memory_space<vmem>>, %arg3: memref<3x30x128xf32, #tpu.memory_space<vmem>>, %arg4: memref<1x1x3xf32, #tpu.memory_space<vmem>>, %arg5: memref<8x1x3xf32, #tpu.memory_space<vmem>>, %arg6: memref<8x30x128xf32, #tpu.memory_space<vmem>>) attributes {dimension_semantics = [#tpu.dimension_semantics<arbitrary>], iteration_bounds = array<i64: 1>, scalar_prefetch = 0 : i64, scratch_operands = 1 : i64, tpu.core_type = #tpu.core_type<tc>, window_params = [{pipeline_mode = #tpu.pipeline_mode<synchronous>, transform_indices = @transform_0, window_bounds = array<i64: 8, 30, 512>}, {pipeline_mode = #tpu.pipeline_mode<synchronous>, transform_indices = @transform_1, window_bounds = array<i64: 128, 512>}, {pipeline_mode = #tpu.pipeline_mode<synchronous>, transform_indices = @transform_2, window_bounds = array<i64: 3, 30, 128>}, {pipeline_mode = #tpu.pipeline_mode<synchronous>, transform_indices = @transform_3, window_bounds = array<i64: 1, 1, 3>}, {pipeline_mode = #tpu.pipeline_mode<synchronous>, transform_indices = @transform_4, window_bounds = array<i64: 8, 1, 3>}]} {
    %c0 = arith.constant 0 : index
    %c0_0 = arith.constant 0 : index
    %0 = vector.load %arg2[%c0, %c0_0] : memref<128x512xf32, #tpu.memory_space<vmem>>, vector<128x512xf32>
    %cst = arith.constant 0.000000e+00 : f32
    %1 = vector.broadcast %cst : f32 to vector<30x128xf32>
    %cst_1 = arith.constant 0.000000e+00 : f32
    %2 = vector.broadcast %cst_1 : f32 to vector<30x128xf32>
    %c0_2 = arith.constant 0 : index
    %c0_3 = arith.constant 0 : index
    %c0_4 = arith.constant 0 : index
    %3 = vector.load %arg1[%c0_2, %c0_3, %c0_4] : memref<8x30x512xf32, #tpu.memory_space<vmem>>, vector<1x30x512xf32>
    %4 = vector.shape_cast %3 : vector<1x30x512xf32> to vector<30x512xf32>
    %cst_5 = arith.constant dense<0.000000e+00> : vector<30x512xf32>
    %5 = tpu.matmul %1, %0, %cst_5 {dimension_numbers = #tpu.dot_dimension_numbers<[1], [0], [0], [1], [0, 0, 1, 1], [], []>} : vector<30x128xf32>, vector<128x512xf32>, vector<30x512xf32> -> vector<30x512xf32>
    %6 = arith.addf %4, %5 : vector<30x512xf32>
    %7 = vector.extract_strided_slice %6 {offsets = [0, 0], sizes = [30, 128], strides = [1, 1]} : vector<30x512xf32> to vector<30x128xf32>
    %8 = arith.negf %7 : vector<30x128xf32>
    %9 = math.exp %8 : vector<30x128xf32>
    %cst_6 = arith.constant 1.000000e+00 : f32
    %10 = vector.broadcast %cst_6 : f32 to vector<30x128xf32>
    %11 = arith.addf %10, %9 : vector<30x128xf32>
    %12 = arith.divf %10, %11 : vector<30x128xf32>
    %13 = vector.extract_strided_slice %6 {offsets = [0, 128], sizes = [30, 128], strides = [1, 1]} : vector<30x512xf32> to vector<30x128xf32>
    %14 = arith.negf %13 : vector<30x128xf32>
    %15 = math.exp %14 : vector<30x128xf32>
    %cst_7 = arith.constant 1.000000e+00 : f32
    %16 = vector.broadcast %cst_7 : f32 to vector<30x128xf32>
    %17 = arith.addf %16, %15 : vector<30x128xf32>
    %18 = arith.divf %16, %17 : vector<30x128xf32>
    %19 = vector.extract_strided_slice %6 {offsets = [0, 256], sizes = [30, 128], strides = [1, 1]} : vector<30x512xf32> to vector<30x128xf32>
    %20 = math.tanh %19 : vector<30x128xf32>
    %21 = vector.extract_strided_slice %6 {offsets = [0, 384], sizes = [30, 128], strides = [1, 1]} : vector<30x512xf32> to vector<30x128xf32>
    %22 = arith.negf %21 : vector<30x128xf32>
    %23 = math.exp %22 : vector<30x128xf32>
    %cst_8 = arith.constant 1.000000e+00 : f32
    %24 = vector.broadcast %cst_8 : f32 to vector<30x128xf32>
    %25 = arith.addf %24, %23 : vector<30x128xf32>
    %26 = arith.divf %24, %25 : vector<30x128xf32>
    %27 = arith.mulf %18, %2 : vector<30x128xf32>
    %28 = arith.mulf %12, %20 : vector<30x128xf32>
    %29 = arith.addf %27, %28 : vector<30x128xf32>
    %30 = math.tanh %29 : vector<30x128xf32>
    %31 = arith.mulf %26, %30 : vector<30x128xf32>
    %c0_9 = arith.constant 0 : index
    %c0_10 = arith.constant 0 : index
    %c0_11 = arith.constant 0 : index
    %32 = vector.load %arg6[%c0_9, %c0_10, %c0_11] : memref<8x30x128xf32, #tpu.memory_space<vmem>>, vector<1x30x128xf32>
    %33 = vector.shape_cast %32 : vector<1x30x128xf32> to vector<30x128xf32>
    %34 = vector.shape_cast %31 : vector<30x128xf32> to vector<1x30x128xf32>
    tpu.vector_store %arg6[%c0_9, %c0_10, %c0_11], %34 {strides = array<i32>} : memref<8x30x128xf32, #tpu.memory_space<vmem>>, vector<1x30x128xf32>,
    %c1 = arith.constant 1 : index
    %c0_12 = arith.constant 0 : index
    %c0_13 = arith.constant 0 : index
    %35 = vector.load %arg1[%c1, %c0_12, %c0_13] : memref<8x30x512xf32, #tpu.memory_space<vmem>>, vector<1x30x512xf32>
    %36 = vector.shape_cast %35 : vector<1x30x512xf32> to vector<30x512xf32>
    %cst_14 = arith.constant dense<0.000000e+00> : vector<30x512xf32>
    %37 = tpu.matmul %31, %0, %cst_14 {dimension_numbers = #tpu.dot_dimension_numbers<[1], [0], [0], [1], [0, 0, 1, 1], [], []>} : vector<30x128xf32>, vector<128x512xf32>, vector<30x512xf32> -> vector<30x512xf32>
    %38 = arith.addf %36, %37 : vector<30x512xf32>
    %39 = vector.extract_strided_slice %38 {offsets = [0, 0], sizes = [30, 128], strides = [1, 1]} : vector<30x512xf32> to vector<30x128xf32>
    %40 = arith.negf %39 : vector<30x128xf32>
    %41 = math.exp %40 : vector<30x128xf32>
    %cst_15 = arith.constant 1.000000e+00 : f32
    %42 = vector.broadcast %cst_15 : f32 to vector<30x128xf32>
    %43 = arith.addf %42, %41 : vector<30x128xf32>
    %44 = arith.divf %42, %43 : vector<30x128xf32>
    %45 = vector.extract_strided_slice %38 {offsets = [0, 128], sizes = [30, 128], strides = [1, 1]} : vector<30x512xf32> to vector<30x128xf32>
    %46 = arith.negf %45 : vector<30x128xf32>
    %47 = math.exp %46 : vector<30x128xf32>
    %cst_16 = arith.constant 1.000000e+00 : f32
    %48 = vector.broadcast %cst_16 : f32 to vector<30x128xf32>
    %49 = arith.addf %48, %47 : vector<30x128xf32>
    %50 = arith.divf %48, %49 : vector<30x128xf32>
    %51 = vector.extract_strided_slice %38 {offsets = [0, 256], sizes = [30, 128], strides = [1, 1]} : vector<30x512xf32> to vector<30x128xf32>
    %52 = math.tanh %51 : vector<30x128xf32>
    %53 = vector.extract_strided_slice %38 {offsets = [0, 384], sizes = [30, 128], strides = [1, 1]} : vector<30x512xf32> to vector<30x128xf32>
    %54 = arith.negf %53 : vector<30x128xf32>
    %55 = math.exp %54 : vector<30x128xf32>
    %cst_17 = arith.constant 1.000000e+00 : f32
    %56 = vector.broadcast %cst_17 : f32 to vector<30x128xf32>
    %57 = arith.addf %56, %55 : vector<30x128xf32>
    %58 = arith.divf %56, %57 : vector<30x128xf32>
    %59 = arith.mulf %50, %29 : vector<30x128xf32>
    %60 = arith.mulf %44, %52 : vector<30x128xf32>
    %61 = arith.addf %59, %60 : vector<30x128xf32>
    %62 = math.tanh %61 : vector<30x128xf32>
    %63 = arith.mulf %58, %62 : vector<30x128xf32>
    %c1_18 = arith.constant 1 : index
    %c0_19 = arith.constant 0 : index
    %c0_20 = arith.constant 0 : index
    %64 = vector.load %arg6[%c1_18, %c0_19, %c0_20] : memref<8x30x128xf32, #tpu.memory_space<vmem>>, vector<1x30x128xf32>
    %65 = vector.shape_cast %64 : vector<1x30x128xf32> to vector<30x128xf32>
    %66 = vector.shape_cast %63 : vector<30x128xf32> to vector<1x30x128xf32>
    tpu.vector_store %arg6[%c1_18, %c0_19, %c0_20], %66 {strides = array<i32>} : memref<8x30x128xf32, #tpu.memory_space<vmem>>, vector<1x30x128xf32>,
    %c2 = arith.constant 2 : index
    %c0_21 = arith.constant 0 : index
    %c0_22 = arith.constant 0 : index
    %67 = vector.load %arg1[%c2, %c0_21, %c0_22] : memref<8x30x512xf32, #tpu.memory_space<vmem>>, vector<1x30x512xf32>
    %68 = vector.shape_cast %67 : vector<1x30x512xf32> to vector<30x512xf32>
    %cst_23 = arith.constant dense<0.000000e+00> : vector<30x512xf32>
    %69 = tpu.matmul %63, %0, %cst_23 {dimension_numbers = #tpu.dot_dimension_numbers<[1], [0], [0], [1], [0, 0, 1, 1], [], []>} : vector<30x128xf32>, vector<128x512xf32>, vector<30x512xf32> -> vector<30x512xf32>
    %70 = arith.addf %68, %69 : vector<30x512xf32>
    %71 = vector.extract_strided_slice %70 {offsets = [0, 0], sizes = [30, 128], strides = [1, 1]} : vector<30x512xf32> to vector<30x128xf32>
    %72 = arith.negf %71 : vector<30x128xf32>
    %73 = math.exp %72 : vector<30x128xf32>
    %cst_24 = arith.constant 1.000000e+00 : f32
    %74 = vector.broadcast %cst_24 : f32 to vector<30x128xf32>
    %75 = arith.addf %74, %73 : vector<30x128xf32>
    %76 = arith.divf %74, %75 : vector<30x128xf32>
    %77 = vector.extract_strided_slice %70 {offsets = [0, 128], sizes = [30, 128], strides = [1, 1]} : vector<30x512xf32> to vector<30x128xf32>
    %78 = arith.negf %77 : vector<30x128xf32>
    %79 = math.exp %78 : vector<30x128xf32>
    %cst_25 = arith.constant 1.000000e+00 : f32
    %80 = vector.broadcast %cst_25 : f32 to vector<30x128xf32>
    %81 = arith.addf %80, %79 : vector<30x128xf32>
    %82 = arith.divf %80, %81 : vector<30x128xf32>
    %83 = vector.extract_strided_slice %70 {offsets = [0, 256], sizes = [30, 128], strides = [1, 1]} : vector<30x512xf32> to vector<30x128xf32>
    %84 = math.tanh %83 : vector<30x128xf32>
    %85 = vector.extract_strided_slice %70 {offsets = [0, 384], sizes = [30, 128], strides = [1, 1]} : vector<30x512xf32> to vector<30x128xf32>
    %86 = arith.negf %85 : vector<30x128xf32>
    %87 = math.exp %86 : vector<30x128xf32>
    %cst_26 = arith.constant 1.000000e+00 : f32
    %88 = vector.broadcast %cst_26 : f32 to vector<30x128xf32>
    %89 = arith.addf %88, %87 : vector<30x128xf32>
    %90 = arith.divf %88, %89 : vector<30x128xf32>
    %91 = arith.mulf %82, %61 : vector<30x128xf32>
    %92 = arith.mulf %76, %84 : vector<30x128xf32>
    %93 = arith.addf %91, %92 : vector<30x128xf32>
    %94 = math.tanh %93 : vector<30x128xf32>
    %95 = arith.mulf %90, %94 : vector<30x128xf32>
    %c2_27 = arith.constant 2 : index
    %c0_28 = arith.constant 0 : index
    %c0_29 = arith.constant 0 : index
    %96 = vector.load %arg6[%c2_27, %c0_28, %c0_29] : memref<8x30x128xf32, #tpu.memory_space<vmem>>, vector<1x30x128xf32>
    %97 = vector.shape_cast %96 : vector<1x30x128xf32> to vector<30x128xf32>
    %98 = vector.shape_cast %95 : vector<30x128xf32> to vector<1x30x128xf32>
    tpu.vector_store %arg6[%c2_27, %c0_28, %c0_29], %98 {strides = array<i32>} : memref<8x30x128xf32, #tpu.memory_space<vmem>>, vector<1x30x128xf32>,
    %c3 = arith.constant 3 : index
    %c0_30 = arith.constant 0 : index
    %c0_31 = arith.constant 0 : index
    %99 = vector.load %arg1[%c3, %c0_30, %c0_31] : memref<8x30x512xf32, #tpu.memory_space<vmem>>, vector<1x30x512xf32>
    %100 = vector.shape_cast %99 : vector<1x30x512xf32> to vector<30x512xf32>
    %cst_32 = arith.constant dense<0.000000e+00> : vector<30x512xf32>
    %101 = tpu.matmul %95, %0, %cst_32 {dimension_numbers = #tpu.dot_dimension_numbers<[1], [0], [0], [1], [0, 0, 1, 1], [], []>} : vector<30x128xf32>, vector<128x512xf32>, vector<30x512xf32> -> vector<30x512xf32>
    %102 = arith.addf %100, %101 : vector<30x512xf32>
    %103 = vector.extract_strided_slice %102 {offsets = [0, 0], sizes = [30, 128], strides = [1, 1]} : vector<30x512xf32> to vector<30x128xf32>
    %104 = arith.negf %103 : vector<30x128xf32>
    %105 = math.exp %104 : vector<30x128xf32>
    %cst_33 = arith.constant 1.000000e+00 : f32
    %106 = vector.broadcast %cst_33 : f32 to vector<30x128xf32>
    %107 = arith.addf %106, %105 : vector<30x128xf32>
    %108 = arith.divf %106, %107 : vector<30x128xf32>
    %109 = vector.extract_strided_slice %102 {offsets = [0, 128], sizes = [30, 128], strides = [1, 1]} : vector<30x512xf32> to vector<30x128xf32>
    %110 = arith.negf %109 : vector<30x128xf32>
    %111 = math.exp %110 : vector<30x128xf32>
    %cst_34 = arith.constant 1.000000e+00 : f32
    %112 = vector.broadcast %cst_34 : f32 to vector<30x128xf32>
    %113 = arith.addf %112, %111 : vector<30x128xf32>
    %114 = arith.divf %112, %113 : vector<30x128xf32>
    %115 = vector.extract_strided_slice %102 {offsets = [0, 256], sizes = [30, 128], strides = [1, 1]} : vector<30x512xf32> to vector<30x128xf32>
    %116 = math.tanh %115 : vector<30x128xf32>
    %117 = vector.extract_strided_slice %102 {offsets = [0, 384], sizes = [30, 128], strides = [1, 1]} : vector<30x512xf32> to vector<30x128xf32>
    %118 = arith.negf %117 : vector<30x128xf32>
    %119 = math.exp %118 : vector<30x128xf32>
    %cst_35 = arith.constant 1.000000e+00 : f32
    %120 = vector.broadcast %cst_35 : f32 to vector<30x128xf32>
    %121 = arith.addf %120, %119 : vector<30x128xf32>
    %122 = arith.divf %120, %121 : vector<30x128xf32>
    %123 = arith.mulf %114, %93 : vector<30x128xf32>
    %124 = arith.mulf %108, %116 : vector<30x128xf32>
    %125 = arith.addf %123, %124 : vector<30x128xf32>
    %126 = math.tanh %125 : vector<30x128xf32>
    %127 = arith.mulf %122, %126 : vector<30x128xf32>
    %c3_36 = arith.constant 3 : index
    %c0_37 = arith.constant 0 : index
    %c0_38 = arith.constant 0 : index
    %128 = vector.load %arg6[%c3_36, %c0_37, %c0_38] : memref<8x30x128xf32, #tpu.memory_space<vmem>>, vector<1x30x128xf32>
    %129 = vector.shape_cast %128 : vector<1x30x128xf32> to vector<30x128xf32>
    %130 = vector.shape_cast %127 : vector<30x128xf32> to vector<1x30x128xf32>
    tpu.vector_store %arg6[%c3_36, %c0_37, %c0_38], %130 {strides = array<i32>} : memref<8x30x128xf32, #tpu.memory_space<vmem>>, vector<1x30x128xf32>,
    %c4 = arith.constant 4 : index
    %c0_39 = arith.constant 0 : index
    %c0_40 = arith.constant 0 : index
    %131 = vector.load %arg1[%c4, %c0_39, %c0_40] : memref<8x30x512xf32, #tpu.memory_space<vmem>>, vector<1x30x512xf32>
    %132 = vector.shape_cast %131 : vector<1x30x512xf32> to vector<30x512xf32>
    %cst_41 = arith.constant dense<0.000000e+00> : vector<30x512xf32>
    %133 = tpu.matmul %127, %0, %cst_41 {dimension_numbers = #tpu.dot_dimension_numbers<[1], [0], [0], [1], [0, 0, 1, 1], [], []>} : vector<30x128xf32>, vector<128x512xf32>, vector<30x512xf32> -> vector<30x512xf32>
    %134 = arith.addf %132, %133 : vector<30x512xf32>
    %135 = vector.extract_strided_slice %134 {offsets = [0, 0], sizes = [30, 128], strides = [1, 1]} : vector<30x512xf32> to vector<30x128xf32>
    %136 = arith.negf %135 : vector<30x128xf32>
    %137 = math.exp %136 : vector<30x128xf32>
    %cst_42 = arith.constant 1.000000e+00 : f32
    %138 = vector.broadcast %cst_42 : f32 to vector<30x128xf32>
    %139 = arith.addf %138, %137 : vector<30x128xf32>
    %140 = arith.divf %138, %139 : vector<30x128xf32>
    %141 = vector.extract_strided_slice %134 {offsets = [0, 128], sizes = [30, 128], strides = [1, 1]} : vector<30x512xf32> to vector<30x128xf32>
    %142 = arith.negf %141 : vector<30x128xf32>
    %143 = math.exp %142 : vector<30x128xf32>
    %cst_43 = arith.constant 1.000000e+00 : f32
    %144 = vector.broadcast %cst_43 : f32 to vector<30x128xf32>
    %145 = arith.addf %144, %143 : vector<30x128xf32>
    %146 = arith.divf %144, %145 : vector<30x128xf32>
    %147 = vector.extract_strided_slice %134 {offsets = [0, 256], sizes = [30, 128], strides = [1, 1]} : vector<30x512xf32> to vector<30x128xf32>
    %148 = math.tanh %147 : vector<30x128xf32>
    %149 = vector.extract_strided_slice %134 {offsets = [0, 384], sizes = [30, 128], strides = [1, 1]} : vector<30x512xf32> to vector<30x128xf32>
    %150 = arith.negf %149 : vector<30x128xf32>
    %151 = math.exp %150 : vector<30x128xf32>
    %cst_44 = arith.constant 1.000000e+00 : f32
    %152 = vector.broadcast %cst_44 : f32 to vector<30x128xf32>
    %153 = arith.addf %152, %151 : vector<30x128xf32>
    %154 = arith.divf %152, %153 : vector<30x128xf32>
    %155 = arith.mulf %146, %125 : vector<30x128xf32>
    %156 = arith.mulf %140, %148 : vector<30x128xf32>
    %157 = arith.addf %155, %156 : vector<30x128xf32>
    %158 = math.tanh %157 : vector<30x128xf32>
    %159 = arith.mulf %154, %158 : vector<30x128xf32>
    %c4_45 = arith.constant 4 : index
    %c0_46 = arith.constant 0 : index
    %c0_47 = arith.constant 0 : index
    %160 = vector.load %arg6[%c4_45, %c0_46, %c0_47] : memref<8x30x128xf32, #tpu.memory_space<vmem>>, vector<1x30x128xf32>
    %161 = vector.shape_cast %160 : vector<1x30x128xf32> to vector<30x128xf32>
    %162 = vector.shape_cast %159 : vector<30x128xf32> to vector<1x30x128xf32>
    tpu.vector_store %arg6[%c4_45, %c0_46, %c0_47], %162 {strides = array<i32>} : memref<8x30x128xf32, #tpu.memory_space<vmem>>, vector<1x30x128xf32>,
    %c5 = arith.constant 5 : index
    %c0_48 = arith.constant 0 : index
    %c0_49 = arith.constant 0 : index
    %163 = vector.load %arg1[%c5, %c0_48, %c0_49] : memref<8x30x512xf32, #tpu.memory_space<vmem>>, vector<1x30x512xf32>
    %164 = vector.shape_cast %163 : vector<1x30x512xf32> to vector<30x512xf32>
    %cst_50 = arith.constant dense<0.000000e+00> : vector<30x512xf32>
    %165 = tpu.matmul %159, %0, %cst_50 {dimension_numbers = #tpu.dot_dimension_numbers<[1], [0], [0], [1], [0, 0, 1, 1], [], []>} : vector<30x128xf32>, vector<128x512xf32>, vector<30x512xf32> -> vector<30x512xf32>
    %166 = arith.addf %164, %165 : vector<30x512xf32>
    %167 = vector.extract_strided_slice %166 {offsets = [0, 0], sizes = [30, 128], strides = [1, 1]} : vector<30x512xf32> to vector<30x128xf32>
    %168 = arith.negf %167 : vector<30x128xf32>
    %169 = math.exp %168 : vector<30x128xf32>
    %cst_51 = arith.constant 1.000000e+00 : f32
    %170 = vector.broadcast %cst_51 : f32 to vector<30x128xf32>
    %171 = arith.addf %170, %169 : vector<30x128xf32>
    %172 = arith.divf %170, %171 : vector<30x128xf32>
    %173 = vector.extract_strided_slice %166 {offsets = [0, 128], sizes = [30, 128], strides = [1, 1]} : vector<30x512xf32> to vector<30x128xf32>
    %174 = arith.negf %173 : vector<30x128xf32>
    %175 = math.exp %174 : vector<30x128xf32>
    %cst_52 = arith.constant 1.000000e+00 : f32
    %176 = vector.broadcast %cst_52 : f32 to vector<30x128xf32>
    %177 = arith.addf %176, %175 : vector<30x128xf32>
    %178 = arith.divf %176, %177 : vector<30x128xf32>
    %179 = vector.extract_strided_slice %166 {offsets = [0, 256], sizes = [30, 128], strides = [1, 1]} : vector<30x512xf32> to vector<30x128xf32>
    %180 = math.tanh %179 : vector<30x128xf32>
    %181 = vector.extract_strided_slice %166 {offsets = [0, 384], sizes = [30, 128], strides = [1, 1]} : vector<30x512xf32> to vector<30x128xf32>
    %182 = arith.negf %181 : vector<30x128xf32>
    %183 = math.exp %182 : vector<30x128xf32>
    %cst_53 = arith.constant 1.000000e+00 : f32
    %184 = vector.broadcast %cst_53 : f32 to vector<30x128xf32>
    %185 = arith.addf %184, %183 : vector<30x128xf32>
    %186 = arith.divf %184, %185 : vector<30x128xf32>
    %187 = arith.mulf %178, %157 : vector<30x128xf32>
    %188 = arith.mulf %172, %180 : vector<30x128xf32>
    %189 = arith.addf %187, %188 : vector<30x128xf32>
    %190 = math.tanh %189 : vector<30x128xf32>
    %191 = arith.mulf %186, %190 : vector<30x128xf32>
    %c5_54 = arith.constant 5 : index
    %c0_55 = arith.constant 0 : index
    %c0_56 = arith.constant 0 : index
    %192 = vector.load %arg6[%c5_54, %c0_55, %c0_56] : memref<8x30x128xf32, #tpu.memory_space<vmem>>, vector<1x30x128xf32>
    %193 = vector.shape_cast %192 : vector<1x30x128xf32> to vector<30x128xf32>
    %194 = vector.shape_cast %191 : vector<30x128xf32> to vector<1x30x128xf32>
    tpu.vector_store %arg6[%c5_54, %c0_55, %c0_56], %194 {strides = array<i32>} : memref<8x30x128xf32, #tpu.memory_space<vmem>>, vector<1x30x128xf32>,
    %c6 = arith.constant 6 : index
    %c0_57 = arith.constant 0 : index
    %c0_58 = arith.constant 0 : index
    %195 = vector.load %arg1[%c6, %c0_57, %c0_58] : memref<8x30x512xf32, #tpu.memory_space<vmem>>, vector<1x30x512xf32>
    %196 = vector.shape_cast %195 : vector<1x30x512xf32> to vector<30x512xf32>
    %cst_59 = arith.constant dense<0.000000e+00> : vector<30x512xf32>
    %197 = tpu.matmul %191, %0, %cst_59 {dimension_numbers = #tpu.dot_dimension_numbers<[1], [0], [0], [1], [0, 0, 1, 1], [], []>} : vector<30x128xf32>, vector<128x512xf32>, vector<30x512xf32> -> vector<30x512xf32>
    %198 = arith.addf %196, %197 : vector<30x512xf32>
    %199 = vector.extract_strided_slice %198 {offsets = [0, 0], sizes = [30, 128], strides = [1, 1]} : vector<30x512xf32> to vector<30x128xf32>
    %200 = arith.negf %199 : vector<30x128xf32>
    %201 = math.exp %200 : vector<30x128xf32>
    %cst_60 = arith.constant 1.000000e+00 : f32
    %202 = vector.broadcast %cst_60 : f32 to vector<30x128xf32>
    %203 = arith.addf %202, %201 : vector<30x128xf32>
    %204 = arith.divf %202, %203 : vector<30x128xf32>
    %205 = vector.extract_strided_slice %198 {offsets = [0, 128], sizes = [30, 128], strides = [1, 1]} : vector<30x512xf32> to vector<30x128xf32>
    %206 = arith.negf %205 : vector<30x128xf32>
    %207 = math.exp %206 : vector<30x128xf32>
    %cst_61 = arith.constant 1.000000e+00 : f32
    %208 = vector.broadcast %cst_61 : f32 to vector<30x128xf32>
    %209 = arith.addf %208, %207 : vector<30x128xf32>
    %210 = arith.divf %208, %209 : vector<30x128xf32>
    %211 = vector.extract_strided_slice %198 {offsets = [0, 256], sizes = [30, 128], strides = [1, 1]} : vector<30x512xf32> to vector<30x128xf32>
    %212 = math.tanh %211 : vector<30x128xf32>
    %213 = vector.extract_strided_slice %198 {offsets = [0, 384], sizes = [30, 128], strides = [1, 1]} : vector<30x512xf32> to vector<30x128xf32>
    %214 = arith.negf %213 : vector<30x128xf32>
    %215 = math.exp %214 : vector<30x128xf32>
    %cst_62 = arith.constant 1.000000e+00 : f32
    %216 = vector.broadcast %cst_62 : f32 to vector<30x128xf32>
    %217 = arith.addf %216, %215 : vector<30x128xf32>
    %218 = arith.divf %216, %217 : vector<30x128xf32>
    %219 = arith.mulf %210, %189 : vector<30x128xf32>
    %220 = arith.mulf %204, %212 : vector<30x128xf32>
    %221 = arith.addf %219, %220 : vector<30x128xf32>
    %222 = math.tanh %221 : vector<30x128xf32>
    %223 = arith.mulf %218, %222 : vector<30x128xf32>
    %c6_63 = arith.constant 6 : index
    %c0_64 = arith.constant 0 : index
    %c0_65 = arith.constant 0 : index
    %224 = vector.load %arg6[%c6_63, %c0_64, %c0_65] : memref<8x30x128xf32, #tpu.memory_space<vmem>>, vector<1x30x128xf32>
    %225 = vector.shape_cast %224 : vector<1x30x128xf32> to vector<30x128xf32>
    %226 = vector.shape_cast %223 : vector<30x128xf32> to vector<1x30x128xf32>
    tpu.vector_store %arg6[%c6_63, %c0_64, %c0_65], %226 {strides = array<i32>} : memref<8x30x128xf32, #tpu.memory_space<vmem>>, vector<1x30x128xf32>,
    %c7 = arith.constant 7 : index
    %c0_66 = arith.constant 0 : index
    %c0_67 = arith.constant 0 : index
    %227 = vector.load %arg1[%c7, %c0_66, %c0_67] : memref<8x30x512xf32, #tpu.memory_space<vmem>>, vector<1x30x512xf32>
    %228 = vector.shape_cast %227 : vector<1x30x512xf32> to vector<30x512xf32>
    %cst_68 = arith.constant dense<0.000000e+00> : vector<30x512xf32>
    %229 = tpu.matmul %223, %0, %cst_68 {dimension_numbers = #tpu.dot_dimension_numbers<[1], [0], [0], [1], [0, 0, 1, 1], [], []>} : vector<30x128xf32>, vector<128x512xf32>, vector<30x512xf32> -> vector<30x512xf32>
    %230 = arith.addf %228, %229 : vector<30x512xf32>
    %231 = vector.extract_strided_slice %230 {offsets = [0, 0], sizes = [30, 128], strides = [1, 1]} : vector<30x512xf32> to vector<30x128xf32>
    %232 = arith.negf %231 : vector<30x128xf32>
    %233 = math.exp %232 : vector<30x128xf32>
    %cst_69 = arith.constant 1.000000e+00 : f32
    %234 = vector.broadcast %cst_69 : f32 to vector<30x128xf32>
    %235 = arith.addf %234, %233 : vector<30x128xf32>
    %236 = arith.divf %234, %235 : vector<30x128xf32>
    %237 = vector.extract_strided_slice %230 {offsets = [0, 128], sizes = [30, 128], strides = [1, 1]} : vector<30x512xf32> to vector<30x128xf32>
    %238 = arith.negf %237 : vector<30x128xf32>
    %239 = math.exp %238 : vector<30x128xf32>
    %cst_70 = arith.constant 1.000000e+00 : f32
    %240 = vector.broadcast %cst_70 : f32 to vector<30x128xf32>
    %241 = arith.addf %240, %239 : vector<30x128xf32>
    %242 = arith.divf %240, %241 : vector<30x128xf32>
    %243 = vector.extract_strided_slice %230 {offsets = [0, 256], sizes = [30, 128], strides = [1, 1]} : vector<30x512xf32> to vector<30x128xf32>
    %244 = math.tanh %243 : vector<30x128xf32>
    %245 = vector.extract_strided_slice %230 {offsets = [0, 384], sizes = [30, 128], strides = [1, 1]} : vector<30x512xf32> to vector<30x128xf32>
    %246 = arith.negf %245 : vector<30x128xf32>
    %247 = math.exp %246 : vector<30x128xf32>
    %cst_71 = arith.constant 1.000000e+00 : f32
    %248 = vector.broadcast %cst_71 : f32 to vector<30x128xf32>
    %249 = arith.addf %248, %247 : vector<30x128xf32>
    %250 = arith.divf %248, %249 : vector<30x128xf32>
    %251 = arith.mulf %242, %221 : vector<30x128xf32>
    %252 = arith.mulf %236, %244 : vector<30x128xf32>
    %253 = arith.addf %251, %252 : vector<30x128xf32>
    %254 = math.tanh %253 : vector<30x128xf32>
    %255 = arith.mulf %250, %254 : vector<30x128xf32>
    %c7_72 = arith.constant 7 : index
    %c0_73 = arith.constant 0 : index
    %c0_74 = arith.constant 0 : index
    %256 = vector.load %arg6[%c7_72, %c0_73, %c0_74] : memref<8x30x128xf32, #tpu.memory_space<vmem>>, vector<1x30x128xf32>
    %257 = vector.shape_cast %256 : vector<1x30x128xf32> to vector<30x128xf32>
    %258 = vector.shape_cast %255 : vector<30x128xf32> to vector<1x30x128xf32>
    tpu.vector_store %arg6[%c7_72, %c0_73, %c0_74], %258 {strides = array<i32>} : memref<8x30x128xf32, #tpu.memory_space<vmem>>, vector<1x30x128xf32>,
    %c0_75 = arith.constant 0 : index
    %c0_76 = arith.constant 0 : index
    %c0_77 = arith.constant 0 : index
    %259 = vector.load %arg6[%c0_75, %c0_76, %c0_77] : memref<8x30x128xf32, #tpu.memory_space<vmem>>, vector<8x30x128xf32>
    %260 = tpu.iota {dimensions = array<i32: 2>} : vector<1x1x3xi32>
    %cst_78 = arith.constant 0.000000e+00 : f32
    %261 = vector.broadcast %cst_78 : f32 to vector<8x1x3xf32>
    %c0_79 = arith.constant 0 : index
    %c0_80 = arith.constant 0 : index
    %c0_81 = arith.constant 0 : index
    %262 = vector.load %arg3[%c0_79, %c0_80, %c0_81] : memref<3x30x128xf32, #tpu.memory_space<vmem>>, vector<1x30x128xf32>
    %263 = vector.shape_cast %262 : vector<1x30x128xf32> to vector<30x128xf32>
    %264 = vector.shape_cast %263 : vector<30x128xf32> to vector<1x30x128xf32>
    %265 = vector.broadcast %264 : vector<1x30x128xf32> to vector<8x30x128xf32>
    %266 = arith.mulf %259, %265 : vector<8x30x128xf32>
    %cst_82 = arith.constant dense<0.000000e+00> : vector<8x30xf32>
    %267 = vector.multi_reduction <add>, %266, %cst_82 [2] : vector<8x30x128xf32> to vector<8x30xf32>
    %268 = vector.shape_cast %267 : vector<8x30xf32> to vector<8x30x1xf32>
    %cst_83 = arith.constant dense<0.000000e+00> : vector<8x1xf32>
    %269 = vector.multi_reduction <add>, %268, %cst_83 [1] : vector<8x30x1xf32> to vector<8x1xf32>
    %270 = vector.shape_cast %269 : vector<8x1xf32> to vector<8x1x1xf32>
    %c0_i32 = arith.constant 0 : i32
    %271 = vector.broadcast %c0_i32 : i32 to vector<1x1x3xi32>
    %272 = arith.cmpi eq, %260, %271 : vector<1x1x3xi32>
    %273 = arith.extui %272 : vector<1x1x3xi1> to vector<1x1x3xi32>
    %274 = arith.sitofp %273 : vector<1x1x3xi32> to vector<1x1x3xf32>
    %275 = vector.broadcast %270 : vector<8x1x1xf32> to vector<8x1x3xf32>
    %276 = vector.broadcast %274 : vector<1x1x3xf32> to vector<8x1x3xf32>
    %277 = arith.mulf %275, %276 : vector<8x1x3xf32>
    %278 = arith.addf %261, %277 : vector<8x1x3xf32>
    %c1_84 = arith.constant 1 : index
    %c0_85 = arith.constant 0 : index
    %c0_86 = arith.constant 0 : index
    %279 = vector.load %arg3[%c1_84, %c0_85, %c0_86] : memref<3x30x128xf32, #tpu.memory_space<vmem>>, vector<1x30x128xf32>
    %280 = vector.shape_cast %279 : vector<1x30x128xf32> to vector<30x128xf32>
    %281 = vector.shape_cast %280 : vector<30x128xf32> to vector<1x30x128xf32>
    %282 = vector.broadcast %281 : vector<1x30x128xf32> to vector<8x30x128xf32>
    %283 = arith.mulf %259, %282 : vector<8x30x128xf32>
    %cst_87 = arith.constant dense<0.000000e+00> : vector<8x30xf32>
    %284 = vector.multi_reduction <add>, %283, %cst_87 [2] : vector<8x30x128xf32> to vector<8x30xf32>
    %285 = vector.shape_cast %284 : vector<8x30xf32> to vector<8x30x1xf32>
    %cst_88 = arith.constant dense<0.000000e+00> : vector<8x1xf32>
    %286 = vector.multi_reduction <add>, %285, %cst_88 [1] : vector<8x30x1xf32> to vector<8x1xf32>
    %287 = vector.shape_cast %286 : vector<8x1xf32> to vector<8x1x1xf32>
    %c1_i32 = arith.constant 1 : i32
    %288 = vector.broadcast %c1_i32 : i32 to vector<1x1x3xi32>
    %289 = arith.cmpi eq, %260, %288 : vector<1x1x3xi32>
    %290 = arith.extui %289 : vector<1x1x3xi1> to vector<1x1x3xi32>
    %291 = arith.sitofp %290 : vector<1x1x3xi32> to vector<1x1x3xf32>
    %292 = vector.broadcast %287 : vector<8x1x1xf32> to vector<8x1x3xf32>
    %293 = vector.broadcast %291 : vector<1x1x3xf32> to vector<8x1x3xf32>
    %294 = arith.mulf %292, %293 : vector<8x1x3xf32>
    %295 = arith.addf %278, %294 : vector<8x1x3xf32>
    %c2_89 = arith.constant 2 : index
    %c0_90 = arith.constant 0 : index
    %c0_91 = arith.constant 0 : index
    %296 = vector.load %arg3[%c2_89, %c0_90, %c0_91] : memref<3x30x128xf32, #tpu.memory_space<vmem>>, vector<1x30x128xf32>
    %297 = vector.shape_cast %296 : vector<1x30x128xf32> to vector<30x128xf32>
    %298 = vector.shape_cast %297 : vector<30x128xf32> to vector<1x30x128xf32>
    %299 = vector.broadcast %298 : vector<1x30x128xf32> to vector<8x30x128xf32>
    %300 = arith.mulf %259, %299 : vector<8x30x128xf32>
    %cst_92 = arith.constant dense<0.000000e+00> : vector<8x30xf32>
    %301 = vector.multi_reduction <add>, %300, %cst_92 [2] : vector<8x30x128xf32> to vector<8x30xf32>
    %302 = vector.shape_cast %301 : vector<8x30xf32> to vector<8x30x1xf32>
    %cst_93 = arith.constant dense<0.000000e+00> : vector<8x1xf32>
    %303 = vector.multi_reduction <add>, %302, %cst_93 [1] : vector<8x30x1xf32> to vector<8x1xf32>
    %304 = vector.shape_cast %303 : vector<8x1xf32> to vector<8x1x1xf32>
    %c2_i32 = arith.constant 2 : i32
    %305 = vector.broadcast %c2_i32 : i32 to vector<1x1x3xi32>
    %306 = arith.cmpi eq, %260, %305 : vector<1x1x3xi32>
    %307 = arith.extui %306 : vector<1x1x3xi1> to vector<1x1x3xi32>
    %308 = arith.sitofp %307 : vector<1x1x3xi32> to vector<1x1x3xf32>
    %309 = vector.broadcast %304 : vector<8x1x1xf32> to vector<8x1x3xf32>
    %310 = vector.broadcast %308 : vector<1x1x3xf32> to vector<8x1x3xf32>
    %311 = arith.mulf %309, %310 : vector<8x1x3xf32>
    %312 = arith.addf %295, %311 : vector<8x1x3xf32>
    %c0_94 = arith.constant 0 : index
    %c0_95 = arith.constant 0 : index
    %c0_96 = arith.constant 0 : index
    %313 = vector.load %arg4[%c0_94, %c0_95, %c0_96] : memref<1x1x3xf32, #tpu.memory_space<vmem>>, vector<1x1x3xf32>
    %314 = vector.broadcast %313 : vector<1x1x3xf32> to vector<8x1x3xf32>
    %315 = arith.addf %312, %314 : vector<8x1x3xf32>
    %cst_97 = arith.constant dense<0xFF800000> : vector<8x1xf32>
    %316 = vector.multi_reduction <maximumf>, %315, %cst_97 [2] : vector<8x1x3xf32> to vector<8x1xf32>
    %317 = vector.shape_cast %316 : vector<8x1xf32> to vector<8x1x1xf32>
    %318 = vector.broadcast %317 : vector<8x1x1xf32> to vector<8x1x3xf32>
    %319 = arith.subf %315, %318 : vector<8x1x3xf32>
    %320 = math.exp %319 : vector<8x1x3xf32>
    %cst_98 = arith.constant dense<0.000000e+00> : vector<8x1xf32>
    %321 = vector.multi_reduction <add>, %320, %cst_98 [2] : vector<8x1x3xf32> to vector<8x1xf32>
    %322 = vector.shape_cast %321 : vector<8x1xf32> to vector<8x1x1xf32>
    %323 = math.log %322 : vector<8x1x1xf32>
    %324 = vector.broadcast %323 : vector<8x1x1xf32> to vector<8x1x3xf32>
    %325 = arith.subf %319, %324 : vector<8x1x3xf32>
    %c0_99 = arith.constant 0 : index
    %c0_100 = arith.constant 0 : index
    %c0_101 = arith.constant 0 : index
    %326 = vector.load %arg5[%c0_99, %c0_100, %c0_101] : memref<8x1x3xf32, #tpu.memory_space<vmem>>, vector<8x1x3xf32>
    tpu.vector_store %arg5[%c0_99, %c0_100, %c0_101], %325 {strides = array<i32>} : memref<8x1x3xf32, #tpu.memory_space<vmem>>, vector<8x1x3xf32>,
    return
  }
  func.func @transform_0(%arg0: i32) -> (i32, i32, i32) {
    %c0_i32 = arith.constant 0 : i32
    %c0_i32_0 = arith.constant 0 : i32
    %c0_i32_1 = arith.constant 0 : i32
    %c0_i32_2 = arith.constant 0 : i32
    return %c0_i32, %c0_i32_0, %c0_i32_1 : i32, i32, i32
  }
  func.func @transform_1(%arg0: i32) -> (i32, i32) {
    %c0_i32 = arith.constant 0 : i32
    %c0_i32_0 = arith.constant 0 : i32
    %c0_i32_1 = arith.constant 0 : i32
    return %c0_i32, %c0_i32_0 : i32, i32
  }
  func.func @transform_2(%arg0: i32) -> (i32, i32, i32) {
    %c0_i32 = arith.constant 0 : i32
    %c0_i32_0 = arith.constant 0 : i32
    %c0_i32_1 = arith.constant 0 : i32
    %c0_i32_2 = arith.constant 0 : i32
    return %c0_i32, %c0_i32_0, %c0_i32_1 : i32, i32, i32
  }
  func.func @transform_3(%arg0: i32) -> (i32, i32, i32) {
    %c0_i32 = arith.constant 0 : i32
    %c0_i32_0 = arith.constant 0 : i32
    %c0_i32_1 = arith.constant 0 : i32
    %c0_i32_2 = arith.constant 0 : i32
    return %c0_i32, %c0_i32_0, %c0_i32_1 : i32, i32, i32
  }
  func.func @transform_4(%arg0: i32) -> (i32, i32, i32) {
    %c0_i32 = arith.constant 0 : i32
    %c0_i32_0 = arith.constant 0 : i32
    %c0_i32_1 = arith.constant 0 : i32
    %c0_i32_2 = arith.constant 0 : i32
    return %c0_i32, %c0_i32_0, %c0_i32_1 : i32, i32, i32
  }
}

</mosaic_0001>

<llo_original>
// kernel: model_forward.1
$region0: #{model_forward.1}
  #allocation0 [shape = 'u32[]', space=smem, size = 0x4, offset = 0x4, fixed_abs, tag = 'smem constant byte address 0x4 - core index']
  #allocation1 [shape = 'u32[72,128]{1,0:T(1,128)}', space=vmem, size = 0x9000, scoped, tag = 'internal scratch']
  #allocation2 [shape = 'f32[8,30,128]{2,1,0:T(8,128)}', space=vmem, size = 0x20000, scoped, tag = 'scratch operand']
  %s0 = inlined_call_operand.vmem [shape: f32[8,30,512], index: 0, kind: input, shape index: {}]
  %s1 = inlined_call_operand.vmem [shape: f32[128,512], index: 1, kind: input, shape index: {}]
  %s2 = inlined_call_operand.vmem [shape: f32[3,30,128], index: 2, kind: input, shape index: {}]
  %s3 = inlined_call_operand.vmem [shape: f32[1,1,3], index: 3, kind: input, shape index: {}]
  %s4 = inlined_call_operand.vmem [shape: f32[8,1,3], index: 4, kind: output, shape index: {}]
  %s5 = sld [smem:[#allocation0]]
  $region26: #{model_forward.1} parent=0
    _
  %s7 = ssub.s32 1, %s5
  %s8 = scalar_select 0, %s7, %s5
  // Predicated region
  $region2: #{model_forward.1} parent=0 // pred_check
    _
  $region3: #{model_forward.1} parent=0 // pred_check_branch
    %10 = sbr.rel (0) target = $region5
  $region4: #{model_forward.1} parent=0 // pred_region
    _
  $region5: #{model_forward.1} parent=0 // pred_fallthru
    _
  // Predicated region
  $region6: #{model_forward.1} parent=0 // pred_check
    _
  $region7: #{model_forward.1} parent=0 // pred_check_branch
    %12 = sbr.rel (0) target = $region9
  $region8: #{model_forward.1} parent=0 // pred_region
    _
  $region9: #{model_forward.1} parent=0 // pred_fallthru
    _
  // Predicated region
  $region10: #{model_forward.1} parent=0 // pred_check
    _
  $region11: #{model_forward.1} parent=0 // pred_check_branch
    %14 = sbr.rel (0) target = $region13
  $region12: #{model_forward.1} parent=0 // pred_region
    _
  $region13: #{model_forward.1} parent=0 // pred_fallthru
    _
  // Predicated region
  $region14: #{model_forward.1} parent=0 // pred_check
    _
  $region15: #{model_forward.1} parent=0 // pred_check_branch
    %16 = sbr.rel (0) target = $region17
  $region16: #{model_forward.1} parent=0 // pred_region
    _
  $region17: #{model_forward.1} parent=0 // pred_fallthru
    _
  %v17 = vld [vmem:[%s1] sm:$0xff]
  %v18 = vld [vmem:[%s1 + $0x8] sm:$0xff]
  %v19 = vld [vmem:[%s1 + $0x10] sm:$0xff]
  %v20 = vld [vmem:[%s1 + $0x18] sm:$0xff]
  %v21 = vld [vmem:[%s1 + $0x20] sm:$0xff]
  %v22 = vld [vmem:[%s1 + $0x28] sm:$0xff]
  %v23 = vld [vmem:[%s1 + $0x30] sm:$0xff]
  %v24 = vld [vmem:[%s1 + $0x38] sm:$0xff]
  %v25 = vld [vmem:[%s1 + $0x40] sm:$0xff]
  %v26 = vld [vmem:[%s1 + $0x48] sm:$0xff]
  %v27 = vld [vmem:[%s1 + $0x50] sm:$0xff]
  %v28 = vld [vmem:[%s1 + $0x58] sm:$0xff]
  %v29 = vld [vmem:[%s1 + $0x60] sm:$0xff]
  %v30 = vld [vmem:[%s1 + $0x68] sm:$0xff]
  %v31 = vld [vmem:[%s1 + $0x70] sm:$0xff]
  %v32 = vld [vmem:[%s1 + $0x78] sm:$0xff]
  %v33 = vld [vmem:[%s1 + $0x80] sm:$0xff]
  %v34 = vld [vmem:[%s1 + $0x88] sm:$0xff]
  %v35 = vld [vmem:[%s1 + $0x90] sm:$0xff]
  %v36 = vld [vmem:[%s1 + $0x98] sm:$0xff]
  %v37 = vld [vmem:[%s1 + $0xa0] sm:$0xff]
  %v38 = vld [vmem:[%s1 + $0xa8] sm:$0xff]
  %v39 = vld [vmem:[%s1 + $0xb0] sm:$0xff]
  %v40 = vld [vmem:[%s1 + $0xb8] sm:$0xff]
  %v41 = vld [vmem:[%s1 + $0xc0] sm:$0xff]
  %v42 = vld [vmem:[%s1 + $0xc8] sm:$0xff]
  %v43 = vld [vmem:[%s1 + $0xd0] sm:$0xff]
  %v44 = vld [vmem:[%s1 + $0xd8] sm:$0xff]
  %v45 = vld [vmem:[%s1 + $0xe0] sm:$0xff]
  %v46 = vld [vmem:[%s1 + $0xe8] sm:$0xff]
  %v47 = vld [vmem:[%s1 + $0xf0] sm:$0xff]
  %v48 = vld [vmem:[%s1 + $0xf8] sm:$0xff]
  %v49 = vld [vmem:[%s1 + $0x100] sm:$0xff]
  %v50 = vld [vmem:[%s1 + $0x108] sm:$0xff]
  %v51 = vld [vmem:[%s1 + $0x110] sm:$0xff]
  %v52 = vld [vmem:[%s1 + $0x118] sm:$0xff]
  %v53 = vld [vmem:[%s1 + $0x120] sm:$0xff]
  %v54 = vld [vmem:[%s1 + $0x128] sm:$0xff]
  %v55 = vld [vmem:[%s1 + $0x130] sm:$0xff]
  %v56 = vld [vmem:[%s1 + $0x138] sm:$0xff]
  %v57 = vld [vmem:[%s1 + $0x140] sm:$0xff]
  %v58 = vld [vmem:[%s1 + $0x148] sm:$0xff]
  %v59 = vld [vmem:[%s1 + $0x150] sm:$0xff]
  %v60 = vld [vmem:[%s1 + $0x158] sm:$0xff]
  %v61 = vld [vmem:[%s1 + $0x160] sm:$0xff]
  %v62 = vld [vmem:[%s1 + $0x168] sm:$0xff]
  %v63 = vld [vmem:[%s1 + $0x170] sm:$0xff]
  %v64 = vld [vmem:[%s1 + $0x178] sm:$0xff]
  %v65 = vld [vmem:[%s1 + $0x180] sm:$0xff]
  %v66 = vld [vmem:[%s1 + $0x188] sm:$0xff]
  %v67 = vld [vmem:[%s1 + $0x190] sm:$0xff]
  %v68 = vld [vmem:[%s1 + $0x198] sm:$0xff]
  %v69 = vld [vmem:[%s1 + $0x1a0] sm:$0xff]
  %v70 = vld [vmem:[%s1 + $0x1a8] sm:$0xff]
  %v71 = vld [vmem:[%s1 + $0x1b0] sm:$0xff]
  %v72 = vld [vmem:[%s1 + $0x1b8] sm:$0xff]
  %v73 = vld [vmem:[%s1 + $0x1c0] sm:$0xff]
  %v74 = vld [vmem:[%s1 + $0x1c8] sm:$0xff]
  %v75 = vld [vmem:[%s1 + $0x1d0] sm:$0xff]
  %v76 = vld [vmem:[%s1 + $0x1d8] sm:$0xff]
  %v77 = vld [vmem:[%s1 + $0x1e0] sm:$0xff]
  %v78 = vld [vmem:[%s1 + $0x1e8] sm:$0xff]
  %v79 = vld [vmem:[%s1 + $0x1f0] sm:$0xff]
  %v80 = vld [vmem:[%s1 + $0x1f8] sm:$0xff]
  %v81 = vld [vmem:[%s0] sm:$0xff]
  %v82 = vld [vmem:[%s0 + $0x8] sm:$0xff]
  %v83 = vld [vmem:[%s0 + $0x10] sm:$0xff]
  %v84 = vld [vmem:[%s0 + $0x18] sm:$0xff]
  %v85 = vld [vmem:[%s0 + $0x20] sm:$0xff]
  %v86 = vld [vmem:[%s0 + $0x28] sm:$0xff]
  %v87 = vld [vmem:[%s0 + $0x30] sm:$0xff]
  %v88 = vld [vmem:[%s0 + $0x38] sm:$0xff]
  %v89 = vld [vmem:[%s0 + $0x40] sm:$0xff]
  %v90 = vld [vmem:[%s0 + $0x48] sm:$0xff]
  %v91 = vld [vmem:[%s0 + $0x50] sm:$0xff]
  %v92 = vld [vmem:[%s0 + $0x58] sm:$0xff]
  %v93 = vld [vmem:[%s0 + $0x60] sm:$0x3f]
  %v94 = vld [vmem:[%s0 + $0x68] sm:$0x3f]
  %v95 = vld [vmem:[%s0 + $0x70] sm:$0x3f]
  %v96 = vld [vmem:[%s0 + $0x78] sm:$0x3f]
  %97 = vmatpush.msra.mxu0 %v77
  %98 = vmatpush.msra.mxu0 %v73
  %99 = vmatpush.msra.mxu0 %v69
  %100 = vmatpush.msra.mxu0 %v65
  %101 = vmatpush.msra.mxu0 %v61
  %102 = vmatpush.msra.mxu0 %v57
  %103 = vmatpush.msra.mxu0 %v53
  %104 = vmatpush.msra.mxu0 %v49
  %105 = vmatpush.msra.mxu0 %v45
  %106 = vmatpush.msra.mxu0 %v41
  %107 = vmatpush.msra.mxu0 %v37
  %108 = vmatpush.msra.mxu0 %v33
  %109 = vmatpush.msra.mxu0 %v29
  %110 = vmatpush.msra.mxu0 %v25
  %111 = vmatpush.msra.mxu0 %v21
  %112 = vmatpush.msra.mxu0 %v17
  %113 = vmatmul.f32.gmra.mxu0 0.0
  %v114 = vpop.f32.mrf.mxu0
  %v115 = vadd.f32 0.0, %v114
  %116 = vmatmul.f32.gmra.mxu0 0.0
  %v117 = vpop.f32.mrf.mxu0
  %v118 = vadd.f32 0.0, %v117
  %119 = vmatmul.f32.gmra.mxu0 0.0
  %v120 = vpop.f32.mrf.mxu0
  %v121 = vadd.f32 0.0, %v120
  %122 = vmatmul.f32.gmra.mxu0 0.0
  %v123 = vpop.f32.mrf.mxu0
  %v124 = vadd.f32 0.0, %v123
  %125 = vdwg.mxu0
  %126 = vmatpush.msra.mxu0 %v78
  %127 = vmatpush.msra.mxu0 %v74
  %128 = vmatpush.msra.mxu0 %v70
  %129 = vmatpush.msra.mxu0 %v66
  %130 = vmatpush.msra.mxu0 %v62
  %131 = vmatpush.msra.mxu0 %v58
  %132 = vmatpush.msra.mxu0 %v54
  %133 = vmatpush.msra.mxu0 %v50
  %134 = vmatpush.msra.mxu0 %v46
  %135 = vmatpush.msra.mxu0 %v42
  %136 = vmatpush.msra.mxu0 %v38
  %137 = vmatpush.msra.mxu0 %v34
  %138 = vmatpush.msra.mxu0 %v30
  %139 = vmatpush.msra.mxu0 %v26
  %140 = vmatpush.msra.mxu0 %v22
  %141 = vmatpush.msra.mxu0 %v18
  %142 = vmatmul.f32.gmra.mxu0 0.0
  %v143 = vpop.f32.mrf.mxu0
  %v144 = vadd.f32 0.0, %v143
  %145 = vmatmul.f32.gmra.mxu0 0.0
  %v146 = vpop.f32.mrf.mxu0
  %v147 = vadd.f32 0.0, %v146
  %148 = vmatmul.f32.gmra.mxu0 0.0
  %v149 = vpop.f32.mrf.mxu0
  %v150 = vadd.f32 0.0, %v149
  %151 = vmatmul.f32.gmra.mxu0 0.0
  %v152 = vpop.f32.mrf.mxu0
  %v153 = vadd.f32 0.0, %v152
  %154 = vdwg.mxu0
  %155 = vmatpush.msra.mxu0 %v79
  %156 = vmatpush.msra.mxu0 %v75
  %157 = vmatpush.msra.mxu0 %v71
  %158 = vmatpush.msra.mxu0 %v67
  %159 = vmatpush.msra.mxu0 %v63
  %160 = vmatpush.msra.mxu0 %v59
  %161 = vmatpush.msra.mxu0 %v55
  %162 = vmatpush.msra.mxu0 %v51
  %163 = vmatpush.msra.mxu0 %v47
  %164 = vmatpush.msra.mxu0 %v43
  %165 = vmatpush.msra.mxu0 %v39
  %166 = vmatpush.msra.mxu0 %v35
  %167 = vmatpush.msra.mxu0 %v31
  %168 = vmatpush.msra.mxu0 %v27
  %169 = vmatpush.msra.mxu0 %v23
  %170 = vmatpush.msra.mxu0 %v19
  %171 = vmatmul.f32.gmra.mxu0 0.0
  %v172 = vpop.f32.mrf.mxu0
  %v173 = vadd.f32 0.0, %v172
  %174 = vmatmul.f32.gmra.mxu0 0.0
  %v175 = vpop.f32.mrf.mxu0
  %v176 = vadd.f32 0.0, %v175
  %177 = vmatmul.f32.gmra.mxu0 0.0
  %v178 = vpop.f32.mrf.mxu0
  %v179 = vadd.f32 0.0, %v178
  %180 = vmatmul.f32.gmra.mxu0 0.0
  %v181 = vpop.f32.mrf.mxu0
  %v182 = vadd.f32 0.0, %v181
  %183 = vdwg.mxu0
  %184 = vmatpush.msra.mxu0 %v80
  %185 = vmatpush.msra.mxu0 %v76
  %186 = vmatpush.msra.mxu0 %v72
  %187 = vmatpush.msra.mxu0 %v68
  %188 = vmatpush.msra.mxu0 %v64
  %189 = vmatpush.msra.mxu0 %v60
  %190 = vmatpush.msra.mxu0 %v56
  %191 = vmatpush.msra.mxu0 %v52
  %192 = vmatpush.msra.mxu0 %v48
  %193 = vmatpush.msra.mxu0 %v44
  %194 = vmatpush.msra.mxu0 %v40
  %195 = vmatpush.msra.mxu0 %v36
  %196 = vmatpush.msra.mxu0 %v32
  %197 = vmatpush.msra.mxu0 %v28
  %198 = vmatpush.msra.mxu0 %v24
  %199 = vmatpush.msra.mxu0 %v20
  %200 = vmatmul.f32.gmra.mxu0 0.0
  %v201 = vpop.f32.mrf.mxu0
  %v202 = vadd.f32 0.0, %v201
  %203 = vmatmul.f32.gmra.mxu0 0.0
  %v204 = vpop.f32.mrf.mxu0
  %v205 = vadd.f32 0.0, %v204
  %206 = vmatmul.f32.gmra.mxu0 0.0
  %v207 = vpop.f32.mrf.mxu0
  %v208 = vadd.f32 0.0, %v207
  %209 = vmatmul.f32.gmra.mxu0 0.0
  %v210 = vpop.f32.mrf.mxu0
  %v211 = vadd.f32 0.0, %v210
  %212 = vdwg.mxu0
  %v213 = vadd.f32 %v81, %v115
  %v214 = vadd.f32 %v82, %v144
  %v215 = vadd.f32 %v83, %v173
  %v216 = vadd.f32 %v84, %v202
  %v217 = vadd.f32 %v85, %v118
  %v218 = vadd.f32 %v86, %v147
  %v219 = vadd.f32 %v87, %v176
  %v220 = vadd.f32 %v88, %v205
  %v221 = vadd.f32 %v89, %v121
  %v222 = vadd.f32 %v90, %v150
  %v223 = vadd.f32 %v91, %v179
  %v224 = vadd.f32 %v92, %v208
  %v225 = vadd.f32 %v93, %v124
  %v226 = vadd.f32 %v94, %v153
  %v227 = vadd.f32 %v95, %v182
  %v228 = vadd.f32 %v96, %v211
  %v229 = vxor.u32 %v213, 2147483648
  %v230 = vxor.u32 %v217, 2147483648
  %v231 = vxor.u32 %v221, 2147483648
  %v232 = vxor.u32 %v225, 2147483648
  %v233 = vmul.f32 %v229, 1.442695
  %v234 = vpow.pop %v233
  %v235 = vmul.f32 %v230, 1.442695
  %v236 = vpow.pop %v235
  %v237 = vmul.f32 %v231, 1.442695
  %v238 = vpow.pop %v237
  %v239 = vmul.f32 %v232, 1.442695
  %v240 = vpow.pop %v239
  %v241 = vadd.f32 %v234, 1.0
  %v242 = vadd.f32 %v236, 1.0
  %v243 = vadd.f32 %v238, 1.0
  %v244 = vadd.f32 %v240, 1.0
  %v245 = vrcp.pop %v241
  %v246 = vmul.f32 %v241, %v245
  %v247 = vsub.f32 1.0, %v246
  %v248 = vmul.f32 %v245, %v247
  %v249 = vadd.f32 %v245, %v248
  %vm250 = vweird.f32 %v241
  %vm251 = vweird.f32 %v245
  %vm252 = vmor %vm250, %vm251
  %v253 = vsel %vm252, %v245, %v249
  %v254 = vand.u32 2147483647, %v241
  %vm255 = vcmp.eq.f32.partialorder %v254, 8.507059e+37
  %v256 = vand.u32 %v241, 2147483648
  %v257 = vor.u32 1.1754944e-38, %v256
  %v258 = vsel %vm255, %v257, %v253
  %v259 = vmul.f32 1.0, %v258
  %v260 = vrcp.pop %v242
  %v261 = vmul.f32 %v242, %v260
  %v262 = vsub.f32 1.0, %v261
  %v263 = vmul.f32 %v260, %v262
  %v264 = vadd.f32 %v260, %v263
  %vm265 = vweird.f32 %v242
  %vm266 = vweird.f32 %v260
  %vm267 = vmor %vm265, %vm266
  %v268 = vsel %vm267, %v260, %v264
  %v269 = vand.u32 2147483647, %v242
  %vm270 = vcmp.eq.f32.partialorder %v269, 8.507059e+37
  %v271 = vand.u32 %v242, 2147483648
  %v272 = vor.u32 1.1754944e-38, %v271
  %v273 = vsel %vm270, %v272, %v268
  %v274 = vmul.f32 1.0, %v273
  %v275 = vrcp.pop %v243
  %v276 = vmul.f32 %v243, %v275
  %v277 = vsub.f32 1.0, %v276
  %v278 = vmul.f32 %v275, %v277
  %v279 = vadd.f32 %v275, %v278
  %vm280 = vweird.f32 %v243
  %vm281 = vweird.f32 %v275
  %vm282 = vmor %vm280, %vm281
  %v283 = vsel %vm282, %v275, %v279
  %v284 = vand.u32 2147483647, %v243
  %vm285 = vcmp.eq.f32.partialorder %v284, 8.507059e+37
  %v286 = vand.u32 %v243, 2147483648
  %v287 = vor.u32 1.1754944e-38, %v286
  %v288 = vsel %vm285, %v287, %v283
  %v289 = vmul.f32 1.0, %v288
  %v290 = vrcp.pop %v244
  %v291 = vmul.f32 %v244, %v290
  %v292 = vsub.f32 1.0, %v291
  %v293 = vmul.f32 %v290, %v292
  %v294 = vadd.f32 %v290, %v293
  %vm295 = vweird.f32 %v244
  %vm296 = vweird.f32 %v290
  %vm297 = vmor %vm295, %vm296
  %v298 = vsel %vm297, %v290, %v294
  %v299 = vand.u32 2147483647, %v244
  %vm300 = vcmp.eq.f32.partialorder %v299, 8.507059e+37
  %v301 = vand.u32 %v244, 2147483648
  %v302 = vor.u32 1.1754944e-38, %v301
  %v303 = vsel %vm300, %v302, %v298
  %v304 = vmul.f32 1.0, %v303
  %v305 = vxor.u32 %v214, 2147483648
  %v306 = vxor.u32 %v218, 2147483648
  %v307 = vxor.u32 %v222, 2147483648
  %v308 = vxor.u32 %v226, 2147483648
  %v309 = vmul.f32 %v305, 1.442695
  %v310 = vpow.pop %v309
  %v311 = vmul.f32 %v306, 1.442695
  %v312 = vpow.pop %v311
  %v313 = vmul.f32 %v307, 1.442695
  %v314 = vpow.pop %v313
  %v315 = vmul.f32 %v308, 1.442695
  %v316 = vpow.pop %v315
  %v317 = vadd.f32 %v310, 1.0
  %v318 = vadd.f32 %v312, 1.0
  %v319 = vadd.f32 %v314, 1.0
  %v320 = vadd.f32 %v316, 1.0
  %v321 = vrcp.pop %v317
  %v322 = vmul.f32 %v317, %v321
  %v323 = vsub.f32 1.0, %v322
  %v324 = vmul.f32 %v321, %v323
  %v325 = vadd.f32 %v321, %v324
  %vm326 = vweird.f32 %v317
  %vm327 = vweird.f32 %v321
  %vm328 = vmor %vm326, %vm327
  %v329 = vsel %vm328, %v321, %v325
  %v330 = vand.u32 2147483647, %v317
  %vm331 = vcmp.eq.f32.partialorder %v330, 8.507059e+37
  %v332 = vand.u32 %v317, 2147483648
  %v333 = vor.u32 1.1754944e-38, %v332
  %v334 = vsel %vm331, %v333, %v329
  %v335 = vmul.f32 1.0, %v334
  %v336 = vrcp.pop %v318
  %v337 = vmul.f32 %v318, %v336
  %v338 = vsub.f32 1.0, %v337
  %v339 = vmul.f32 %v336, %v338
  %v340 = vadd.f32 %v336, %v339
  %vm341 = vweird.f32 %v318
  %vm342 = vweird.f32 %v336
  %vm343 = vmor %vm341, %vm342
  %v344 = vsel %vm343, %v336, %v340
  %v345 = vand.u32 2147483647, %v318
  %vm346 = vcmp.eq.f32.partialorder %v345, 8.507059e+37
  %v347 = vand.u32 %v318, 2147483648
  %v348 = vor.u32 1.1754944e-38, %v347
  %v349 = vsel %vm346, %v348, %v344
  %v350 = vmul.f32 1.0, %v349
  %v351 = vrcp.pop %v319
  %v352 = vmul.f32 %v319, %v351
  %v353 = vsub.f32 1.0, %v352
  %v354 = vmul.f32 %v351, %v353
  %v355 = vadd.f32 %v351, %v354
  %vm356 = vweird.f32 %v319
  %vm357 = vweird.f32 %v351
  %vm358 = vmor %vm356, %vm357
  %v359 = vsel %vm358, %v351, %v355
  %v360 = vand.u32 2147483647, %v319
  %vm361 = vcmp.eq.f32.partialorder %v360, 8.507059e+37
  %v362 = vand.u32 %v319, 2147483648
  %v363 = vor.u32 1.1754944e-38, %v362
  %v364 = vsel %vm361, %v363, %v359
  %v365 = vmul.f32 1.0, %v364
  %v366 = vrcp.pop %v320
  %v367 = vmul.f32 %v320, %v366
  %v368 = vsub.f32 1.0, %v367
  %v369 = vmul.f32 %v366, %v368
  %v370 = vadd.f32 %v366, %v369
  %vm371 = vweird.f32 %v320
  %vm372 = vweird.f32 %v366
  %vm373 = vmor %vm371, %vm372
  %v374 = vsel %vm373, %v366, %v370
  %v375 = vand.u32 2147483647, %v320
  %vm376 = vcmp.eq.f32.partialorder %v375, 8.507059e+37
  %v377 = vand.u32 %v320, 2147483648
  %v378 = vor.u32 1.1754944e-38, %v377
  %v379 = vsel %vm376, %v378, %v374
  %v380 = vmul.f32 1.0, %v379
  %v381 = vtanh.pop %v215
  %v382 = vtanh.pop %v219
  %v383 = vtanh.pop %v223
  %v384 = vtanh.pop %v227
  %v385 = vxor.u32 %v216, 2147483648
  %v386 = vxor.u32 %v220, 2147483648
  %v387 = vxor.u32 %v224, 2147483648
  %v388 = vxor.u32 %v228, 2147483648
  %v389 = vmul.f32 %v385, 1.442695
  %v390 = vpow.pop %v389
  %v391 = vmul.f32 %v386, 1.442695
  %v392 = vpow.pop %v391
  %v393 = vmul.f32 %v387, 1.442695
  %v394 = vpow.pop %v393
  %v395 = vmul.f32 %v388, 1.442695
  %v396 = vpow.pop %v395
  %v397 = vadd.f32 %v390, 1.0
  %v398 = vadd.f32 %v392, 1.0
  %v399 = vadd.f32 %v394, 1.0
  %v400 = vadd.f32 %v396, 1.0
  %v401 = vrcp.pop %v397
  %v402 = vmul.f32 %v397, %v401
  %v403 = vsub.f32 1.0, %v402
  %v404 = vmul.f32 %v401, %v403
  %v405 = vadd.f32 %v401, %v404
  %vm406 = vweird.f32 %v397
  %vm407 = vweird.f32 %v401
  %vm408 = vmor %vm406, %vm407
  %v409 = vsel %vm408, %v401, %v405
  %v410 = vand.u32 2147483647, %v397
  %vm411 = vcmp.eq.f32.partialorder %v410, 8.507059e+37
  %v412 = vand.u32 %v397, 2147483648
  %v413 = vor.u32 1.1754944e-38, %v412
  %v414 = vsel %vm411, %v413, %v409
  %v415 = vmul.f32 1.0, %v414
  %v416 = vrcp.pop %v398
  %v417 = vmul.f32 %v398, %v416
  %v418 = vsub.f32 1.0, %v417
  %v419 = vmul.f32 %v416, %v418
  %v420 = vadd.f32 %v416, %v419
  %vm421 = vweird.f32 %v398
  %vm422 = vweird.f32 %v416
  %vm423 = vmor %vm421, %vm422
  %v424 = vsel %vm423, %v416, %v420
  %v425 = vand.u32 2147483647, %v398
  %vm426 = vcmp.eq.f32.partialorder %v425, 8.507059e+37
  %v427 = vand.u32 %v398, 2147483648
  %v428 = vor.u32 1.1754944e-38, %v427
  %v429 = vsel %vm426, %v428, %v424
  %v430 = vmul.f32 1.0, %v429
  %v431 = vrcp.pop %v399
  %v432 = vmul.f32 %v399, %v431
  %v433 = vsub.f32 1.0, %v432
  %v434 = vmul.f32 %v431, %v433
  %v435 = vadd.f32 %v431, %v434
  %vm436 = vweird.f32 %v399
  %vm437 = vweird.f32 %v431
  %vm438 = vmor %vm436, %vm437
  %v439 = vsel %vm438, %v431, %v435
  %v440 = vand.u32 2147483647, %v399
  %vm441 = vcmp.eq.f32.partialorder %v440, 8.507059e+37
  %v442 = vand.u32 %v399, 2147483648
  %v443 = vor.u32 1.1754944e-38, %v442
  %v444 = vsel %vm441, %v443, %v439
  %v445 = vmul.f32 1.0, %v444
  %v446 = vrcp.pop %v400
  %v447 = vmul.f32 %v400, %v446
  %v448 = vsub.f32 1.0, %v447
  %v449 = vmul.f32 %v446, %v448
  %v450 = vadd.f32 %v446, %v449
  %vm451 = vweird.f32 %v400
  %vm452 = vweird.f32 %v446
  %vm453 = vmor %vm451, %vm452
  %v454 = vsel %vm453, %v446, %v450
  %v455 = vand.u32 2147483647, %v400
  %vm456 = vcmp.eq.f32.partialorder %v455, 8.507059e+37
  %v457 = vand.u32 %v400, 2147483648
  %v458 = vor.u32 1.1754944e-38, %v457
  %v459 = vsel %vm456, %v458, %v454
  %v460 = vmul.f32 1.0, %v459
  %v461 = vmul.f32 %v335, 0.0
  %v462 = vmul.f32 %v350, 0.0
  %v463 = vmul.f32 %v365, 0.0
  %v464 = vmul.f32 %v380, 0.0
  %v465 = vmul.f32 %v259, %v381
  %v466 = vmul.f32 %v274, %v382
  %v467 = vmul.f32 %v289, %v383
  %v468 = vmul.f32 %v304, %v384
  %v469 = vadd.f32 %v461, %v465
  %v470 = vadd.f32 %v462, %v466
  %v471 = vadd.f32 %v463, %v467
  %v472 = vadd.f32 %v464, %v468
  %v473 = vtanh.pop %v469
  %v474 = vtanh.pop %v470
  %v475 = vtanh.pop %v471
  %v476 = vtanh.pop %v472
  %v477 = vmul.f32 %v415, %v473
  %v478 = vmul.f32 %v430, %v474
  %v479 = vmul.f32 %v445, %v475
  %v480 = vmul.f32 %v460, %v476
  %481 = vst [vmem:[#allocation2] sm:$0xff] %v477
  %482 = vst [vmem:[#allocation2 + $0x8] sm:$0xff] %v478
  %483 = vst [vmem:[#allocation2 + $0x10] sm:$0xff] %v479
  %484 = vst [vmem:[#allocation2 + $0x18] sm:$0x3f] %v480
  %s485 = scalar_lea.vmem %s0, 128
  %v486 = vld [vmem:[%s485] sm:$0xff]
  %v487 = vld [vmem:[%s485 + $0x8] sm:$0xff]
  %v488 = vld [vmem:[%s485 + $0x10] sm:$0xff]
  %v489 = vld [vmem:[%s485 + $0x18] sm:$0xff]
  %v490 = vld [vmem:[%s485 + $0x20] sm:$0xff]
  %v491 = vld [vmem:[%s485 + $0x28] sm:$0xff]
  %v492 = vld [vmem:[%s485 + $0x30] sm:$0xff]
  %v493 = vld [vmem:[%s485 + $0x38] sm:$0xff]
  %v494 = vld [vmem:[%s485 + $0x40] sm:$0xff]
  %v495 = vld [vmem:[%s485 + $0x48] sm:$0xff]
  %v496 = vld [vmem:[%s485 + $0x50] sm:$0xff]
  %v497 = vld [vmem:[%s485 + $0x58] sm:$0xff]
  %v498 = vld [vmem:[%s485 + $0x60] sm:$0x3f]
  %v499 = vld [vmem:[%s485 + $0x68] sm:$0x3f]
  %v500 = vld [vmem:[%s485 + $0x70] sm:$0x3f]
  %v501 = vld [vmem:[%s485 + $0x78] sm:$0x3f]
  %502 = vmatpush.msra.mxu0 %v77
  %503 = vmatpush.msra.mxu0 %v73
  %504 = vmatpush.msra.mxu0 %v69
  %505 = vmatpush.msra.mxu0 %v65
  %506 = vmatpush.msra.mxu0 %v61
  %507 = vmatpush.msra.mxu0 %v57
  %508 = vmatpush.msra.mxu0 %v53
  %509 = vmatpush.msra.mxu0 %v49
  %510 = vmatpush.msra.mxu0 %v45
  %511 = vmatpush.msra.mxu0 %v41
  %512 = vmatpush.msra.mxu0 %v37
  %513 = vmatpush.msra.mxu0 %v33
  %514 = vmatpush.msra.mxu0 %v29
  %515 = vmatpush.msra.mxu0 %v25
  %516 = vmatpush.msra.mxu0 %v21
  %517 = vmatpush.msra.mxu0 %v17
  %518 = vmatmul.f32.gmra.mxu0 %v477
  %v519 = vpop.f32.mrf.mxu0
  %v520 = vadd.f32 0.0, %v519
  %521 = vmatmul.f32.gmra.mxu0 %v478
  %v522 = vpop.f32.mrf.mxu0
  %v523 = vadd.f32 0.0, %v522
  %524 = vmatmul.f32.gmra.mxu0 %v479
  %v525 = vpop.f32.mrf.mxu0
  %v526 = vadd.f32 0.0, %v525
  %527 = vmatmul.f32.gmra.mxu0 %v480
  %v528 = vpop.f32.mrf.mxu0
  %v529 = vadd.f32 0.0, %v528
  %530 = vdwg.mxu0
  %531 = vmatpush.msra.mxu0 %v78
  %532 = vmatpush.msra.mxu0 %v74
  %533 = vmatpush.msra.mxu0 %v70
  %534 = vmatpush.msra.mxu0 %v66
  %535 = vmatpush.msra.mxu0 %v62
  %536 = vmatpush.msra.mxu0 %v58
  %537 = vmatpush.msra.mxu0 %v54
  %538 = vmatpush.msra.mxu0 %v50
  %539 = vmatpush.msra.mxu0 %v46
  %540 = vmatpush.msra.mxu0 %v42
  %541 = vmatpush.msra.mxu0 %v38
  %542 = vmatpush.msra.mxu0 %v34
  %543 = vmatpush.msra.mxu0 %v30
  %544 = vmatpush.msra.mxu0 %v26
  %545 = vmatpush.msra.mxu0 %v22
  %546 = vmatpush.msra.mxu0 %v18
  %547 = vmatmul.f32.gmra.mxu0 %v477
  %v548 = vpop.f32.mrf.mxu0
  %v549 = vadd.f32 0.0, %v548
  %550 = vmatmul.f32.gmra.mxu0 %v478
  %v551 = vpop.f32.mrf.mxu0
  %v552 = vadd.f32 0.0, %v551
  %553 = vmatmul.f32.gmra.mxu0 %v479
  %v554 = vpop.f32.mrf.mxu0
  %v555 = vadd.f32 0.0, %v554
  %556 = vmatmul.f32.gmra.mxu0 %v480
  %v557 = vpop.f32.mrf.mxu0
  %v558 = vadd.f32 0.0, %v557
  %559 = vdwg.mxu0
  %560 = vmatpush.msra.mxu0 %v79
  %561 = vmatpush.msra.mxu0 %v75
  %562 = vmatpush.msra.mxu0 %v71
  %563 = vmatpush.msra.mxu0 %v67
  %564 = vmatpush.msra.mxu0 %v63
  %565 = vmatpush.msra.mxu0 %v59
  %566 = vmatpush.msra.mxu0 %v55
  %567 = vmatpush.msra.mxu0 %v51
  %568 = vmatpush.msra.mxu0 %v47
  %569 = vmatpush.msra.mxu0 %v43
  %570 = vmatpush.msra.mxu0 %v39
  %571 = vmatpush.msra.mxu0 %v35
  %572 = vmatpush.msra.mxu0 %v31
  %573 = vmatpush.msra.mxu0 %v27
  %574 = vmatpush.msra.mxu0 %v23
  %575 = vmatpush.msra.mxu0 %v19
  %576 = vmatmul.f32.gmra.mxu0 %v477
  %v577 = vpop.f32.mrf.mxu0
  %v578 = vadd.f32 0.0, %v577
  %579 = vmatmul.f32.gmra.mxu0 %v478
  %v580 = vpop.f32.mrf.mxu0
  %v581 = vadd.f32 0.0, %v580
  %582 = vmatmul.f32.gmra.mxu0 %v479
  %v583 = vpop.f32.mrf.mxu0
  %v584 = vadd.f32 0.0, %v583
  %585 = vmatmul.f32.gmra.mxu0 %v480
  %v586 = vpop.f32.mrf.mxu0
  %v587 = vadd.f32 0.0, %v586
  %588 = vdwg.mxu0
  %589 = vmatpush.msra.mxu0 %v80
  %590 = vmatpush.msra.mxu0 %v76
  %591 = vmatpush.msra.mxu0 %v72
  %592 = vmatpush.msra.mxu0 %v68
  %593 = vmatpush.msra.mxu0 %v64
  %594 = vmatpush.msra.mxu0 %v60
  %595 = vmatpush.msra.mxu0 %v56
  %596 = vmatpush.msra.mxu0 %v52
  %597 = vmatpush.msra.mxu0 %v48
  %598 = vmatpush.msra.mxu0 %v44
  %599 = vmatpush.msra.mxu0 %v40
  %600 = vmatpush.msra.mxu0 %v36
  %601 = vmatpush.msra.mxu0 %v32
  %602 = vmatpush.msra.mxu0 %v28
  %603 = vmatpush.msra.mxu0 %v24
  %604 = vmatpush.msra.mxu0 %v20
  %605 = vmatmul.f32.gmra.mxu0 %v477
  %v606 = vpop.f32.mrf.mxu0
  %v607 = vadd.f32 0.0, %v606
  %608 = vmatmul.f32.gmra.mxu0 %v478
  %v609 = vpop.f32.mrf.mxu0
  %v610 = vadd.f32 0.0, %v609
  %611 = vmatmul.f32.gmra.mxu0 %v479
  %v612 = vpop.f32.mrf.mxu0
  %v613 = vadd.f32 0.0, %v612
  %614 = vmatmul.f32.gmra.mxu0 %v480
  %v615 = vpop.f32.mrf.mxu0
  %v616 = vadd.f32 0.0, %v615
  %617 = vdwg.mxu0
  %v618 = vadd.f32 %v486, %v520
  %v619 = vadd.f32 %v487, %v549
  %v620 = vadd.f32 %v488, %v578
  %v621 = vadd.f32 %v489, %v607
  %v622 = vadd.f32 %v490, %v523
  %v623 = vadd.f32 %v491, %v552
  %v624 = vadd.f32 %v492, %v581
  %v625 = vadd.f32 %v493, %v610
  %v626 = vadd.f32 %v494, %v526
  %v627 = vadd.f32 %v495, %v555
  %v628 = vadd.f32 %v496, %v584
  %v629 = vadd.f32 %v497, %v613
  %v630 = vadd.f32 %v498, %v529
  %v631 = vadd.f32 %v499, %v558
  %v632 = vadd.f32 %v500, %v587
  %v633 = vadd.f32 %v501, %v616
  %v634 = vxor.u32 %v618, 2147483648
  %v635 = vxor.u32 %v622, 2147483648
  %v636 = vxor.u32 %v626, 2147483648
  %v637 = vxor.u32 %v630, 2147483648
  %v638 = vmul.f32 %v634, 1.442695
  %v639 = vpow.pop %v638
  %v640 = vmul.f32 %v635, 1.442695
  %v641 = vpow.pop %v640
  %v642 = vmul.f32 %v636, 1.442695
  %v643 = vpow.pop %v642
  %v644 = vmul.f32 %v637, 1.442695
  %v645 = vpow.pop %v644
  %v646 = vadd.f32 %v639, 1.0
  %v647 = vadd.f32 %v641, 1.0
  %v648 = vadd.f32 %v643, 1.0
  %v649 = vadd.f32 %v645, 1.0
  %v650 = vrcp.pop %v646
  %v651 = vmul.f32 %v646, %v650
  %v652 = vsub.f32 1.0, %v651
  %v653 = vmul.f32 %v650, %v652
  %v654 = vadd.f32 %v650, %v653
  %vm655 = vweird.f32 %v646
  %vm656 = vweird.f32 %v650
  %vm657 = vmor %vm655, %vm656
  %v658 = vsel %vm657, %v650, %v654
  %v659 = vand.u32 2147483647, %v646
  %vm660 = vcmp.eq.f32.partialorder %v659, 8.507059e+37
  %v661 = vand.u32 %v646, 2147483648
  %v662 = vor.u32 1.1754944e-38, %v661
  %v663 = vsel %vm660, %v662, %v658
  %v664 = vmul.f32 1.0, %v663
  %v665 = vrcp.pop %v647
  %v666 = vmul.f32 %v647, %v665
  %v667 = vsub.f32 1.0, %v666
  %v668 = vmul.f32 %v665, %v667
  %v669 = vadd.f32 %v665, %v668
  %vm670 = vweird.f32 %v647
  %vm671 = vweird.f32 %v665
  %vm672 = vmor %vm670, %vm671
  %v673 = vsel %vm672, %v665, %v669
  %v674 = vand.u32 2147483647, %v647
  %vm675 = vcmp.eq.f32.partialorder %v674, 8.507059e+37
  %v676 = vand.u32 %v647, 2147483648
  %v677 = vor.u32 1.1754944e-38, %v676
  %v678 = vsel %vm675, %v677, %v673
  %v679 = vmul.f32 1.0, %v678
  %v680 = vrcp.pop %v648
  %v681 = vmul.f32 %v648, %v680
  %v682 = vsub.f32 1.0, %v681
  %v683 = vmul.f32 %v680, %v682
  %v684 = vadd.f32 %v680, %v683
  %vm685 = vweird.f32 %v648
  %vm686 = vweird.f32 %v680
  %vm687 = vmor %vm685, %vm686
  %v688 = vsel %vm687, %v680, %v684
  %v689 = vand.u32 2147483647, %v648
  %vm690 = vcmp.eq.f32.partialorder %v689, 8.507059e+37
  %v691 = vand.u32 %v648, 2147483648
  %v692 = vor.u32 1.1754944e-38, %v691
  %v693 = vsel %vm690, %v692, %v688
  %v694 = vmul.f32 1.0, %v693
  %v695 = vrcp.pop %v649
  %v696 = vmul.f32 %v649, %v695
  %v697 = vsub.f32 1.0, %v696
  %v698 = vmul.f32 %v695, %v697
  %v699 = vadd.f32 %v695, %v698
  %vm700 = vweird.f32 %v649
  %vm701 = vweird.f32 %v695
  %vm702 = vmor %vm700, %vm701
  %v703 = vsel %vm702, %v695, %v699
  %v704 = vand.u32 2147483647, %v649
  %vm705 = vcmp.eq.f32.partialorder %v704, 8.507059e+37
  %v706 = vand.u32 %v649, 2147483648
  %v707 = vor.u32 1.1754944e-38, %v706
  %v708 = vsel %vm705, %v707, %v703
  %v709 = vmul.f32 1.0, %v708
  %v710 = vxor.u32 %v619, 2147483648
  %v711 = vxor.u32 %v623, 2147483648
  %v712 = vxor.u32 %v627, 2147483648
  %v713 = vxor.u32 %v631, 2147483648
  %v714 = vmul.f32 %v710, 1.442695
  %v715 = vpow.pop %v714
  %v716 = vmul.f32 %v711, 1.442695
  %v717 = vpow.pop %v716
  %v718 = vmul.f32 %v712, 1.442695
  %v719 = vpow.pop %v718
  %v720 = vmul.f32 %v713, 1.442695
  %v721 = vpow.pop %v720
  %v722 = vadd.f32 %v715, 1.0
  %v723 = vadd.f32 %v717, 1.0
  %v724 = vadd.f32 %v719, 1.0
  %v725 = vadd.f32 %v721, 1.0
  %v726 = vrcp.pop %v722
  %v727 = vmul.f32 %v722, %v726
  %v728 = vsub.f32 1.0, %v727
  %v729 = vmul.f32 %v726, %v728
  %v730 = vadd.f32 %v726, %v729
  %vm731 = vweird.f32 %v722
  %vm732 = vweird.f32 %v726
  %vm733 = vmor %vm731, %vm732
  %v734 = vsel %vm733, %v726, %v730
  %v735 = vand.u32 2147483647, %v722
  %vm736 = vcmp.eq.f32.partialorder %v735, 8.507059e+37
  %v737 = vand.u32 %v722, 2147483648
  %v738 = vor.u32 1.1754944e-38, %v737
  %v739 = vsel %vm736, %v738, %v734
  %v740 = vmul.f32 1.0, %v739
  %v741 = vrcp.pop %v723
  %v742 = vmul.f32 %v723, %v741
  %v743 = vsub.f32 1.0, %v742
  %v744 = vmul.f32 %v741, %v743
  %v745 = vadd.f32 %v741, %v744
  %vm746 = vweird.f32 %v723
  %vm747 = vweird.f32 %v741
  %vm748 = vmor %vm746, %vm747
  %v749 = vsel %vm748, %v741, %v745
  %v750 = vand.u32 2147483647, %v723
  %vm751 = vcmp.eq.f32.partialorder %v750, 8.507059e+37
  %v752 = vand.u32 %v723, 2147483648
  %v753 = vor.u32 1.1754944e-38, %v752
  %v754 = vsel %vm751, %v753, %v749
  %v755 = vmul.f32 1.0, %v754
  %v756 = vrcp.pop %v724
  %v757 = vmul.f32 %v724, %v756
  %v758 = vsub.f32 1.0, %v757
  %v759 = vmul.f32 %v756, %v758
  %v760 = vadd.f32 %v756, %v759
  %vm761 = vweird.f32 %v724
  %vm762 = vweird.f32 %v756
  %vm763 = vmor %vm761, %vm762
  %v764 = vsel %vm763, %v756, %v760
  %v765 = vand.u32 2147483647, %v724
  %vm766 = vcmp.eq.f32.partialorder %v765, 8.507059e+37
  %v767 = vand.u32 %v724, 2147483648
  %v768 = vor.u32 1.1754944e-38, %v767
  %v769 = vsel %vm766, %v768, %v764
  %v770 = vmul.f32 1.0, %v769
  %v771 = vrcp.pop %v725
  %v772 = vmul.f32 %v725, %v771
  %v773 = vsub.f32 1.0, %v772
  %v774 = vmul.f32 %v771, %v773
  %v775 = vadd.f32 %v771, %v774
  %vm776 = vweird.f32 %v725
  %vm777 = vweird.f32 %v771
  %vm778 = vmor %vm776, %vm777
  %v779 = vsel %vm778, %v771, %v775
  %v780 = vand.u32 2147483647, %v725
  %vm781 = vcmp.eq.f32.partialorder %v780, 8.507059e+37
  %v782 = vand.u32 %v725, 2147483648
  %v783 = vor.u32 1.1754944e-38, %v782
  %v784 = vsel %vm781, %v783, %v779
  %v785 = vmul.f32 1.0, %v784
  %v786 = vtanh.pop %v620
  %v787 = vtanh.pop %v624
  %v788 = vtanh.pop %v628
  %v789 = vtanh.pop %v632
  %v790 = vxor.u32 %v621, 2147483648
  %v791 = vxor.u32 %v625, 2147483648
  %v792 = vxor.u32 %v629, 2147483648
  %v793 = vxor.u32 %v633, 2147483648
  %v794 = vmul.f32 %v790, 1.442695
  %v795 = vpow.pop %v794
  %v796 = vmul.f32 %v791, 1.442695
  %v797 = vpow.pop %v796
  %v798 = vmul.f32 %v792, 1.442695
  %v799 = vpow.pop %v798
  %v800 = vmul.f32 %v793, 1.442695
  %v801 = vpow.pop %v800
  %v802 = vadd.f32 %v795, 1.0
  %v803 = vadd.f32 %v797, 1.0
  %v804 = vadd.f32 %v799, 1.0
  %v805 = vadd.f32 %v801, 1.0
  %v806 = vrcp.pop %v802
  %v807 = vmul.f32 %v802, %v806
  %v808 = vsub.f32 1.0, %v807
  %v809 = vmul.f32 %v806, %v808
  %v810 = vadd.f32 %v806, %v809
  %vm811 = vweird.f32 %v802
  %vm812 = vweird.f32 %v806
  %vm813 = vmor %vm811, %vm812
  %v814 = vsel %vm813, %v806, %v810
  %v815 = vand.u32 2147483647, %v802
  %vm816 = vcmp.eq.f32.partialorder %v815, 8.507059e+37
  %v817 = vand.u32 %v802, 2147483648
  %v818 = vor.u32 1.1754944e-38, %v817
  %v819 = vsel %vm816, %v818, %v814
  %v820 = vmul.f32 1.0, %v819
  %v821 = vrcp.pop %v803
  %v822 = vmul.f32 %v803, %v821
  %v823 = vsub.f32 1.0, %v822
  %v824 = vmul.f32 %v821, %v823
  %v825 = vadd.f32 %v821, %v824
  %vm826 = vweird.f32 %v803
  %vm827 = vweird.f32 %v821
  %vm828 = vmor %vm826, %vm827
  %v829 = vsel %vm828, %v821, %v825
  %v830 = vand.u32 2147483647, %v803
  %vm831 = vcmp.eq.f32.partialorder %v830, 8.507059e+37
  %v832 = vand.u32 %v803, 2147483648
  %v833 = vor.u32 1.1754944e-38, %v832
  %v834 = vsel %vm831, %v833, %v829
  %v835 = vmul.f32 1.0, %v834
  %v836 = vrcp.pop %v804
  %v837 = vmul.f32 %v804, %v836
  %v838 = vsub.f32 1.0, %v837
  %v839 = vmul.f32 %v836, %v838
  %v840 = vadd.f32 %v836, %v839
  %vm841 = vweird.f32 %v804
  %vm842 = vweird.f32 %v836
  %vm843 = vmor %vm841, %vm842
  %v844 = vsel %vm843, %v836, %v840
  %v845 = vand.u32 2147483647, %v804
  %vm846 = vcmp.eq.f32.partialorder %v845, 8.507059e+37
  %v847 = vand.u32 %v804, 2147483648
  %v848 = vor.u32 1.1754944e-38, %v847
  %v849 = vsel %vm846, %v848, %v844
  %v850 = vmul.f32 1.0, %v849
  %v851 = vrcp.pop %v805
  %v852 = vmul.f32 %v805, %v851
  %v853 = vsub.f32 1.0, %v852
  %v854 = vmul.f32 %v851, %v853
  %v855 = vadd.f32 %v851, %v854
  %vm856 = vweird.f32 %v805
  %vm857 = vweird.f32 %v851
  %vm858 = vmor %vm856, %vm857
  %v859 = vsel %vm858, %v851, %v855
  %v860 = vand.u32 2147483647, %v805
  %vm861 = vcmp.eq.f32.partialorder %v860, 8.507059e+37
  %v862 = vand.u32 %v805, 2147483648
  %v863 = vor.u32 1.1754944e-38, %v862
  %v864 = vsel %vm861, %v863, %v859
  %v865 = vmul.f32 1.0, %v864
  %v866 = vmul.f32 %v740, %v469
  %v867 = vmul.f32 %v755, %v470
  %v868 = vmul.f32 %v770, %v471
  %v869 = vmul.f32 %v785, %v472
  %v870 = vmul.f32 %v664, %v786
  %v871 = vmul.f32 %v679, %v787
  %v872 = vmul.f32 %v694, %v788
  %v873 = vmul.f32 %v709, %v789
  %v874 = vadd.f32 %v866, %v870
  %v875 = vadd.f32 %v867, %v871
  %v876 = vadd.f32 %v868, %v872
  %v877 = vadd.f32 %v869, %v873
  %v878 = vtanh.pop %v874
  %v879 = vtanh.pop %v875
  %v880 = vtanh.pop %v876
  %v881 = vtanh.pop %v877
  %v882 = vmul.f32 %v820, %v878
  %v883 = vmul.f32 %v835, %v879
  %v884 = vmul.f32 %v850, %v880
  %v885 = vmul.f32 %v865, %v881
  %s886 = scalar_lea.vmem [#allocation2], 32
  %887 = vst [vmem:[%s886] sm:$0xff] %v882
  %888 = vst [vmem:[%s886 + $0x8] sm:$0xff] %v883
  %889 = vst [vmem:[%s886 + $0x10] sm:$0xff] %v884
  %890 = vst [vmem:[%s886 + $0x18] sm:$0x3f] %v885
  %s891 = scalar_lea.vmem %s0, 256
  %v892 = vld [vmem:[%s891] sm:$0xff]
  %v893 = vld [vmem:[%s891 + $0x8] sm:$0xff]
  %v894 = vld [vmem:[%s891 + $0x10] sm:$0xff]
  %v895 = vld [vmem:[%s891 + $0x18] sm:$0xff]
  %v896 = vld [vmem:[%s891 + $0x20] sm:$0xff]
  %v897 = vld [vmem:[%s891 + $0x28] sm:$0xff]
  %v898 = vld [vmem:[%s891 + $0x30] sm:$0xff]
  %v899 = vld [vmem:[%s891 + $0x38] sm:$0xff]
  %v900 = vld [vmem:[%s891 + $0x40] sm:$0xff]
  %v901 = vld [vmem:[%s891 + $0x48] sm:$0xff]
  %v902 = vld [vmem:[%s891 + $0x50] sm:$0xff]
  %v903 = vld [vmem:[%s891 + $0x58] sm:$0xff]
  %v904 = vld [vmem:[%s891 + $0x60] sm:$0x3f]
  %v905 = vld [vmem:[%s891 + $0x68] sm:$0x3f]
  %v906 = vld [vmem:[%s891 + $0x70] sm:$0x3f]
  %v907 = vld [vmem:[%s891 + $0x78] sm:$0x3f]
  %908 = vmatpush.msra.mxu0 %v77
  %909 = vmatpush.msra.mxu0 %v73
  %910 = vmatpush.msra.mxu0 %v69
  %911 = vmatpush.msra.mxu0 %v65
  %912 = vmatpush.msra.mxu0 %v61
  %913 = vmatpush.msra.mxu0 %v57
  %914 = vmatpush.msra.mxu0 %v53
  %915 = vmatpush.msra.mxu0 %v49
  %916 = vmatpush.msra.mxu0 %v45
  %917 = vmatpush.msra.mxu0 %v41
  %918 = vmatpush.msra.mxu0 %v37
  %919 = vmatpush.msra.mxu0 %v33
  %920 = vmatpush.msra.mxu0 %v29
  %921 = vmatpush.msra.mxu0 %v25
  %922 = vmatpush.msra.mxu0 %v21
  %923 = vmatpush.msra.mxu0 %v17
  %924 = vmatmul.f32.gmra.mxu0 %v882
  %v925 = vpop.f32.mrf.mxu0
  %v926 = vadd.f32 0.0, %v925
  %927 = vmatmul.f32.gmra.mxu0 %v883
  %v928 = vpop.f32.mrf.mxu0
  %v929 = vadd.f32 0.0, %v928
  %930 = vmatmul.f32.gmra.mxu0 %v884
  %v931 = vpop.f32.mrf.mxu0
  %v932 = vadd.f32 0.0, %v931
  %933 = vmatmul.f32.gmra.mxu0 %v885
  %v934 = vpop.f32.mrf.mxu0
  %v935 = vadd.f32 0.0, %v934
  %936 = vdwg.mxu0
  %937 = vmatpush.msra.mxu0 %v78
  %938 = vmatpush.msra.mxu0 %v74
  %939 = vmatpush.msra.mxu0 %v70
  %940 = vmatpush.msra.mxu0 %v66
  %941 = vmatpush.msra.mxu0 %v62
  %942 = vmatpush.msra.mxu0 %v58
  %943 = vmatpush.msra.mxu0 %v54
  %944 = vmatpush.msra.mxu0 %v50
  %945 = vmatpush.msra.mxu0 %v46
  %946 = vmatpush.msra.mxu0 %v42
  %947 = vmatpush.msra.mxu0 %v38
  %948 = vmatpush.msra.mxu0 %v34
  %949 = vmatpush.msra.mxu0 %v30
  %950 = vmatpush.msra.mxu0 %v26
  %951 = vmatpush.msra.mxu0 %v22
  %952 = vmatpush.msra.mxu0 %v18
  %953 = vmatmul.f32.gmra.mxu0 %v882
  %v954 = vpop.f32.mrf.mxu0
  %v955 = vadd.f32 0.0, %v954
  %956 = vmatmul.f32.gmra.mxu0 %v883
  %v957 = vpop.f32.mrf.mxu0
  %v958 = vadd.f32 0.0, %v957
  %959 = vmatmul.f32.gmra.mxu0 %v884
  %v960 = vpop.f32.mrf.mxu0
  %v961 = vadd.f32 0.0, %v960
  %962 = vmatmul.f32.gmra.mxu0 %v885
  %v963 = vpop.f32.mrf.mxu0
  %v964 = vadd.f32 0.0, %v963
  %965 = vdwg.mxu0
  %966 = vmatpush.msra.mxu0 %v79
  %967 = vmatpush.msra.mxu0 %v75
  %968 = vmatpush.msra.mxu0 %v71
  %969 = vmatpush.msra.mxu0 %v67
  %970 = vmatpush.msra.mxu0 %v63
  %971 = vmatpush.msra.mxu0 %v59
  %972 = vmatpush.msra.mxu0 %v55
  %973 = vmatpush.msra.mxu0 %v51
  %974 = vmatpush.msra.mxu0 %v47
  %975 = vmatpush.msra.mxu0 %v43
  %976 = vmatpush.msra.mxu0 %v39
  %977 = vmatpush.msra.mxu0 %v35
  %978 = vmatpush.msra.mxu0 %v31
  %979 = vmatpush.msra.mxu0 %v27
  %980 = vmatpush.msra.mxu0 %v23
  %981 = vmatpush.msra.mxu0 %v19
  %982 = vmatmul.f32.gmra.mxu0 %v882
  %v983 = vpop.f32.mrf.mxu0
  %v984 = vadd.f32 0.0, %v983
  %985 = vmatmul.f32.gmra.mxu0 %v883
  %v986 = vpop.f32.mrf.mxu0
  %v987 = vadd.f32 0.0, %v986
  %988 = vmatmul.f32.gmra.mxu0 %v884
  %v989 = vpop.f32.mrf.mxu0
  %v990 = vadd.f32 0.0, %v989
  %991 = vmatmul.f32.gmra.mxu0 %v885
  %v992 = vpop.f32.mrf.mxu0
  %v993 = vadd.f32 0.0, %v992
  %994 = vdwg.mxu0
  %995 = vmatpush.msra.mxu0 %v80
  %996 = vmatpush.msra.mxu0 %v76
  %997 = vmatpush.msra.mxu0 %v72
  %998 = vmatpush.msra.mxu0 %v68
  %999 = vmatpush.msra.mxu0 %v64
  %1000 = vmatpush.msra.mxu0 %v60
  %1001 = vmatpush.msra.mxu0 %v56
  %1002 = vmatpush.msra.mxu0 %v52
  %1003 = vmatpush.msra.mxu0 %v48
  %1004 = vmatpush.msra.mxu0 %v44
  %1005 = vmatpush.msra.mxu0 %v40
  %1006 = vmatpush.msra.mxu0 %v36
  %1007 = vmatpush.msra.mxu0 %v32
  %1008 = vmatpush.msra.mxu0 %v28
  %1009 = vmatpush.msra.mxu0 %v24
  %1010 = vmatpush.msra.mxu0 %v20
  %1011 = vmatmul.f32.gmra.mxu0 %v882
  %v1012 = vpop.f32.mrf.mxu0
  %v1013 = vadd.f32 0.0, %v1012
  %1014 = vmatmul.f32.gmra.mxu0 %v883
  %v1015 = vpop.f32.mrf.mxu0
  %v1016 = vadd.f32 0.0, %v1015
  %1017 = vmatmul.f32.gmra.mxu0 %v884
  %v1018 = vpop.f32.mrf.mxu0
  %v1019 = vadd.f32 0.0, %v1018
  %1020 = vmatmul.f32.gmra.mxu0 %v885
  %v1021 = vpop.f32.mrf.mxu0
  %v1022 = vadd.f32 0.0, %v1021
  %1023 = vdwg.mxu0
  %v1024 = vadd.f32 %v892, %v926
  %v1025 = vadd.f32 %v893, %v955
  %v1026 = vadd.f32 %v894, %v984
  %v1027 = vadd.f32 %v895, %v1013
  %v1028 = vadd.f32 %v896, %v929
  %v1029 = vadd.f32 %v897, %v958
  %v1030 = vadd.f32 %v898, %v987
  %v1031 = vadd.f32 %v899, %v1016
  %v1032 = vadd.f32 %v900, %v932
  %v1033 = vadd.f32 %v901, %v961
  %v1034 = vadd.f32 %v902, %v990
  %v1035 = vadd.f32 %v903, %v1019
  %v1036 = vadd.f32 %v904, %v935
  %v1037 = vadd.f32 %v905, %v964
  %v1038 = vadd.f32 %v906, %v993
  %v1039 = vadd.f32 %v907, %v1022
  %v1040 = vxor.u32 %v1024, 2147483648
  %v1041 = vxor.u32 %v1028, 2147483648
  %v1042 = vxor.u32 %v1032, 2147483648
  %v1043 = vxor.u32 %v1036, 2147483648
  %v1044 = vmul.f32 %v1040, 1.442695
  %v1045 = vpow.pop %v1044
  %v1046 = vmul.f32 %v1041, 1.442695
  %v1047 = vpow.pop %v1046
  %v1048 = vmul.f32 %v1042, 1.442695
  %v1049 = vpow.pop %v1048
  %v1050 = vmul.f32 %v1043, 1.442695
  %v1051 = vpow.pop %v1050
  %v1052 = vadd.f32 %v1045, 1.0
  %v1053 = vadd.f32 %v1047, 1.0
  %v1054 = vadd.f32 %v1049, 1.0
  %v1055 = vadd.f32 %v1051, 1.0
  %v1056 = vrcp.pop %v1052
  %v1057 = vmul.f32 %v1052, %v1056
  %v1058 = vsub.f32 1.0, %v1057
  %v1059 = vmul.f32 %v1056, %v1058
  %v1060 = vadd.f32 %v1056, %v1059
  %vm1061 = vweird.f32 %v1052
  %vm1062 = vweird.f32 %v1056
  %vm1063 = vmor %vm1061, %vm1062
  %v1064 = vsel %vm1063, %v1056, %v1060
  %v1065 = vand.u32 2147483647, %v1052
  %vm1066 = vcmp.eq.f32.partialorder %v1065, 8.507059e+37
  %v1067 = vand.u32 %v1052, 2147483648
  %v1068 = vor.u32 1.1754944e-38, %v1067
  %v1069 = vsel %vm1066, %v1068, %v1064
  %v1070 = vmul.f32 1.0, %v1069
  %v1071 = vrcp.pop %v1053
  %v1072 = vmul.f32 %v1053, %v1071
  %v1073 = vsub.f32 1.0, %v1072
  %v1074 = vmul.f32 %v1071, %v1073
  %v1075 = vadd.f32 %v1071, %v1074
  %vm1076 = vweird.f32 %v1053
  %vm1077 = vweird.f32 %v1071
  %vm1078 = vmor %vm1076, %vm1077
  %v1079 = vsel %vm1078, %v1071, %v1075
  %v1080 = vand.u32 2147483647, %v1053
  %vm1081 = vcmp.eq.f32.partialorder %v1080, 8.507059e+37
  %v1082 = vand.u32 %v1053, 2147483648
  %v1083 = vor.u32 1.1754944e-38, %v1082
  %v1084 = vsel %vm1081, %v1083, %v1079
  %v1085 = vmul.f32 1.0, %v1084
  %v1086 = vrcp.pop %v1054
  %v1087 = vmul.f32 %v1054, %v1086
  %v1088 = vsub.f32 1.0, %v1087
  %v1089 = vmul.f32 %v1086, %v1088
  %v1090 = vadd.f32 %v1086, %v1089
  %vm1091 = vweird.f32 %v1054
  %vm1092 = vweird.f32 %v1086
  %vm1093 = vmor %vm1091, %vm1092
  %v1094 = vsel %vm1093, %v1086, %v1090
  %v1095 = vand.u32 2147483647, %v1054
  %vm1096 = vcmp.eq.f32.partialorder %v1095, 8.507059e+37
  %v1097 = vand.u32 %v1054, 2147483648
  %v1098 = vor.u32 1.1754944e-38, %v1097
  %v1099 = vsel %vm1096, %v1098, %v1094
  %v1100 = vmul.f32 1.0, %v1099
  %v1101 = vrcp.pop %v1055
  %v1102 = vmul.f32 %v1055, %v1101
  %v1103 = vsub.f32 1.0, %v1102
  %v1104 = vmul.f32 %v1101, %v1103
  %v1105 = vadd.f32 %v1101, %v1104
  %vm1106 = vweird.f32 %v1055
  %vm1107 = vweird.f32 %v1101
  %vm1108 = vmor %vm1106, %vm1107
  %v1109 = vsel %vm1108, %v1101, %v1105
  %v1110 = vand.u32 2147483647, %v1055
  %vm1111 = vcmp.eq.f32.partialorder %v1110, 8.507059e+37
  %v1112 = vand.u32 %v1055, 2147483648
  %v1113 = vor.u32 1.1754944e-38, %v1112
  %v1114 = vsel %vm1111, %v1113, %v1109
  %v1115 = vmul.f32 1.0, %v1114
  %v1116 = vxor.u32 %v1025, 2147483648
  %v1117 = vxor.u32 %v1029, 2147483648
  %v1118 = vxor.u32 %v1033, 2147483648
  %v1119 = vxor.u32 %v1037, 2147483648
  %v1120 = vmul.f32 %v1116, 1.442695
  %v1121 = vpow.pop %v1120
  %v1122 = vmul.f32 %v1117, 1.442695
  %v1123 = vpow.pop %v1122
  %v1124 = vmul.f32 %v1118, 1.442695
  %v1125 = vpow.pop %v1124
  %v1126 = vmul.f32 %v1119, 1.442695
  %v1127 = vpow.pop %v1126
  %v1128 = vadd.f32 %v1121, 1.0
  %v1129 = vadd.f32 %v1123, 1.0
  %v1130 = vadd.f32 %v1125, 1.0
  %v1131 = vadd.f32 %v1127, 1.0
  %v1132 = vrcp.pop %v1128
  %v1133 = vmul.f32 %v1128, %v1132
  %v1134 = vsub.f32 1.0, %v1133
  %v1135 = vmul.f32 %v1132, %v1134
  %v1136 = vadd.f32 %v1132, %v1135
  %vm1137 = vweird.f32 %v1128
  %vm1138 = vweird.f32 %v1132
  %vm1139 = vmor %vm1137, %vm1138
  %v1140 = vsel %vm1139, %v1132, %v1136
  %v1141 = vand.u32 2147483647, %v1128
  %vm1142 = vcmp.eq.f32.partialorder %v1141, 8.507059e+37
  %v1143 = vand.u32 %v1128, 2147483648
  %v1144 = vor.u32 1.1754944e-38, %v1143
  %v1145 = vsel %vm1142, %v1144, %v1140
  %v1146 = vmul.f32 1.0, %v1145
  %v1147 = vrcp.pop %v1129
  %v1148 = vmul.f32 %v1129, %v1147
  %v1149 = vsub.f32 1.0, %v1148
  %v1150 = vmul.f32 %v1147, %v1149
  %v1151 = vadd.f32 %v1147, %v1150
  %vm1152 = vweird.f32 %v1129
  %vm1153 = vweird.f32 %v1147
  %vm1154 = vmor %vm1152, %vm1153
  %v1155 = vsel %vm1154, %v1147, %v1151
  %v1156 = vand.u32 2147483647, %v1129
  %vm1157 = vcmp.eq.f32.partialorder %v1156, 8.507059e+37
  %v1158 = vand.u32 %v1129, 2147483648
  %v1159 = vor.u32 1.1754944e-38, %v1158
  %v1160 = vsel %vm1157, %v1159, %v1155
  %v1161 = vmul.f32 1.0, %v1160
  %v1162 = vrcp.pop %v1130
  %v1163 = vmul.f32 %v1130, %v1162
  %v1164 = vsub.f32 1.0, %v1163
  %v1165 = vmul.f32 %v1162, %v1164
  %v1166 = vadd.f32 %v1162, %v1165
  %vm1167 = vweird.f32 %v1130
  %vm1168 = vweird.f32 %v1162
  %vm1169 = vmor %vm1167, %vm1168
  %v1170 = vsel %vm1169, %v1162, %v1166
  %v1171 = vand.u32 2147483647, %v1130
  %vm1172 = vcmp.eq.f32.partialorder %v1171, 8.507059e+37
  %v1173 = vand.u32 %v1130, 2147483648
  %v1174 = vor.u32 1.1754944e-38, %v1173
  %v1175 = vsel %vm1172, %v1174, %v1170
  %v1176 = vmul.f32 1.0, %v1175
  %v1177 = vrcp.pop %v1131
  %v1178 = vmul.f32 %v1131, %v1177
  %v1179 = vsub.f32 1.0, %v1178
  %v1180 = vmul.f32 %v1177, %v1179
  %v1181 = vadd.f32 %v1177, %v1180
  %vm1182 = vweird.f32 %v1131
  %vm1183 = vweird.f32 %v1177
  %vm1184 = vmor %vm1182, %vm1183
  %v1185 = vsel %vm1184, %v1177, %v1181
  %v1186 = vand.u32 2147483647, %v1131
  %vm1187 = vcmp.eq.f32.partialorder %v1186, 8.507059e+37
  %v1188 = vand.u32 %v1131, 2147483648
  %v1189 = vor.u32 1.1754944e-38, %v1188
  %v1190 = vsel %vm1187, %v1189, %v1185
  %v1191 = vmul.f32 1.0, %v1190
  %v1192 = vtanh.pop %v1026
  %v1193 = vtanh.pop %v1030
  %v1194 = vtanh.pop %v1034
  %v1195 = vtanh.pop %v1038
  %v1196 = vxor.u32 %v1027, 2147483648
  %v1197 = vxor.u32 %v1031, 2147483648
  %v1198 = vxor.u32 %v1035, 2147483648
  %v1199 = vxor.u32 %v1039, 2147483648
  %v1200 = vmul.f32 %v1196, 1.442695
  %v1201 = vpow.pop %v1200
  %v1202 = vmul.f32 %v1197, 1.442695
  %v1203 = vpow.pop %v1202
  %v1204 = vmul.f32 %v1198, 1.442695
  %v1205 = vpow.pop %v1204
  %v1206 = vmul.f32 %v1199, 1.442695
  %v1207 = vpow.pop %v1206
  %v1208 = vadd.f32 %v1201, 1.0
  %v1209 = vadd.f32 %v1203, 1.0
  %v1210 = vadd.f32 %v1205, 1.0
  %v1211 = vadd.f32 %v1207, 1.0
  %v1212 = vrcp.pop %v1208
  %v1213 = vmul.f32 %v1208, %v1212
  %v1214 = vsub.f32 1.0, %v1213
  %v1215 = vmul.f32 %v1212, %v1214
  %v1216 = vadd.f32 %v1212, %v1215
  %vm1217 = vweird.f32 %v1208
  %vm1218 = vweird.f32 %v1212
  %vm1219 = vmor %vm1217, %vm1218
  %v1220 = vsel %vm1219, %v1212, %v1216
  %v1221 = vand.u32 2147483647, %v1208
  %vm1222 = vcmp.eq.f32.partialorder %v1221, 8.507059e+37
  %v1223 = vand.u32 %v1208, 2147483648
  %v1224 = vor.u32 1.1754944e-38, %v1223
  %v1225 = vsel %vm1222, %v1224, %v1220
  %v1226 = vmul.f32 1.0, %v1225
  %v1227 = vrcp.pop %v1209
  %v1228 = vmul.f32 %v1209, %v1227
  %v1229 = vsub.f32 1.0, %v1228
  %v1230 = vmul.f32 %v1227, %v1229
  %v1231 = vadd.f32 %v1227, %v1230
  %vm1232 = vweird.f32 %v1209
  %vm1233 = vweird.f32 %v1227
  %vm1234 = vmor %vm1232, %vm1233
  %v1235 = vsel %vm1234, %v1227, %v1231
  %v1236 = vand.u32 2147483647, %v1209
  %vm1237 = vcmp.eq.f32.partialorder %v1236, 8.507059e+37
  %v1238 = vand.u32 %v1209, 2147483648
  %v1239 = vor.u32 1.1754944e-38, %v1238
  %v1240 = vsel %vm1237, %v1239, %v1235
  %v1241 = vmul.f32 1.0, %v1240
  %v1242 = vrcp.pop %v1210
  %v1243 = vmul.f32 %v1210, %v1242
  %v1244 = vsub.f32 1.0, %v1243
  %v1245 = vmul.f32 %v1242, %v1244
  %v1246 = vadd.f32 %v1242, %v1245
  %vm1247 = vweird.f32 %v1210
  %vm1248 = vweird.f32 %v1242
  %vm1249 = vmor %vm1247, %vm1248
  %v1250 = vsel %vm1249, %v1242, %v1246
  %v1251 = vand.u32 2147483647, %v1210
  %vm1252 = vcmp.eq.f32.partialorder %v1251, 8.507059e+37
  %v1253 = vand.u32 %v1210, 2147483648
  %v1254 = vor.u32 1.1754944e-38, %v1253
  %v1255 = vsel %vm1252, %v1254, %v1250
  %v1256 = vmul.f32 1.0, %v1255
  %v1257 = vrcp.pop %v1211
  %v1258 = vmul.f32 %v1211, %v1257
  %v1259 = vsub.f32 1.0, %v1258
  %v1260 = vmul.f32 %v1257, %v1259
  %v1261 = vadd.f32 %v1257, %v1260
  %vm1262 = vweird.f32 %v1211
  %vm1263 = vweird.f32 %v1257
  %vm1264 = vmor %vm1262, %vm1263
  %v1265 = vsel %vm1264, %v1257, %v1261
  %v1266 = vand.u32 2147483647, %v1211
  %vm1267 = vcmp.eq.f32.partialorder %v1266, 8.507059e+37
  %v1268 = vand.u32 %v1211, 2147483648
  %v1269 = vor.u32 1.1754944e-38, %v1268
  %v1270 = vsel %vm1267, %v1269, %v1265
  %v1271 = vmul.f32 1.0, %v1270
  %v1272 = vmul.f32 %v1146, %v874
  %v1273 = vmul.f32 %v1161, %v875
  %v1274 = vmul.f32 %v1176, %v876
  %v1275 = vmul.f32 %v1191, %v877
  %v1276 = vmul.f32 %v1070, %v1192
  %v1277 = vmul.f32 %v1085, %v1193
  %v1278 = vmul.f32 %v1100, %v1194
  %v1279 = vmul.f32 %v1115, %v1195
  %v1280 = vadd.f32 %v1272, %v1276
  %v1281 = vadd.f32 %v1273, %v1277
  %v1282 = vadd.f32 %v1274, %v1278
  %v1283 = vadd.f32 %v1275, %v1279
  %v1284 = vtanh.pop %v1280
  %v1285 = vtanh.pop %v1281
  %v1286 = vtanh.pop %v1282
  %v1287 = vtanh.pop %v1283
  %v1288 = vmul.f32 %v1226, %v1284
  %v1289 = vmul.f32 %v1241, %v1285
  %v1290 = vmul.f32 %v1256, %v1286
  %v1291 = vmul.f32 %v1271, %v1287
  %s1292 = scalar_lea.vmem [#allocation2], 64
  %1293 = vst [vmem:[%s1292] sm:$0xff] %v1288
  %1294 = vst [vmem:[%s1292 + $0x8] sm:$0xff] %v1289
  %1295 = vst [vmem:[%s1292 + $0x10] sm:$0xff] %v1290
  %1296 = vst [vmem:[%s1292 + $0x18] sm:$0x3f] %v1291
  %s1297 = scalar_lea.vmem %s0, 384
  %v1298 = vld [vmem:[%s1297] sm:$0xff]
  %v1299 = vld [vmem:[%s1297 + $0x8] sm:$0xff]
  %v1300 = vld [vmem:[%s1297 + $0x10] sm:$0xff]
  %v1301 = vld [vmem:[%s1297 + $0x18] sm:$0xff]
  %v1302 = vld [vmem:[%s1297 + $0x20] sm:$0xff]
  %v1303 = vld [vmem:[%s1297 + $0x28] sm:$0xff]
  %v1304 = vld [vmem:[%s1297 + $0x30] sm:$0xff]
  %v1305 = vld [vmem:[%s1297 + $0x38] sm:$0xff]
  %v1306 = vld [vmem:[%s1297 + $0x40] sm:$0xff]
  %v1307 = vld [vmem:[%s1297 + $0x48] sm:$0xff]
  %v1308 = vld [vmem:[%s1297 + $0x50] sm:$0xff]
  %v1309 = vld [vmem:[%s1297 + $0x58] sm:$0xff]
  %v1310 = vld [vmem:[%s1297 + $0x60] sm:$0x3f]
  %v1311 = vld [vmem:[%s1297 + $0x68] sm:$0x3f]
  %v1312 = vld [vmem:[%s1297 + $0x70] sm:$0x3f]
  %v1313 = vld [vmem:[%s1297 + $0x78] sm:$0x3f]
  %1314 = vmatpush.msra.mxu0 %v77
  %1315 = vmatpush.msra.mxu0 %v73
  %1316 = vmatpush.msra.mxu0 %v69
  %1317 = vmatpush.msra.mxu0 %v65
  %1318 = vmatpush.msra.mxu0 %v61
  %1319 = vmatpush.msra.mxu0 %v57
  %1320 = vmatpush.msra.mxu0 %v53
  %1321 = vmatpush.msra.mxu0 %v49
  %1322 = vmatpush.msra.mxu0 %v45
  %1323 = vmatpush.msra.mxu0 %v41
  %1324 = vmatpush.msra.mxu0 %v37
  %1325 = vmatpush.msra.mxu0 %v33
  %1326 = vmatpush.msra.mxu0 %v29
  %1327 = vmatpush.msra.mxu0 %v25
  %1328 = vmatpush.msra.mxu0 %v21
  %1329 = vmatpush.msra.mxu0 %v17
  %1330 = vmatmul.f32.gmra.mxu0 %v1288
  %v1331 = vpop.f32.mrf.mxu0
  %v1332 = vadd.f32 0.0, %v1331
  %1333 = vmatmul.f32.gmra.mxu0 %v1289
  %v1334 = vpop.f32.mrf.mxu0
  %v1335 = vadd.f32 0.0, %v1334
  %1336 = vmatmul.f32.gmra.mxu0 %v1290
  %v1337 = vpop.f32.mrf.mxu0
  %v1338 = vadd.f32 0.0, %v1337
  %1339 = vmatmul.f32.gmra.mxu0 %v1291
  %v1340 = vpop.f32.mrf.mxu0
  %v1341 = vadd.f32 0.0, %v1340
  %1342 = vdwg.mxu0
  %1343 = vmatpush.msra.mxu0 %v78
  %1344 = vmatpush.msra.mxu0 %v74
  %1345 = vmatpush.msra.mxu0 %v70
  %1346 = vmatpush.msra.mxu0 %v66
  %1347 = vmatpush.msra.mxu0 %v62
  %1348 = vmatpush.msra.mxu0 %v58
  %1349 = vmatpush.msra.mxu0 %v54
  %1350 = vmatpush.msra.mxu0 %v50
  %1351 = vmatpush.msra.mxu0 %v46
  %1352 = vmatpush.msra.mxu0 %v42
  %1353 = vmatpush.msra.mxu0 %v38
  %1354 = vmatpush.msra.mxu0 %v34
  %1355 = vmatpush.msra.mxu0 %v30
  %1356 = vmatpush.msra.mxu0 %v26
  %1357 = vmatpush.msra.mxu0 %v22
  %1358 = vmatpush.msra.mxu0 %v18
  %1359 = vmatmul.f32.gmra.mxu0 %v1288
  %v1360 = vpop.f32.mrf.mxu0
  %v1361 = vadd.f32 0.0, %v1360
  %1362 = vmatmul.f32.gmra.mxu0 %v1289
  %v1363 = vpop.f32.mrf.mxu0
  %v1364 = vadd.f32 0.0, %v1363
  %1365 = vmatmul.f32.gmra.mxu0 %v1290
  %v1366 = vpop.f32.mrf.mxu0
  %v1367 = vadd.f32 0.0, %v1366
  %1368 = vmatmul.f32.gmra.mxu0 %v1291
  %v1369 = vpop.f32.mrf.mxu0
  %v1370 = vadd.f32 0.0, %v1369
  %1371 = vdwg.mxu0
  %1372 = vmatpush.msra.mxu0 %v79
  %1373 = vmatpush.msra.mxu0 %v75
  %1374 = vmatpush.msra.mxu0 %v71
  %1375 = vmatpush.msra.mxu0 %v67
  %1376 = vmatpush.msra.mxu0 %v63
  %1377 = vmatpush.msra.mxu0 %v59
  %1378 = vmatpush.msra.mxu0 %v55
  %1379 = vmatpush.msra.mxu0 %v51
  %1380 = vmatpush.msra.mxu0 %v47
  %1381 = vmatpush.msra.mxu0 %v43
  %1382 = vmatpush.msra.mxu0 %v39
  %1383 = vmatpush.msra.mxu0 %v35
  %1384 = vmatpush.msra.mxu0 %v31
  %1385 = vmatpush.msra.mxu0 %v27
  %1386 = vmatpush.msra.mxu0 %v23
  %1387 = vmatpush.msra.mxu0 %v19
  %1388 = vmatmul.f32.gmra.mxu0 %v1288
  %v1389 = vpop.f32.mrf.mxu0
  %v1390 = vadd.f32 0.0, %v1389
  %1391 = vmatmul.f32.gmra.mxu0 %v1289
  %v1392 = vpop.f32.mrf.mxu0
  %v1393 = vadd.f32 0.0, %v1392
  %1394 = vmatmul.f32.gmra.mxu0 %v1290
  %v1395 = vpop.f32.mrf.mxu0
  %v1396 = vadd.f32 0.0, %v1395
  %1397 = vmatmul.f32.gmra.mxu0 %v1291
  %v1398 = vpop.f32.mrf.mxu0
  %v1399 = vadd.f32 0.0, %v1398
  %1400 = vdwg.mxu0
  %1401 = vmatpush.msra.mxu0 %v80
  %1402 = vmatpush.msra.mxu0 %v76
  %1403 = vmatpush.msra.mxu0 %v72
  %1404 = vmatpush.msra.mxu0 %v68
  %1405 = vmatpush.msra.mxu0 %v64
  %1406 = vmatpush.msra.mxu0 %v60
  %1407 = vmatpush.msra.mxu0 %v56
  %1408 = vmatpush.msra.mxu0 %v52
  %1409 = vmatpush.msra.mxu0 %v48
  %1410 = vmatpush.msra.mxu0 %v44
  %1411 = vmatpush.msra.mxu0 %v40
  %1412 = vmatpush.msra.mxu0 %v36
  %1413 = vmatpush.msra.mxu0 %v32
  %1414 = vmatpush.msra.mxu0 %v28
  %1415 = vmatpush.msra.mxu0 %v24
  %1416 = vmatpush.msra.mxu0 %v20
  %1417 = vmatmul.f32.gmra.mxu0 %v1288
  %v1418 = vpop.f32.mrf.mxu0
  %v1419 = vadd.f32 0.0, %v1418
  %1420 = vmatmul.f32.gmra.mxu0 %v1289
  %v1421 = vpop.f32.mrf.mxu0
  %v1422 = vadd.f32 0.0, %v1421
  %1423 = vmatmul.f32.gmra.mxu0 %v1290
  %v1424 = vpop.f32.mrf.mxu0
  %v1425 = vadd.f32 0.0, %v1424
  %1426 = vmatmul.f32.gmra.mxu0 %v1291
  %v1427 = vpop.f32.mrf.mxu0
  %v1428 = vadd.f32 0.0, %v1427
  %1429 = vdwg.mxu0
  %v1430 = vadd.f32 %v1298, %v1332
  %v1431 = vadd.f32 %v1299, %v1361
  %v1432 = vadd.f32 %v1300, %v1390
  %v1433 = vadd.f32 %v1301, %v1419
  %v1434 = vadd.f32 %v1302, %v1335
  %v1435 = vadd.f32 %v1303, %v1364
  %v1436 = vadd.f32 %v1304, %v1393
  %v1437 = vadd.f32 %v1305, %v1422
  %v1438 = vadd.f32 %v1306, %v1338
  %v1439 = vadd.f32 %v1307, %v1367
  %v1440 = vadd.f32 %v1308, %v1396
  %v1441 = vadd.f32 %v1309, %v1425
  %v1442 = vadd.f32 %v1310, %v1341
  %v1443 = vadd.f32 %v1311, %v1370
  %v1444 = vadd.f32 %v1312, %v1399
  %v1445 = vadd.f32 %v1313, %v1428
  %v1446 = vxor.u32 %v1430, 2147483648
  %v1447 = vxor.u32 %v1434, 2147483648
  %v1448 = vxor.u32 %v1438, 2147483648
  %v1449 = vxor.u32 %v1442, 2147483648
  %v1450 = vmul.f32 %v1446, 1.442695
  %v1451 = vpow.pop %v1450
  %v1452 = vmul.f32 %v1447, 1.442695
  %v1453 = vpow.pop %v1452
  %v1454 = vmul.f32 %v1448, 1.442695
  %v1455 = vpow.pop %v1454
  %v1456 = vmul.f32 %v1449, 1.442695
  %v1457 = vpow.pop %v1456
  %v1458 = vadd.f32 %v1451, 1.0
  %v1459 = vadd.f32 %v1453, 1.0
  %v1460 = vadd.f32 %v1455, 1.0
  %v1461 = vadd.f32 %v1457, 1.0
  %v1462 = vrcp.pop %v1458
  %v1463 = vmul.f32 %v1458, %v1462
  %v1464 = vsub.f32 1.0, %v1463
  %v1465 = vmul.f32 %v1462, %v1464
  %v1466 = vadd.f32 %v1462, %v1465
  %vm1467 = vweird.f32 %v1458
  %vm1468 = vweird.f32 %v1462
  %vm1469 = vmor %vm1467, %vm1468
  %v1470 = vsel %vm1469, %v1462, %v1466
  %v1471 = vand.u32 2147483647, %v1458
  %vm1472 = vcmp.eq.f32.partialorder %v1471, 8.507059e+37
  %v1473 = vand.u32 %v1458, 2147483648
  %v1474 = vor.u32 1.1754944e-38, %v1473
  %v1475 = vsel %vm1472, %v1474, %v1470
  %v1476 = vmul.f32 1.0, %v1475
  %v1477 = vrcp.pop %v1459
  %v1478 = vmul.f32 %v1459, %v1477
  %v1479 = vsub.f32 1.0, %v1478
  %v1480 = vmul.f32 %v1477, %v1479
  %v1481 = vadd.f32 %v1477, %v1480
  %vm1482 = vweird.f32 %v1459
  %vm1483 = vweird.f32 %v1477
  %vm1484 = vmor %vm1482, %vm1483
  %v1485 = vsel %vm1484, %v1477, %v1481
  %v1486 = vand.u32 2147483647, %v1459
  %vm1487 = vcmp.eq.f32.partialorder %v1486, 8.507059e+37
  %v1488 = vand.u32 %v1459, 2147483648
  %v1489 = vor.u32 1.1754944e-38, %v1488
  %v1490 = vsel %vm1487, %v1489, %v1485
  %v1491 = vmul.f32 1.0, %v1490
  %v1492 = vrcp.pop %v1460
  %v1493 = vmul.f32 %v1460, %v1492
  %v1494 = vsub.f32 1.0, %v1493
  %v1495 = vmul.f32 %v1492, %v1494
  %v1496 = vadd.f32 %v1492, %v1495
  %vm1497 = vweird.f32 %v1460
  %vm1498 = vweird.f32 %v1492
  %vm1499 = vmor %vm1497, %vm1498
  %v1500 = vsel %vm1499, %v1492, %v1496
  %v1501 = vand.u32 2147483647, %v1460
  %vm1502 = vcmp.eq.f32.partialorder %v1501, 8.507059e+37
  %v1503 = vand.u32 %v1460, 2147483648
  %v1504 = vor.u32 1.1754944e-38, %v1503
  %v1505 = vsel %vm1502, %v1504, %v1500
  %v1506 = vmul.f32 1.0, %v1505
  %v1507 = vrcp.pop %v1461
  %v1508 = vmul.f32 %v1461, %v1507
  %v1509 = vsub.f32 1.0, %v1508
  %v1510 = vmul.f32 %v1507, %v1509
  %v1511 = vadd.f32 %v1507, %v1510
  %vm1512 = vweird.f32 %v1461
  %vm1513 = vweird.f32 %v1507
  %vm1514 = vmor %vm1512, %vm1513
  %v1515 = vsel %vm1514, %v1507, %v1511
  %v1516 = vand.u32 2147483647, %v1461
  %vm1517 = vcmp.eq.f32.partialorder %v1516, 8.507059e+37
  %v1518 = vand.u32 %v1461, 2147483648
  %v1519 = vor.u32 1.1754944e-38, %v1518
  %v1520 = vsel %vm1517, %v1519, %v1515
  %v1521 = vmul.f32 1.0, %v1520
  %v1522 = vxor.u32 %v1431, 2147483648
  %v1523 = vxor.u32 %v1435, 2147483648
  %v1524 = vxor.u32 %v1439, 2147483648
  %v1525 = vxor.u32 %v1443, 2147483648
  %v1526 = vmul.f32 %v1522, 1.442695
  %v1527 = vpow.pop %v1526
  %v1528 = vmul.f32 %v1523, 1.442695
  %v1529 = vpow.pop %v1528
  %v1530 = vmul.f32 %v1524, 1.442695
  %v1531 = vpow.pop %v1530
  %v1532 = vmul.f32 %v1525, 1.442695
  %v1533 = vpow.pop %v1532
  %v1534 = vadd.f32 %v1527, 1.0
  %v1535 = vadd.f32 %v1529, 1.0
  %v1536 = vadd.f32 %v1531, 1.0
  %v1537 = vadd.f32 %v1533, 1.0
  %v1538 = vrcp.pop %v1534
  %v1539 = vmul.f32 %v1534, %v1538
  %v1540 = vsub.f32 1.0, %v1539
  %v1541 = vmul.f32 %v1538, %v1540
  %v1542 = vadd.f32 %v1538, %v1541
  %vm1543 = vweird.f32 %v1534
  %vm1544 = vweird.f32 %v1538
  %vm1545 = vmor %vm1543, %vm1544
  %v1546 = vsel %vm1545, %v1538, %v1542
  %v1547 = vand.u32 2147483647, %v1534
  %vm1548 = vcmp.eq.f32.partialorder %v1547, 8.507059e+37
  %v1549 = vand.u32 %v1534, 2147483648
  %v1550 = vor.u32 1.1754944e-38, %v1549
  %v1551 = vsel %vm1548, %v1550, %v1546
  %v1552 = vmul.f32 1.0, %v1551
  %v1553 = vrcp.pop %v1535
  %v1554 = vmul.f32 %v1535, %v1553
  %v1555 = vsub.f32 1.0, %v1554
  %v1556 = vmul.f32 %v1553, %v1555
  %v1557 = vadd.f32 %v1553, %v1556
  %vm1558 = vweird.f32 %v1535
  %vm1559 = vweird.f32 %v1553
  %vm1560 = vmor %vm1558, %vm1559
  %v1561 = vsel %vm1560, %v1553, %v1557
  %v1562 = vand.u32 2147483647, %v1535
  %vm1563 = vcmp.eq.f32.partialorder %v1562, 8.507059e+37
  %v1564 = vand.u32 %v1535, 2147483648
  %v1565 = vor.u32 1.1754944e-38, %v1564
  %v1566 = vsel %vm1563, %v1565, %v1561
  %v1567 = vmul.f32 1.0, %v1566
  %v1568 = vrcp.pop %v1536
  %v1569 = vmul.f32 %v1536, %v1568
  %v1570 = vsub.f32 1.0, %v1569
  %v1571 = vmul.f32 %v1568, %v1570
  %v1572 = vadd.f32 %v1568, %v1571
  %vm1573 = vweird.f32 %v1536
  %vm1574 = vweird.f32 %v1568
  %vm1575 = vmor %vm1573, %vm1574
  %v1576 = vsel %vm1575, %v1568, %v1572
  %v1577 = vand.u32 2147483647, %v1536
  %vm1578 = vcmp.eq.f32.partialorder %v1577, 8.507059e+37
  %v1579 = vand.u32 %v1536, 2147483648
  %v1580 = vor.u32 1.1754944e-38, %v1579
  %v1581 = vsel %vm1578, %v1580, %v1576
  %v1582 = vmul.f32 1.0, %v1581
  %v1583 = vrcp.pop %v1537
  %v1584 = vmul.f32 %v1537, %v1583
  %v1585 = vsub.f32 1.0, %v1584
  %v1586 = vmul.f32 %v1583, %v1585
  %v1587 = vadd.f32 %v1583, %v1586
  %vm1588 = vweird.f32 %v1537
  %vm1589 = vweird.f32 %v1583
  %vm1590 = vmor %vm1588, %vm1589
  %v1591 = vsel %vm1590, %v1583, %v1587
  %v1592 = vand.u32 2147483647, %v1537
  %vm1593 = vcmp.eq.f32.partialorder %v1592, 8.507059e+37
  %v1594 = vand.u32 %v1537, 2147483648
  %v1595 = vor.u32 1.1754944e-38, %v1594
  %v1596 = vsel %vm1593, %v1595, %v1591
  %v1597 = vmul.f32 1.0, %v1596
  %v1598 = vtanh.pop %v1432
  %v1599 = vtanh.pop %v1436
  %v1600 = vtanh.pop %v1440
  %v1601 = vtanh.pop %v1444
  %v1602 = vxor.u32 %v1433, 2147483648
  %v1603 = vxor.u32 %v1437, 2147483648
  %v1604 = vxor.u32 %v1441, 2147483648
  %v1605 = vxor.u32 %v1445, 2147483648
  %v1606 = vmul.f32 %v1602, 1.442695
  %v1607 = vpow.pop %v1606
  %v1608 = vmul.f32 %v1603, 1.442695
  %v1609 = vpow.pop %v1608
  %v1610 = vmul.f32 %v1604, 1.442695
  %v1611 = vpow.pop %v1610
  %v1612 = vmul.f32 %v1605, 1.442695
  %v1613 = vpow.pop %v1612
  %v1614 = vadd.f32 %v1607, 1.0
  %v1615 = vadd.f32 %v1609, 1.0
  %v1616 = vadd.f32 %v1611, 1.0
  %v1617 = vadd.f32 %v1613, 1.0
  %v1618 = vrcp.pop %v1614
  %v1619 = vmul.f32 %v1614, %v1618
  %v1620 = vsub.f32 1.0, %v1619
  %v1621 = vmul.f32 %v1618, %v1620
  %v1622 = vadd.f32 %v1618, %v1621
  %vm1623 = vweird.f32 %v1614
  %vm1624 = vweird.f32 %v1618
  %vm1625 = vmor %vm1623, %vm1624
  %v1626 = vsel %vm1625, %v1618, %v1622
  %v1627 = vand.u32 2147483647, %v1614
  %vm1628 = vcmp.eq.f32.partialorder %v1627, 8.507059e+37
  %v1629 = vand.u32 %v1614, 2147483648
  %v1630 = vor.u32 1.1754944e-38, %v1629
  %v1631 = vsel %vm1628, %v1630, %v1626
  %v1632 = vmul.f32 1.0, %v1631
  %v1633 = vrcp.pop %v1615
  %v1634 = vmul.f32 %v1615, %v1633
  %v1635 = vsub.f32 1.0, %v1634
  %v1636 = vmul.f32 %v1633, %v1635
  %v1637 = vadd.f32 %v1633, %v1636
  %vm1638 = vweird.f32 %v1615
  %vm1639 = vweird.f32 %v1633
  %vm1640 = vmor %vm1638, %vm1639
  %v1641 = vsel %vm1640, %v1633, %v1637
  %v1642 = vand.u32 2147483647, %v1615
  %vm1643 = vcmp.eq.f32.partialorder %v1642, 8.507059e+37
  %v1644 = vand.u32 %v1615, 2147483648
  %v1645 = vor.u32 1.1754944e-38, %v1644
  %v1646 = vsel %vm1643, %v1645, %v1641
  %v1647 = vmul.f32 1.0, %v1646
  %v1648 = vrcp.pop %v1616
  %v1649 = vmul.f32 %v1616, %v1648
  %v1650 = vsub.f32 1.0, %v1649
  %v1651 = vmul.f32 %v1648, %v1650
  %v1652 = vadd.f32 %v1648, %v1651
  %vm1653 = vweird.f32 %v1616
  %vm1654 = vweird.f32 %v1648
  %vm1655 = vmor %vm1653, %vm1654
  %v1656 = vsel %vm1655, %v1648, %v1652
  %v1657 = vand.u32 2147483647, %v1616
  %vm1658 = vcmp.eq.f32.partialorder %v1657, 8.507059e+37
  %v1659 = vand.u32 %v1616, 2147483648
  %v1660 = vor.u32 1.1754944e-38, %v1659
  %v1661 = vsel %vm1658, %v1660, %v1656
  %v1662 = vmul.f32 1.0, %v1661
  %v1663 = vrcp.pop %v1617
  %v1664 = vmul.f32 %v1617, %v1663
  %v1665 = vsub.f32 1.0, %v1664
  %v1666 = vmul.f32 %v1663, %v1665
  %v1667 = vadd.f32 %v1663, %v1666
  %vm1668 = vweird.f32 %v1617
  %vm1669 = vweird.f32 %v1663
  %vm1670 = vmor %vm1668, %vm1669
  %v1671 = vsel %vm1670, %v1663, %v1667
  %v1672 = vand.u32 2147483647, %v1617
  %vm1673 = vcmp.eq.f32.partialorder %v1672, 8.507059e+37
  %v1674 = vand.u32 %v1617, 2147483648
  %v1675 = vor.u32 1.1754944e-38, %v1674
  %v1676 = vsel %vm1673, %v1675, %v1671
  %v1677 = vmul.f32 1.0, %v1676
  %v1678 = vmul.f32 %v1552, %v1280
  %v1679 = vmul.f32 %v1567, %v1281
  %v1680 = vmul.f32 %v1582, %v1282
  %v1681 = vmul.f32 %v1597, %v1283
  %v1682 = vmul.f32 %v1476, %v1598
  %v1683 = vmul.f32 %v1491, %v1599
  %v1684 = vmul.f32 %v1506, %v1600
  %v1685 = vmul.f32 %v1521, %v1601
  %v1686 = vadd.f32 %v1678, %v1682
  %v1687 = vadd.f32 %v1679, %v1683
  %v1688 = vadd.f32 %v1680, %v1684
  %v1689 = vadd.f32 %v1681, %v1685
  %v1690 = vtanh.pop %v1686
  %v1691 = vtanh.pop %v1687
  %v1692 = vtanh.pop %v1688
  %v1693 = vtanh.pop %v1689
  %v1694 = vmul.f32 %v1632, %v1690
  %v1695 = vmul.f32 %v1647, %v1691
  %v1696 = vmul.f32 %v1662, %v1692
  %v1697 = vmul.f32 %v1677, %v1693
  %s1698 = scalar_lea.vmem [#allocation2], 96
  %1699 = vst [vmem:[%s1698] sm:$0xff] %v1694
  %1700 = vst [vmem:[%s1698 + $0x8] sm:$0xff] %v1695
  %1701 = vst [vmem:[%s1698 + $0x10] sm:$0xff] %v1696
  %1702 = vst [vmem:[%s1698 + $0x18] sm:$0x3f] %v1697
  %s1703 = scalar_lea.vmem %s0, 512
  %v1704 = vld [vmem:[%s1703] sm:$0xff]
  %v1705 = vld [vmem:[%s1703 + $0x8] sm:$0xff]
  %v1706 = vld [vmem:[%s1703 + $0x10] sm:$0xff]
  %v1707 = vld [vmem:[%s1703 + $0x18] sm:$0xff]
  %v1708 = vld [vmem:[%s1703 + $0x20] sm:$0xff]
  %v1709 = vld [vmem:[%s1703 + $0x28] sm:$0xff]
  %v1710 = vld [vmem:[%s1703 + $0x30] sm:$0xff]
  %v1711 = vld [vmem:[%s1703 + $0x38] sm:$0xff]
  %v1712 = vld [vmem:[%s1703 + $0x40] sm:$0xff]
  %v1713 = vld [vmem:[%s1703 + $0x48] sm:$0xff]
  %v1714 = vld [vmem:[%s1703 + $0x50] sm:$0xff]
  %v1715 = vld [vmem:[%s1703 + $0x58] sm:$0xff]
  %v1716 = vld [vmem:[%s1703 + $0x60] sm:$0x3f]
  %v1717 = vld [vmem:[%s1703 + $0x68] sm:$0x3f]
  %v1718 = vld [vmem:[%s1703 + $0x70] sm:$0x3f]
  %v1719 = vld [vmem:[%s1703 + $0x78] sm:$0x3f]
  %1720 = vmatpush.msra.mxu0 %v77
  %1721 = vmatpush.msra.mxu0 %v73
  %1722 = vmatpush.msra.mxu0 %v69
  %1723 = vmatpush.msra.mxu0 %v65
  %1724 = vmatpush.msra.mxu0 %v61
  %1725 = vmatpush.msra.mxu0 %v57
  %1726 = vmatpush.msra.mxu0 %v53
  %1727 = vmatpush.msra.mxu0 %v49
  %1728 = vmatpush.msra.mxu0 %v45
  %1729 = vmatpush.msra.mxu0 %v41
  %1730 = vmatpush.msra.mxu0 %v37
  %1731 = vmatpush.msra.mxu0 %v33
  %1732 = vmatpush.msra.mxu0 %v29
  %1733 = vmatpush.msra.mxu0 %v25
  %1734 = vmatpush.msra.mxu0 %v21
  %1735 = vmatpush.msra.mxu0 %v17
  %1736 = vmatmul.f32.gmra.mxu0 %v1694
  %v1737 = vpop.f32.mrf.mxu0
  %v1738 = vadd.f32 0.0, %v1737
  %1739 = vmatmul.f32.gmra.mxu0 %v1695
  %v1740 = vpop.f32.mrf.mxu0
  %v1741 = vadd.f32 0.0, %v1740
  %1742 = vmatmul.f32.gmra.mxu0 %v1696
  %v1743 = vpop.f32.mrf.mxu0
  %v1744 = vadd.f32 0.0, %v1743
  %1745 = vmatmul.f32.gmra.mxu0 %v1697
  %v1746 = vpop.f32.mrf.mxu0
  %v1747 = vadd.f32 0.0, %v1746
  %1748 = vdwg.mxu0
  %1749 = vmatpush.msra.mxu0 %v78
  %1750 = vmatpush.msra.mxu0 %v74
  %1751 = vmatpush.msra.mxu0 %v70
  %1752 = vmatpush.msra.mxu0 %v66
  %1753 = vmatpush.msra.mxu0 %v62
  %1754 = vmatpush.msra.mxu0 %v58
  %1755 = vmatpush.msra.mxu0 %v54
  %1756 = vmatpush.msra.mxu0 %v50
  %1757 = vmatpush.msra.mxu0 %v46
  %1758 = vmatpush.msra.mxu0 %v42
  %1759 = vmatpush.msra.mxu0 %v38
  %1760 = vmatpush.msra.mxu0 %v34
  %1761 = vmatpush.msra.mxu0 %v30
  %1762 = vmatpush.msra.mxu0 %v26
  %1763 = vmatpush.msra.mxu0 %v22
  %1764 = vmatpush.msra.mxu0 %v18
  %1765 = vmatmul.f32.gmra.mxu0 %v1694
  %v1766 = vpop.f32.mrf.mxu0
  %v1767 = vadd.f32 0.0, %v1766
  %1768 = vmatmul.f32.gmra.mxu0 %v1695
  %v1769 = vpop.f32.mrf.mxu0
  %v1770 = vadd.f32 0.0, %v1769
  %1771 = vmatmul.f32.gmra.mxu0 %v1696
  %v1772 = vpop.f32.mrf.mxu0
  %v1773 = vadd.f32 0.0, %v1772
  %1774 = vmatmul.f32.gmra.mxu0 %v1697
  %v1775 = vpop.f32.mrf.mxu0
  %v1776 = vadd.f32 0.0, %v1775
  %1777 = vdwg.mxu0
  %1778 = vmatpush.msra.mxu0 %v79
  %1779 = vmatpush.msra.mxu0 %v75
  %1780 = vmatpush.msra.mxu0 %v71
  %1781 = vmatpush.msra.mxu0 %v67
  %1782 = vmatpush.msra.mxu0 %v63
  %1783 = vmatpush.msra.mxu0 %v59
  %1784 = vmatpush.msra.mxu0 %v55
  %1785 = vmatpush.msra.mxu0 %v51
  %1786 = vmatpush.msra.mxu0 %v47
  %1787 = vmatpush.msra.mxu0 %v43
  %1788 = vmatpush.msra.mxu0 %v39
  %1789 = vmatpush.msra.mxu0 %v35
  %1790 = vmatpush.msra.mxu0 %v31
  %1791 = vmatpush.msra.mxu0 %v27
  %1792 = vmatpush.msra.mxu0 %v23
  %1793 = vmatpush.msra.mxu0 %v19
  %1794 = vmatmul.f32.gmra.mxu0 %v1694
  %v1795 = vpop.f32.mrf.mxu0
  %v1796 = vadd.f32 0.0, %v1795
  %1797 = vmatmul.f32.gmra.mxu0 %v1695
  %v1798 = vpop.f32.mrf.mxu0
  %v1799 = vadd.f32 0.0, %v1798
  %1800 = vmatmul.f32.gmra.mxu0 %v1696
  %v1801 = vpop.f32.mrf.mxu0
  %v1802 = vadd.f32 0.0, %v1801
  %1803 = vmatmul.f32.gmra.mxu0 %v1697
  %v1804 = vpop.f32.mrf.mxu0
  %v1805 = vadd.f32 0.0, %v1804
  %1806 = vdwg.mxu0
  %1807 = vmatpush.msra.mxu0 %v80
  %1808 = vmatpush.msra.mxu0 %v76
  %1809 = vmatpush.msra.mxu0 %v72
  %1810 = vmatpush.msra.mxu0 %v68
  %1811 = vmatpush.msra.mxu0 %v64
  %1812 = vmatpush.msra.mxu0 %v60
  %1813 = vmatpush.msra.mxu0 %v56
  %1814 = vmatpush.msra.mxu0 %v52
  %1815 = vmatpush.msra.mxu0 %v48
  %1816 = vmatpush.msra.mxu0 %v44
  %1817 = vmatpush.msra.mxu0 %v40
  %1818 = vmatpush.msra.mxu0 %v36
  %1819 = vmatpush.msra.mxu0 %v32
  %1820 = vmatpush.msra.mxu0 %v28
  %1821 = vmatpush.msra.mxu0 %v24
  %1822 = vmatpush.msra.mxu0 %v20
  %1823 = vmatmul.f32.gmra.mxu0 %v1694
  %v1824 = vpop.f32.mrf.mxu0
  %v1825 = vadd.f32 0.0, %v1824
  %1826 = vmatmul.f32.gmra.mxu0 %v1695
  %v1827 = vpop.f32.mrf.mxu0
  %v1828 = vadd.f32 0.0, %v1827
  %1829 = vmatmul.f32.gmra.mxu0 %v1696
  %v1830 = vpop.f32.mrf.mxu0
  %v1831 = vadd.f32 0.0, %v1830
  %1832 = vmatmul.f32.gmra.mxu0 %v1697
  %v1833 = vpop.f32.mrf.mxu0
  %v1834 = vadd.f32 0.0, %v1833
  %1835 = vdwg.mxu0
  %v1836 = vadd.f32 %v1704, %v1738
  %v1837 = vadd.f32 %v1705, %v1767
  %v1838 = vadd.f32 %v1706, %v1796
  %v1839 = vadd.f32 %v1707, %v1825
  %v1840 = vadd.f32 %v1708, %v1741
  %v1841 = vadd.f32 %v1709, %v1770
  %v1842 = vadd.f32 %v1710, %v1799
  %v1843 = vadd.f32 %v1711, %v1828
  %v1844 = vadd.f32 %v1712, %v1744
  %v1845 = vadd.f32 %v1713, %v1773
  %v1846 = vadd.f32 %v1714, %v1802
  %v1847 = vadd.f32 %v1715, %v1831
  %v1848 = vadd.f32 %v1716, %v1747
  %v1849 = vadd.f32 %v1717, %v1776
  %v1850 = vadd.f32 %v1718, %v1805
  %v1851 = vadd.f32 %v1719, %v1834
  %v1852 = vxor.u32 %v1836, 2147483648
  %v1853 = vxor.u32 %v1840, 2147483648
  %v1854 = vxor.u32 %v1844, 2147483648
  %v1855 = vxor.u32 %v1848, 2147483648
  %v1856 = vmul.f32 %v1852, 1.442695
  %v1857 = vpow.pop %v1856
  %v1858 = vmul.f32 %v1853, 1.442695
  %v1859 = vpow.pop %v1858
  %v1860 = vmul.f32 %v1854, 1.442695
  %v1861 = vpow.pop %v1860
  %v1862 = vmul.f32 %v1855, 1.442695
  %v1863 = vpow.pop %v1862
  %v1864 = vadd.f32 %v1857, 1.0
  %v1865 = vadd.f32 %v1859, 1.0
  %v1866 = vadd.f32 %v1861, 1.0
  %v1867 = vadd.f32 %v1863, 1.0
  %v1868 = vrcp.pop %v1864
  %v1869 = vmul.f32 %v1864, %v1868
  %v1870 = vsub.f32 1.0, %v1869
  %v1871 = vmul.f32 %v1868, %v1870
  %v1872 = vadd.f32 %v1868, %v1871
  %vm1873 = vweird.f32 %v1864
  %vm1874 = vweird.f32 %v1868
  %vm1875 = vmor %vm1873, %vm1874
  %v1876 = vsel %vm1875, %v1868, %v1872
  %v1877 = vand.u32 2147483647, %v1864
  %vm1878 = vcmp.eq.f32.partialorder %v1877, 8.507059e+37
  %v1879 = vand.u32 %v1864, 2147483648
  %v1880 = vor.u32 1.1754944e-38, %v1879
  %v1881 = vsel %vm1878, %v1880, %v1876
  %v1882 = vmul.f32 1.0, %v1881
  %v1883 = vrcp.pop %v1865
  %v1884 = vmul.f32 %v1865, %v1883
  %v1885 = vsub.f32 1.0, %v1884
  %v1886 = vmul.f32 %v1883, %v1885
  %v1887 = vadd.f32 %v1883, %v1886
  %vm1888 = vweird.f32 %v1865
  %vm1889 = vweird.f32 %v1883
  %vm1890 = vmor %vm1888, %vm1889
  %v1891 = vsel %vm1890, %v1883, %v1887
  %v1892 = vand.u32 2147483647, %v1865
  %vm1893 = vcmp.eq.f32.partialorder %v1892, 8.507059e+37
  %v1894 = vand.u32 %v1865, 2147483648
  %v1895 = vor.u32 1.1754944e-38, %v1894
  %v1896 = vsel %vm1893, %v1895, %v1891
  %v1897 = vmul.f32 1.0, %v1896
  %v1898 = vrcp.pop %v1866
  %v1899 = vmul.f32 %v1866, %v1898
  %v1900 = vsub.f32 1.0, %v1899
  %v1901 = vmul.f32 %v1898, %v1900
  %v1902 = vadd.f32 %v1898, %v1901
  %vm1903 = vweird.f32 %v1866
  %vm1904 = vweird.f32 %v1898
  %vm1905 = vmor %vm1903, %vm1904
  %v1906 = vsel %vm1905, %v1898, %v1902
  %v1907 = vand.u32 2147483647, %v1866
  %vm1908 = vcmp.eq.f32.partialorder %v1907, 8.507059e+37
  %v1909 = vand.u32 %v1866, 2147483648
  %v1910 = vor.u32 1.1754944e-38, %v1909
  %v1911 = vsel %vm1908, %v1910, %v1906
  %v1912 = vmul.f32 1.0, %v1911
  %v1913 = vrcp.pop %v1867
  %v1914 = vmul.f32 %v1867, %v1913
  %v1915 = vsub.f32 1.0, %v1914
  %v1916 = vmul.f32 %v1913, %v1915
  %v1917 = vadd.f32 %v1913, %v1916
  %vm1918 = vweird.f32 %v1867
  %vm1919 = vweird.f32 %v1913
  %vm1920 = vmor %vm1918, %vm1919
  %v1921 = vsel %vm1920, %v1913, %v1917
  %v1922 = vand.u32 2147483647, %v1867
  %vm1923 = vcmp.eq.f32.partialorder %v1922, 8.507059e+37
  %v1924 = vand.u32 %v1867, 2147483648
  %v1925 = vor.u32 1.1754944e-38, %v1924
  %v1926 = vsel %vm1923, %v1925, %v1921
  %v1927 = vmul.f32 1.0, %v1926
  %v1928 = vxor.u32 %v1837, 2147483648
  %v1929 = vxor.u32 %v1841, 2147483648
  %v1930 = vxor.u32 %v1845, 2147483648
  %v1931 = vxor.u32 %v1849, 2147483648
  %v1932 = vmul.f32 %v1928, 1.442695
  %v1933 = vpow.pop %v1932
  %v1934 = vmul.f32 %v1929, 1.442695
  %v1935 = vpow.pop %v1934
  %v1936 = vmul.f32 %v1930, 1.442695
  %v1937 = vpow.pop %v1936
  %v1938 = vmul.f32 %v1931, 1.442695
  %v1939 = vpow.pop %v1938
  %v1940 = vadd.f32 %v1933, 1.0
  %v1941 = vadd.f32 %v1935, 1.0
  %v1942 = vadd.f32 %v1937, 1.0
  %v1943 = vadd.f32 %v1939, 1.0
  %v1944 = vrcp.pop %v1940
  %v1945 = vmul.f32 %v1940, %v1944
  %v1946 = vsub.f32 1.0, %v1945
  %v1947 = vmul.f32 %v1944, %v1946
  %v1948 = vadd.f32 %v1944, %v1947
  %vm1949 = vweird.f32 %v1940
  %vm1950 = vweird.f32 %v1944
  %vm1951 = vmor %vm1949, %vm1950
  %v1952 = vsel %vm1951, %v1944, %v1948
  %v1953 = vand.u32 2147483647, %v1940
  %vm1954 = vcmp.eq.f32.partialorder %v1953, 8.507059e+37
  %v1955 = vand.u32 %v1940, 2147483648
  %v1956 = vor.u32 1.1754944e-38, %v1955
  %v1957 = vsel %vm1954, %v1956, %v1952
  %v1958 = vmul.f32 1.0, %v1957
  %v1959 = vrcp.pop %v1941
  %v1960 = vmul.f32 %v1941, %v1959
  %v1961 = vsub.f32 1.0, %v1960
  %v1962 = vmul.f32 %v1959, %v1961
  %v1963 = vadd.f32 %v1959, %v1962
  %vm1964 = vweird.f32 %v1941
  %vm1965 = vweird.f32 %v1959
  %vm1966 = vmor %vm1964, %vm1965
  %v1967 = vsel %vm1966, %v1959, %v1963
  %v1968 = vand.u32 2147483647, %v1941
  %vm1969 = vcmp.eq.f32.partialorder %v1968, 8.507059e+37
  %v1970 = vand.u32 %v1941, 2147483648
  %v1971 = vor.u32 1.1754944e-38, %v1970
  %v1972 = vsel %vm1969, %v1971, %v1967
  %v1973 = vmul.f32 1.0, %v1972
  %v1974 = vrcp.pop %v1942
  %v1975 = vmul.f32 %v1942, %v1974
  %v1976 = vsub.f32 1.0, %v1975
  %v1977 = vmul.f32 %v1974, %v1976
  %v1978 = vadd.f32 %v1974, %v1977
  %vm1979 = vweird.f32 %v1942
  %vm1980 = vweird.f32 %v1974
  %vm1981 = vmor %vm1979, %vm1980
  %v1982 = vsel %vm1981, %v1974, %v1978
  %v1983 = vand.u32 2147483647, %v1942
  %vm1984 = vcmp.eq.f32.partialorder %v1983, 8.507059e+37
  %v1985 = vand.u32 %v1942, 2147483648
  %v1986 = vor.u32 1.1754944e-38, %v1985
  %v1987 = vsel %vm1984, %v1986, %v1982
  %v1988 = vmul.f32 1.0, %v1987
  %v1989 = vrcp.pop %v1943
  %v1990 = vmul.f32 %v1943, %v1989
  %v1991 = vsub.f32 1.0, %v1990
  %v1992 = vmul.f32 %v1989, %v1991
  %v1993 = vadd.f32 %v1989, %v1992
  %vm1994 = vweird.f32 %v1943
  %vm1995 = vweird.f32 %v1989
  %vm1996 = vmor %vm1994, %vm1995
  %v1997 = vsel %vm1996, %v1989, %v1993
  %v1998 = vand.u32 2147483647, %v1943
  %vm1999 = vcmp.eq.f32.partialorder %v1998, 8.507059e+37
  %v2000 = vand.u32 %v1943, 2147483648
  %v2001 = vor.u32 1.1754944e-38, %v2000
  %v2002 = vsel %vm1999, %v2001, %v1997
  %v2003 = vmul.f32 1.0, %v2002
  %v2004 = vtanh.pop %v1838
  %v2005 = vtanh.pop %v1842
  %v2006 = vtanh.pop %v1846
  %v2007 = vtanh.pop %v1850
  %v2008 = vxor.u32 %v1839, 2147483648
  %v2009 = vxor.u32 %v1843, 2147483648
  %v2010 = vxor.u32 %v1847, 2147483648
  %v2011 = vxor.u32 %v1851, 2147483648
  %v2012 = vmul.f32 %v2008, 1.442695
  %v2013 = vpow.pop %v2012
  %v2014 = vmul.f32 %v2009, 1.442695
  %v2015 = vpow.pop %v2014
  %v2016 = vmul.f32 %v2010, 1.442695
  %v2017 = vpow.pop %v2016
  %v2018 = vmul.f32 %v2011, 1.442695
  %v2019 = vpow.pop %v2018
  %v2020 = vadd.f32 %v2013, 1.0
  %v2021 = vadd.f32 %v2015, 1.0
  %v2022 = vadd.f32 %v2017, 1.0
  %v2023 = vadd.f32 %v2019, 1.0
  %v2024 = vrcp.pop %v2020
  %v2025 = vmul.f32 %v2020, %v2024
  %v2026 = vsub.f32 1.0, %v2025
  %v2027 = vmul.f32 %v2024, %v2026
  %v2028 = vadd.f32 %v2024, %v2027
  %vm2029 = vweird.f32 %v2020
  %vm2030 = vweird.f32 %v2024
  %vm2031 = vmor %vm2029, %vm2030
  %v2032 = vsel %vm2031, %v2024, %v2028
  %v2033 = vand.u32 2147483647, %v2020
  %vm2034 = vcmp.eq.f32.partialorder %v2033, 8.507059e+37
  %v2035 = vand.u32 %v2020, 2147483648
  %v2036 = vor.u32 1.1754944e-38, %v2035
  %v2037 = vsel %vm2034, %v2036, %v2032
  %v2038 = vmul.f32 1.0, %v2037
  %v2039 = vrcp.pop %v2021
  %v2040 = vmul.f32 %v2021, %v2039
  %v2041 = vsub.f32 1.0, %v2040
  %v2042 = vmul.f32 %v2039, %v2041
  %v2043 = vadd.f32 %v2039, %v2042
  %vm2044 = vweird.f32 %v2021
  %vm2045 = vweird.f32 %v2039
  %vm2046 = vmor %vm2044, %vm2045
  %v2047 = vsel %vm2046, %v2039, %v2043
  %v2048 = vand.u32 2147483647, %v2021
  %vm2049 = vcmp.eq.f32.partialorder %v2048, 8.507059e+37
  %v2050 = vand.u32 %v2021, 2147483648
  %v2051 = vor.u32 1.1754944e-38, %v2050
  %v2052 = vsel %vm2049, %v2051, %v2047
  %v2053 = vmul.f32 1.0, %v2052
  %v2054 = vrcp.pop %v2022
  %v2055 = vmul.f32 %v2022, %v2054
  %v2056 = vsub.f32 1.0, %v2055
  %v2057 = vmul.f32 %v2054, %v2056
  %v2058 = vadd.f32 %v2054, %v2057
  %vm2059 = vweird.f32 %v2022
  %vm2060 = vweird.f32 %v2054
  %vm2061 = vmor %vm2059, %vm2060
  %v2062 = vsel %vm2061, %v2054, %v2058
  %v2063 = vand.u32 2147483647, %v2022
  %vm2064 = vcmp.eq.f32.partialorder %v2063, 8.507059e+37
  %v2065 = vand.u32 %v2022, 2147483648
  %v2066 = vor.u32 1.1754944e-38, %v2065
  %v2067 = vsel %vm2064, %v2066, %v2062
  %v2068 = vmul.f32 1.0, %v2067
  %v2069 = vrcp.pop %v2023
  %v2070 = vmul.f32 %v2023, %v2069
  %v2071 = vsub.f32 1.0, %v2070
  %v2072 = vmul.f32 %v2069, %v2071
  %v2073 = vadd.f32 %v2069, %v2072
  %vm2074 = vweird.f32 %v2023
  %vm2075 = vweird.f32 %v2069
  %vm2076 = vmor %vm2074, %vm2075
  %v2077 = vsel %vm2076, %v2069, %v2073
  %v2078 = vand.u32 2147483647, %v2023
  %vm2079 = vcmp.eq.f32.partialorder %v2078, 8.507059e+37
  %v2080 = vand.u32 %v2023, 2147483648
  %v2081 = vor.u32 1.1754944e-38, %v2080
  %v2082 = vsel %vm2079, %v2081, %v2077
  %v2083 = vmul.f32 1.0, %v2082
  %v2084 = vmul.f32 %v1958, %v1686
  %v2085 = vmul.f32 %v1973, %v1687
  %v2086 = vmul.f32 %v1988, %v1688
  %v2087 = vmul.f32 %v2003, %v1689
  %v2088 = vmul.f32 %v1882, %v2004
  %v2089 = vmul.f32 %v1897, %v2005
  %v2090 = vmul.f32 %v1912, %v2006
  %v2091 = vmul.f32 %v1927, %v2007
  %v2092 = vadd.f32 %v2084, %v2088
  %v2093 = vadd.f32 %v2085, %v2089
  %v2094 = vadd.f32 %v2086, %v2090
  %v2095 = vadd.f32 %v2087, %v2091
  %v2096 = vtanh.pop %v2092
  %v2097 = vtanh.pop %v2093
  %v2098 = vtanh.pop %v2094
  %v2099 = vtanh.pop %v2095
  %v2100 = vmul.f32 %v2038, %v2096
  %v2101 = vmul.f32 %v2053, %v2097
  %v2102 = vmul.f32 %v2068, %v2098
  %v2103 = vmul.f32 %v2083, %v2099
  %s2104 = scalar_lea.vmem [#allocation2], 128
  %2105 = vst [vmem:[%s2104] sm:$0xff] %v2100
  %2106 = vst [vmem:[%s2104 + $0x8] sm:$0xff] %v2101
  %2107 = vst [vmem:[%s2104 + $0x10] sm:$0xff] %v2102
  %2108 = vst [vmem:[%s2104 + $0x18] sm:$0x3f] %v2103
  %s2109 = scalar_lea.vmem %s0, 640
  %v2110 = vld [vmem:[%s2109] sm:$0xff]
  %v2111 = vld [vmem:[%s2109 + $0x8] sm:$0xff]
  %v2112 = vld [vmem:[%s2109 + $0x10] sm:$0xff]
  %v2113 = vld [vmem:[%s2109 + $0x18] sm:$0xff]
  %v2114 = vld [vmem:[%s2109 + $0x20] sm:$0xff]
  %v2115 = vld [vmem:[%s2109 + $0x28] sm:$0xff]
  %v2116 = vld [vmem:[%s2109 + $0x30] sm:$0xff]
  %v2117 = vld [vmem:[%s2109 + $0x38] sm:$0xff]
  %v2118 = vld [vmem:[%s2109 + $0x40] sm:$0xff]
  %v2119 = vld [vmem:[%s2109 + $0x48] sm:$0xff]
  %v2120 = vld [vmem:[%s2109 + $0x50] sm:$0xff]
  %v2121 = vld [vmem:[%s2109 + $0x58] sm:$0xff]
  %v2122 = vld [vmem:[%s2109 + $0x60] sm:$0x3f]
  %v2123 = vld [vmem:[%s2109 + $0x68] sm:$0x3f]
  %v2124 = vld [vmem:[%s2109 + $0x70] sm:$0x3f]
  %v2125 = vld [vmem:[%s2109 + $0x78] sm:$0x3f]
  %2126 = vmatpush.msra.mxu0 %v77
  %2127 = vmatpush.msra.mxu0 %v73
  %2128 = vmatpush.msra.mxu0 %v69
  %2129 = vmatpush.msra.mxu0 %v65
  %2130 = vmatpush.msra.mxu0 %v61
  %2131 = vmatpush.msra.mxu0 %v57
  %2132 = vmatpush.msra.mxu0 %v53
  %2133 = vmatpush.msra.mxu0 %v49
  %2134 = vmatpush.msra.mxu0 %v45
  %2135 = vmatpush.msra.mxu0 %v41
  %2136 = vmatpush.msra.mxu0 %v37
  %2137 = vmatpush.msra.mxu0 %v33
  %2138 = vmatpush.msra.mxu0 %v29
  %2139 = vmatpush.msra.mxu0 %v25
  %2140 = vmatpush.msra.mxu0 %v21
  %2141 = vmatpush.msra.mxu0 %v17
  %2142 = vmatmul.f32.gmra.mxu0 %v2100
  %v2143 = vpop.f32.mrf.mxu0
  %v2144 = vadd.f32 0.0, %v2143
  %2145 = vmatmul.f32.gmra.mxu0 %v2101
  %v2146 = vpop.f32.mrf.mxu0
  %v2147 = vadd.f32 0.0, %v2146
  %2148 = vmatmul.f32.gmra.mxu0 %v2102
  %v2149 = vpop.f32.mrf.mxu0
  %v2150 = vadd.f32 0.0, %v2149
  %2151 = vmatmul.f32.gmra.mxu0 %v2103
  %v2152 = vpop.f32.mrf.mxu0
  %v2153 = vadd.f32 0.0, %v2152
  %2154 = vdwg.mxu0
  %2155 = vmatpush.msra.mxu0 %v78
  %2156 = vmatpush.msra.mxu0 %v74
  %2157 = vmatpush.msra.mxu0 %v70
  %2158 = vmatpush.msra.mxu0 %v66
  %2159 = vmatpush.msra.mxu0 %v62
  %2160 = vmatpush.msra.mxu0 %v58
  %2161 = vmatpush.msra.mxu0 %v54
  %2162 = vmatpush.msra.mxu0 %v50
  %2163 = vmatpush.msra.mxu0 %v46
  %2164 = vmatpush.msra.mxu0 %v42
  %2165 = vmatpush.msra.mxu0 %v38
  %2166 = vmatpush.msra.mxu0 %v34
  %2167 = vmatpush.msra.mxu0 %v30
  %2168 = vmatpush.msra.mxu0 %v26
  %2169 = vmatpush.msra.mxu0 %v22
  %2170 = vmatpush.msra.mxu0 %v18
  %2171 = vmatmul.f32.gmra.mxu0 %v2100
  %v2172 = vpop.f32.mrf.mxu0
  %v2173 = vadd.f32 0.0, %v2172
  %2174 = vmatmul.f32.gmra.mxu0 %v2101
  %v2175 = vpop.f32.mrf.mxu0
  %v2176 = vadd.f32 0.0, %v2175
  %2177 = vmatmul.f32.gmra.mxu0 %v2102
  %v2178 = vpop.f32.mrf.mxu0
  %v2179 = vadd.f32 0.0, %v2178
  %2180 = vmatmul.f32.gmra.mxu0 %v2103
  %v2181 = vpop.f32.mrf.mxu0
  %v2182 = vadd.f32 0.0, %v2181
  %2183 = vdwg.mxu0
  %2184 = vmatpush.msra.mxu0 %v79
  %2185 = vmatpush.msra.mxu0 %v75
  %2186 = vmatpush.msra.mxu0 %v71
  %2187 = vmatpush.msra.mxu0 %v67
  %2188 = vmatpush.msra.mxu0 %v63
  %2189 = vmatpush.msra.mxu0 %v59
  %2190 = vmatpush.msra.mxu0 %v55
  %2191 = vmatpush.msra.mxu0 %v51
  %2192 = vmatpush.msra.mxu0 %v47
  %2193 = vmatpush.msra.mxu0 %v43
  %2194 = vmatpush.msra.mxu0 %v39
  %2195 = vmatpush.msra.mxu0 %v35
  %2196 = vmatpush.msra.mxu0 %v31
  %2197 = vmatpush.msra.mxu0 %v27
  %2198 = vmatpush.msra.mxu0 %v23
  %2199 = vmatpush.msra.mxu0 %v19
  %2200 = vmatmul.f32.gmra.mxu0 %v2100
  %v2201 = vpop.f32.mrf.mxu0
  %v2202 = vadd.f32 0.0, %v2201
  %2203 = vmatmul.f32.gmra.mxu0 %v2101
  %v2204 = vpop.f32.mrf.mxu0
  %v2205 = vadd.f32 0.0, %v2204
  %2206 = vmatmul.f32.gmra.mxu0 %v2102
  %v2207 = vpop.f32.mrf.mxu0
  %v2208 = vadd.f32 0.0, %v2207
  %2209 = vmatmul.f32.gmra.mxu0 %v2103
  %v2210 = vpop.f32.mrf.mxu0
  %v2211 = vadd.f32 0.0, %v2210
  %2212 = vdwg.mxu0
  %2213 = vmatpush.msra.mxu0 %v80
  %2214 = vmatpush.msra.mxu0 %v76
  %2215 = vmatpush.msra.mxu0 %v72
  %2216 = vmatpush.msra.mxu0 %v68
  %2217 = vmatpush.msra.mxu0 %v64
  %2218 = vmatpush.msra.mxu0 %v60
  %2219 = vmatpush.msra.mxu0 %v56
  %2220 = vmatpush.msra.mxu0 %v52
  %2221 = vmatpush.msra.mxu0 %v48
  %2222 = vmatpush.msra.mxu0 %v44
  %2223 = vmatpush.msra.mxu0 %v40
  %2224 = vmatpush.msra.mxu0 %v36
  %2225 = vmatpush.msra.mxu0 %v32
  %2226 = vmatpush.msra.mxu0 %v28
  %2227 = vmatpush.msra.mxu0 %v24
  %2228 = vmatpush.msra.mxu0 %v20
  %2229 = vmatmul.f32.gmra.mxu0 %v2100
  %v2230 = vpop.f32.mrf.mxu0
  %v2231 = vadd.f32 0.0, %v2230
  %2232 = vmatmul.f32.gmra.mxu0 %v2101
  %v2233 = vpop.f32.mrf.mxu0
  %v2234 = vadd.f32 0.0, %v2233
  %2235 = vmatmul.f32.gmra.mxu0 %v2102
  %v2236 = vpop.f32.mrf.mxu0
  %v2237 = vadd.f32 0.0, %v2236
  %2238 = vmatmul.f32.gmra.mxu0 %v2103
  %v2239 = vpop.f32.mrf.mxu0
  %v2240 = vadd.f32 0.0, %v2239
  %2241 = vdwg.mxu0
  %v2242 = vadd.f32 %v2110, %v2144
  %v2243 = vadd.f32 %v2111, %v2173
  %v2244 = vadd.f32 %v2112, %v2202
  %v2245 = vadd.f32 %v2113, %v2231
  %v2246 = vadd.f32 %v2114, %v2147
  %v2247 = vadd.f32 %v2115, %v2176
  %v2248 = vadd.f32 %v2116, %v2205
  %v2249 = vadd.f32 %v2117, %v2234
  %v2250 = vadd.f32 %v2118, %v2150
  %v2251 = vadd.f32 %v2119, %v2179
  %v2252 = vadd.f32 %v2120, %v2208
  %v2253 = vadd.f32 %v2121, %v2237
  %v2254 = vadd.f32 %v2122, %v2153
  %v2255 = vadd.f32 %v2123, %v2182
  %v2256 = vadd.f32 %v2124, %v2211
  %v2257 = vadd.f32 %v2125, %v2240
  %v2258 = vxor.u32 %v2242, 2147483648
  %v2259 = vxor.u32 %v2246, 2147483648
  %v2260 = vxor.u32 %v2250, 2147483648
  %v2261 = vxor.u32 %v2254, 2147483648
  %v2262 = vmul.f32 %v2258, 1.442695
  %v2263 = vpow.pop %v2262
  %v2264 = vmul.f32 %v2259, 1.442695
  %v2265 = vpow.pop %v2264
  %v2266 = vmul.f32 %v2260, 1.442695
  %v2267 = vpow.pop %v2266
  %v2268 = vmul.f32 %v2261, 1.442695
  %v2269 = vpow.pop %v2268
  %v2270 = vadd.f32 %v2263, 1.0
  %v2271 = vadd.f32 %v2265, 1.0
  %v2272 = vadd.f32 %v2267, 1.0
  %v2273 = vadd.f32 %v2269, 1.0
  %v2274 = vrcp.pop %v2270
  %v2275 = vmul.f32 %v2270, %v2274
  %v2276 = vsub.f32 1.0, %v2275
  %v2277 = vmul.f32 %v2274, %v2276
  %v2278 = vadd.f32 %v2274, %v2277
  %vm2279 = vweird.f32 %v2270
  %vm2280 = vweird.f32 %v2274
  %vm2281 = vmor %vm2279, %vm2280
  %v2282 = vsel %vm2281, %v2274, %v2278
  %v2283 = vand.u32 2147483647, %v2270
  %vm2284 = vcmp.eq.f32.partialorder %v2283, 8.507059e+37
  %v2285 = vand.u32 %v2270, 2147483648
  %v2286 = vor.u32 1.1754944e-38, %v2285
  %v2287 = vsel %vm2284, %v2286, %v2282
  %v2288 = vmul.f32 1.0, %v2287
  %v2289 = vrcp.pop %v2271
  %v2290 = vmul.f32 %v2271, %v2289
  %v2291 = vsub.f32 1.0, %v2290
  %v2292 = vmul.f32 %v2289, %v2291
  %v2293 = vadd.f32 %v2289, %v2292
  %vm2294 = vweird.f32 %v2271
  %vm2295 = vweird.f32 %v2289
  %vm2296 = vmor %vm2294, %vm2295
  %v2297 = vsel %vm2296, %v2289, %v2293
  %v2298 = vand.u32 2147483647, %v2271
  %vm2299 = vcmp.eq.f32.partialorder %v2298, 8.507059e+37
  %v2300 = vand.u32 %v2271, 2147483648
  %v2301 = vor.u32 1.1754944e-38, %v2300
  %v2302 = vsel %vm2299, %v2301, %v2297
  %v2303 = vmul.f32 1.0, %v2302
  %v2304 = vrcp.pop %v2272
  %v2305 = vmul.f32 %v2272, %v2304
  %v2306 = vsub.f32 1.0, %v2305
  %v2307 = vmul.f32 %v2304, %v2306
  %v2308 = vadd.f32 %v2304, %v2307
  %vm2309 = vweird.f32 %v2272
  %vm2310 = vweird.f32 %v2304
  %vm2311 = vmor %vm2309, %vm2310
  %v2312 = vsel %vm2311, %v2304, %v2308
  %v2313 = vand.u32 2147483647, %v2272
  %vm2314 = vcmp.eq.f32.partialorder %v2313, 8.507059e+37
  %v2315 = vand.u32 %v2272, 2147483648
  %v2316 = vor.u32 1.1754944e-38, %v2315
  %v2317 = vsel %vm2314, %v2316, %v2312
  %v2318 = vmul.f32 1.0, %v2317
  %v2319 = vrcp.pop %v2273
  %v2320 = vmul.f32 %v2273, %v2319
  %v2321 = vsub.f32 1.0, %v2320
  %v2322 = vmul.f32 %v2319, %v2321
  %v2323 = vadd.f32 %v2319, %v2322
  %vm2324 = vweird.f32 %v2273
  %vm2325 = vweird.f32 %v2319
  %vm2326 = vmor %vm2324, %vm2325
  %v2327 = vsel %vm2326, %v2319, %v2323
  %v2328 = vand.u32 2147483647, %v2273
  %vm2329 = vcmp.eq.f32.partialorder %v2328, 8.507059e+37
  %v2330 = vand.u32 %v2273, 2147483648
  %v2331 = vor.u32 1.1754944e-38, %v2330
  %v2332 = vsel %vm2329, %v2331, %v2327
  %v2333 = vmul.f32 1.0, %v2332
  %v2334 = vxor.u32 %v2243, 2147483648
  %v2335 = vxor.u32 %v2247, 2147483648
  %v2336 = vxor.u32 %v2251, 2147483648
  %v2337 = vxor.u32 %v2255, 2147483648
  %v2338 = vmul.f32 %v2334, 1.442695
  %v2339 = vpow.pop %v2338
  %v2340 = vmul.f32 %v2335, 1.442695
  %v2341 = vpow.pop %v2340
  %v2342 = vmul.f32 %v2336, 1.442695
  %v2343 = vpow.pop %v2342
  %v2344 = vmul.f32 %v2337, 1.442695
  %v2345 = vpow.pop %v2344
  %v2346 = vadd.f32 %v2339, 1.0
  %v2347 = vadd.f32 %v2341, 1.0
  %v2348 = vadd.f32 %v2343, 1.0
  %v2349 = vadd.f32 %v2345, 1.0
  %v2350 = vrcp.pop %v2346
  %v2351 = vmul.f32 %v2346, %v2350
  %v2352 = vsub.f32 1.0, %v2351
  %v2353 = vmul.f32 %v2350, %v2352
  %v2354 = vadd.f32 %v2350, %v2353
  %vm2355 = vweird.f32 %v2346
  %vm2356 = vweird.f32 %v2350
  %vm2357 = vmor %vm2355, %vm2356
  %v2358 = vsel %vm2357, %v2350, %v2354
  %v2359 = vand.u32 2147483647, %v2346
  %vm2360 = vcmp.eq.f32.partialorder %v2359, 8.507059e+37
  %v2361 = vand.u32 %v2346, 2147483648
  %v2362 = vor.u32 1.1754944e-38, %v2361
  %v2363 = vsel %vm2360, %v2362, %v2358
  %v2364 = vmul.f32 1.0, %v2363
  %v2365 = vrcp.pop %v2347
  %v2366 = vmul.f32 %v2347, %v2365
  %v2367 = vsub.f32 1.0, %v2366
  %v2368 = vmul.f32 %v2365, %v2367
  %v2369 = vadd.f32 %v2365, %v2368
  %vm2370 = vweird.f32 %v2347
  %vm2371 = vweird.f32 %v2365
  %vm2372 = vmor %vm2370, %vm2371
  %v2373 = vsel %vm2372, %v2365, %v2369
  %v2374 = vand.u32 2147483647, %v2347
  %vm2375 = vcmp.eq.f32.partialorder %v2374, 8.507059e+37
  %v2376 = vand.u32 %v2347, 2147483648
  %v2377 = vor.u32 1.1754944e-38, %v2376
  %v2378 = vsel %vm2375, %v2377, %v2373
  %v2379 = vmul.f32 1.0, %v2378
  %v2380 = vrcp.pop %v2348
  %v2381 = vmul.f32 %v2348, %v2380
  %v2382 = vsub.f32 1.0, %v2381
  %v2383 = vmul.f32 %v2380, %v2382
  %v2384 = vadd.f32 %v2380, %v2383
  %vm2385 = vweird.f32 %v2348
  %vm2386 = vweird.f32 %v2380
  %vm2387 = vmor %vm2385, %vm2386
  %v2388 = vsel %vm2387, %v2380, %v2384
  %v2389 = vand.u32 2147483647, %v2348
  %vm2390 = vcmp.eq.f32.partialorder %v2389, 8.507059e+37
  %v2391 = vand.u32 %v2348, 2147483648
  %v2392 = vor.u32 1.1754944e-38, %v2391
  %v2393 = vsel %vm2390, %v2392, %v2388
  %v2394 = vmul.f32 1.0, %v2393
  %v2395 = vrcp.pop %v2349
  %v2396 = vmul.f32 %v2349, %v2395
  %v2397 = vsub.f32 1.0, %v2396
  %v2398 = vmul.f32 %v2395, %v2397
  %v2399 = vadd.f32 %v2395, %v2398
  %vm2400 = vweird.f32 %v2349
  %vm2401 = vweird.f32 %v2395
  %vm2402 = vmor %vm2400, %vm2401
  %v2403 = vsel %vm2402, %v2395, %v2399
  %v2404 = vand.u32 2147483647, %v2349
  %vm2405 = vcmp.eq.f32.partialorder %v2404, 8.507059e+37
  %v2406 = vand.u32 %v2349, 2147483648
  %v2407 = vor.u32 1.1754944e-38, %v2406
  %v2408 = vsel %vm2405, %v2407, %v2403
  %v2409 = vmul.f32 1.0, %v2408
  %v2410 = vtanh.pop %v2244
  %v2411 = vtanh.pop %v2248
  %v2412 = vtanh.pop %v2252
  %v2413 = vtanh.pop %v2256
  %v2414 = vxor.u32 %v2245, 2147483648
  %v2415 = vxor.u32 %v2249, 2147483648
  %v2416 = vxor.u32 %v2253, 2147483648
  %v2417 = vxor.u32 %v2257, 2147483648
  %v2418 = vmul.f32 %v2414, 1.442695
  %v2419 = vpow.pop %v2418
  %v2420 = vmul.f32 %v2415, 1.442695
  %v2421 = vpow.pop %v2420
  %v2422 = vmul.f32 %v2416, 1.442695
  %v2423 = vpow.pop %v2422
  %v2424 = vmul.f32 %v2417, 1.442695
  %v2425 = vpow.pop %v2424
  %v2426 = vadd.f32 %v2419, 1.0
  %v2427 = vadd.f32 %v2421, 1.0
  %v2428 = vadd.f32 %v2423, 1.0
  %v2429 = vadd.f32 %v2425, 1.0
  %v2430 = vrcp.pop %v2426
  %v2431 = vmul.f32 %v2426, %v2430
  %v2432 = vsub.f32 1.0, %v2431
  %v2433 = vmul.f32 %v2430, %v2432
  %v2434 = vadd.f32 %v2430, %v2433
  %vm2435 = vweird.f32 %v2426
  %vm2436 = vweird.f32 %v2430
  %vm2437 = vmor %vm2435, %vm2436
  %v2438 = vsel %vm2437, %v2430, %v2434
  %v2439 = vand.u32 2147483647, %v2426
  %vm2440 = vcmp.eq.f32.partialorder %v2439, 8.507059e+37
  %v2441 = vand.u32 %v2426, 2147483648
  %v2442 = vor.u32 1.1754944e-38, %v2441
  %v2443 = vsel %vm2440, %v2442, %v2438
  %v2444 = vmul.f32 1.0, %v2443
  %v2445 = vrcp.pop %v2427
  %v2446 = vmul.f32 %v2427, %v2445
  %v2447 = vsub.f32 1.0, %v2446
  %v2448 = vmul.f32 %v2445, %v2447
  %v2449 = vadd.f32 %v2445, %v2448
  %vm2450 = vweird.f32 %v2427
  %vm2451 = vweird.f32 %v2445
  %vm2452 = vmor %vm2450, %vm2451
  %v2453 = vsel %vm2452, %v2445, %v2449
  %v2454 = vand.u32 2147483647, %v2427
  %vm2455 = vcmp.eq.f32.partialorder %v2454, 8.507059e+37
  %v2456 = vand.u32 %v2427, 2147483648
  %v2457 = vor.u32 1.1754944e-38, %v2456
  %v2458 = vsel %vm2455, %v2457, %v2453
  %v2459 = vmul.f32 1.0, %v2458
  %v2460 = vrcp.pop %v2428
  %v2461 = vmul.f32 %v2428, %v2460
  %v2462 = vsub.f32 1.0, %v2461
  %v2463 = vmul.f32 %v2460, %v2462
  %v2464 = vadd.f32 %v2460, %v2463
  %vm2465 = vweird.f32 %v2428
  %vm2466 = vweird.f32 %v2460
  %vm2467 = vmor %vm2465, %vm2466
  %v2468 = vsel %vm2467, %v2460, %v2464
  %v2469 = vand.u32 2147483647, %v2428
  %vm2470 = vcmp.eq.f32.partialorder %v2469, 8.507059e+37
  %v2471 = vand.u32 %v2428, 2147483648
  %v2472 = vor.u32 1.1754944e-38, %v2471
  %v2473 = vsel %vm2470, %v2472, %v2468
  %v2474 = vmul.f32 1.0, %v2473
  %v2475 = vrcp.pop %v2429
  %v2476 = vmul.f32 %v2429, %v2475
  %v2477 = vsub.f32 1.0, %v2476
  %v2478 = vmul.f32 %v2475, %v2477
  %v2479 = vadd.f32 %v2475, %v2478
  %vm2480 = vweird.f32 %v2429
  %vm2481 = vweird.f32 %v2475
  %vm2482 = vmor %vm2480, %vm2481
  %v2483 = vsel %vm2482, %v2475, %v2479
  %v2484 = vand.u32 2147483647, %v2429
  %vm2485 = vcmp.eq.f32.partialorder %v2484, 8.507059e+37
  %v2486 = vand.u32 %v2429, 2147483648
  %v2487 = vor.u32 1.1754944e-38, %v2486
  %v2488 = vsel %vm2485, %v2487, %v2483
  %v2489 = vmul.f32 1.0, %v2488
  %v2490 = vmul.f32 %v2364, %v2092
  %v2491 = vmul.f32 %v2379, %v2093
  %v2492 = vmul.f32 %v2394, %v2094
  %v2493 = vmul.f32 %v2409, %v2095
  %v2494 = vmul.f32 %v2288, %v2410
  %v2495 = vmul.f32 %v2303, %v2411
  %v2496 = vmul.f32 %v2318, %v2412
  %v2497 = vmul.f32 %v2333, %v2413
  %v2498 = vadd.f32 %v2490, %v2494
  %v2499 = vadd.f32 %v2491, %v2495
  %v2500 = vadd.f32 %v2492, %v2496
  %v2501 = vadd.f32 %v2493, %v2497
  %v2502 = vtanh.pop %v2498
  %v2503 = vtanh.pop %v2499
  %v2504 = vtanh.pop %v2500
  %v2505 = vtanh.pop %v2501
  %v2506 = vmul.f32 %v2444, %v2502
  %v2507 = vmul.f32 %v2459, %v2503
  %v2508 = vmul.f32 %v2474, %v2504
  %v2509 = vmul.f32 %v2489, %v2505
  %s2510 = scalar_lea.vmem [#allocation2], 160
  %2511 = vst [vmem:[%s2510] sm:$0xff] %v2506
  %2512 = vst [vmem:[%s2510 + $0x8] sm:$0xff] %v2507
  %2513 = vst [vmem:[%s2510 + $0x10] sm:$0xff] %v2508
  %2514 = vst [vmem:[%s2510 + $0x18] sm:$0x3f] %v2509
  %s2515 = scalar_lea.vmem %s0, 768
  %v2516 = vld [vmem:[%s2515] sm:$0xff]
  %v2517 = vld [vmem:[%s2515 + $0x8] sm:$0xff]
  %v2518 = vld [vmem:[%s2515 + $0x10] sm:$0xff]
  %v2519 = vld [vmem:[%s2515 + $0x18] sm:$0xff]
  %v2520 = vld [vmem:[%s2515 + $0x20] sm:$0xff]
  %v2521 = vld [vmem:[%s2515 + $0x28] sm:$0xff]
  %v2522 = vld [vmem:[%s2515 + $0x30] sm:$0xff]
  %v2523 = vld [vmem:[%s2515 + $0x38] sm:$0xff]
  %v2524 = vld [vmem:[%s2515 + $0x40] sm:$0xff]
  %v2525 = vld [vmem:[%s2515 + $0x48] sm:$0xff]
  %v2526 = vld [vmem:[%s2515 + $0x50] sm:$0xff]
  %v2527 = vld [vmem:[%s2515 + $0x58] sm:$0xff]
  %v2528 = vld [vmem:[%s2515 + $0x60] sm:$0x3f]
  %v2529 = vld [vmem:[%s2515 + $0x68] sm:$0x3f]
  %v2530 = vld [vmem:[%s2515 + $0x70] sm:$0x3f]
  %v2531 = vld [vmem:[%s2515 + $0x78] sm:$0x3f]
  %2532 = vmatpush.msra.mxu0 %v77
  %2533 = vmatpush.msra.mxu0 %v73
  %2534 = vmatpush.msra.mxu0 %v69
  %2535 = vmatpush.msra.mxu0 %v65
  %2536 = vmatpush.msra.mxu0 %v61
  %2537 = vmatpush.msra.mxu0 %v57
  %2538 = vmatpush.msra.mxu0 %v53
  %2539 = vmatpush.msra.mxu0 %v49
  %2540 = vmatpush.msra.mxu0 %v45
  %2541 = vmatpush.msra.mxu0 %v41
  %2542 = vmatpush.msra.mxu0 %v37
  %2543 = vmatpush.msra.mxu0 %v33
  %2544 = vmatpush.msra.mxu0 %v29
  %2545 = vmatpush.msra.mxu0 %v25
  %2546 = vmatpush.msra.mxu0 %v21
  %2547 = vmatpush.msra.mxu0 %v17
  %2548 = vmatmul.f32.gmra.mxu0 %v2506
  %v2549 = vpop.f32.mrf.mxu0
  %v2550 = vadd.f32 0.0, %v2549
  %2551 = vmatmul.f32.gmra.mxu0 %v2507
  %v2552 = vpop.f32.mrf.mxu0
  %v2553 = vadd.f32 0.0, %v2552
  %2554 = vmatmul.f32.gmra.mxu0 %v2508
  %v2555 = vpop.f32.mrf.mxu0
  %v2556 = vadd.f32 0.0, %v2555
  %2557 = vmatmul.f32.gmra.mxu0 %v2509
  %v2558 = vpop.f32.mrf.mxu0
  %v2559 = vadd.f32 0.0, %v2558
  %2560 = vdwg.mxu0
  %2561 = vmatpush.msra.mxu0 %v78
  %2562 = vmatpush.msra.mxu0 %v74
  %2563 = vmatpush.msra.mxu0 %v70
  %2564 = vmatpush.msra.mxu0 %v66
  %2565 = vmatpush.msra.mxu0 %v62
  %2566 = vmatpush.msra.mxu0 %v58
  %2567 = vmatpush.msra.mxu0 %v54
  %2568 = vmatpush.msra.mxu0 %v50
  %2569 = vmatpush.msra.mxu0 %v46
  %2570 = vmatpush.msra.mxu0 %v42
  %2571 = vmatpush.msra.mxu0 %v38
  %2572 = vmatpush.msra.mxu0 %v34
  %2573 = vmatpush.msra.mxu0 %v30
  %2574 = vmatpush.msra.mxu0 %v26
  %2575 = vmatpush.msra.mxu0 %v22
  %2576 = vmatpush.msra.mxu0 %v18
  %2577 = vmatmul.f32.gmra.mxu0 %v2506
  %v2578 = vpop.f32.mrf.mxu0
  %v2579 = vadd.f32 0.0, %v2578
  %2580 = vmatmul.f32.gmra.mxu0 %v2507
  %v2581 = vpop.f32.mrf.mxu0
  %v2582 = vadd.f32 0.0, %v2581
  %2583 = vmatmul.f32.gmra.mxu0 %v2508
  %v2584 = vpop.f32.mrf.mxu0
  %v2585 = vadd.f32 0.0, %v2584
  %2586 = vmatmul.f32.gmra.mxu0 %v2509
  %v2587 = vpop.f32.mrf.mxu0
  %v2588 = vadd.f32 0.0, %v2587
  %2589 = vdwg.mxu0
  %2590 = vmatpush.msra.mxu0 %v79
  %2591 = vmatpush.msra.mxu0 %v75
  %2592 = vmatpush.msra.mxu0 %v71
  %2593 = vmatpush.msra.mxu0 %v67
  %2594 = vmatpush.msra.mxu0 %v63
  %2595 = vmatpush.msra.mxu0 %v59
  %2596 = vmatpush.msra.mxu0 %v55
  %2597 = vmatpush.msra.mxu0 %v51
  %2598 = vmatpush.msra.mxu0 %v47
  %2599 = vmatpush.msra.mxu0 %v43
  %2600 = vmatpush.msra.mxu0 %v39
  %2601 = vmatpush.msra.mxu0 %v35
  %2602 = vmatpush.msra.mxu0 %v31
  %2603 = vmatpush.msra.mxu0 %v27
  %2604 = vmatpush.msra.mxu0 %v23
  %2605 = vmatpush.msra.mxu0 %v19
  %2606 = vmatmul.f32.gmra.mxu0 %v2506
  %v2607 = vpop.f32.mrf.mxu0
  %v2608 = vadd.f32 0.0, %v2607
  %2609 = vmatmul.f32.gmra.mxu0 %v2507
  %v2610 = vpop.f32.mrf.mxu0
  %v2611 = vadd.f32 0.0, %v2610
  %2612 = vmatmul.f32.gmra.mxu0 %v2508
  %v2613 = vpop.f32.mrf.mxu0
  %v2614 = vadd.f32 0.0, %v2613
  %2615 = vmatmul.f32.gmra.mxu0 %v2509
  %v2616 = vpop.f32.mrf.mxu0
  %v2617 = vadd.f32 0.0, %v2616
  %2618 = vdwg.mxu0
  %2619 = vmatpush.msra.mxu0 %v80
  %2620 = vmatpush.msra.mxu0 %v76
  %2621 = vmatpush.msra.mxu0 %v72
  %2622 = vmatpush.msra.mxu0 %v68
  %2623 = vmatpush.msra.mxu0 %v64
  %2624 = vmatpush.msra.mxu0 %v60
  %2625 = vmatpush.msra.mxu0 %v56
  %2626 = vmatpush.msra.mxu0 %v52
  %2627 = vmatpush.msra.mxu0 %v48
  %2628 = vmatpush.msra.mxu0 %v44
  %2629 = vmatpush.msra.mxu0 %v40
  %2630 = vmatpush.msra.mxu0 %v36
  %2631 = vmatpush.msra.mxu0 %v32
  %2632 = vmatpush.msra.mxu0 %v28
  %2633 = vmatpush.msra.mxu0 %v24
  %2634 = vmatpush.msra.mxu0 %v20
  %2635 = vmatmul.f32.gmra.mxu0 %v2506
  %v2636 = vpop.f32.mrf.mxu0
  %v2637 = vadd.f32 0.0, %v2636
  %2638 = vmatmul.f32.gmra.mxu0 %v2507
  %v2639 = vpop.f32.mrf.mxu0
  %v2640 = vadd.f32 0.0, %v2639
  %2641 = vmatmul.f32.gmra.mxu0 %v2508
  %v2642 = vpop.f32.mrf.mxu0
  %v2643 = vadd.f32 0.0, %v2642
  %2644 = vmatmul.f32.gmra.mxu0 %v2509
  %v2645 = vpop.f32.mrf.mxu0
  %v2646 = vadd.f32 0.0, %v2645
  %2647 = vdwg.mxu0
  %v2648 = vadd.f32 %v2516, %v2550
  %v2649 = vadd.f32 %v2517, %v2579
  %v2650 = vadd.f32 %v2518, %v2608
  %v2651 = vadd.f32 %v2519, %v2637
  %v2652 = vadd.f32 %v2520, %v2553
  %v2653 = vadd.f32 %v2521, %v2582
  %v2654 = vadd.f32 %v2522, %v2611
  %v2655 = vadd.f32 %v2523, %v2640
  %v2656 = vadd.f32 %v2524, %v2556
  %v2657 = vadd.f32 %v2525, %v2585
  %v2658 = vadd.f32 %v2526, %v2614
  %v2659 = vadd.f32 %v2527, %v2643
  %v2660 = vadd.f32 %v2528, %v2559
  %v2661 = vadd.f32 %v2529, %v2588
  %v2662 = vadd.f32 %v2530, %v2617
  %v2663 = vadd.f32 %v2531, %v2646
  %v2664 = vxor.u32 %v2648, 2147483648
  %v2665 = vxor.u32 %v2652, 2147483648
  %v2666 = vxor.u32 %v2656, 2147483648
  %v2667 = vxor.u32 %v2660, 2147483648
  %v2668 = vmul.f32 %v2664, 1.442695
  %v2669 = vpow.pop %v2668
  %v2670 = vmul.f32 %v2665, 1.442695
  %v2671 = vpow.pop %v2670
  %v2672 = vmul.f32 %v2666, 1.442695
  %v2673 = vpow.pop %v2672
  %v2674 = vmul.f32 %v2667, 1.442695
  %v2675 = vpow.pop %v2674
  %v2676 = vadd.f32 %v2669, 1.0
  %v2677 = vadd.f32 %v2671, 1.0
  %v2678 = vadd.f32 %v2673, 1.0
  %v2679 = vadd.f32 %v2675, 1.0
  %v2680 = vrcp.pop %v2676
  %v2681 = vmul.f32 %v2676, %v2680
  %v2682 = vsub.f32 1.0, %v2681
  %v2683 = vmul.f32 %v2680, %v2682
  %v2684 = vadd.f32 %v2680, %v2683
  %vm2685 = vweird.f32 %v2676
  %vm2686 = vweird.f32 %v2680
  %vm2687 = vmor %vm2685, %vm2686
  %v2688 = vsel %vm2687, %v2680, %v2684
  %v2689 = vand.u32 2147483647, %v2676
  %vm2690 = vcmp.eq.f32.partialorder %v2689, 8.507059e+37
  %v2691 = vand.u32 %v2676, 2147483648
  %v2692 = vor.u32 1.1754944e-38, %v2691
  %v2693 = vsel %vm2690, %v2692, %v2688
  %v2694 = vmul.f32 1.0, %v2693
  %v2695 = vrcp.pop %v2677
  %v2696 = vmul.f32 %v2677, %v2695
  %v2697 = vsub.f32 1.0, %v2696
  %v2698 = vmul.f32 %v2695, %v2697
  %v2699 = vadd.f32 %v2695, %v2698
  %vm2700 = vweird.f32 %v2677
  %vm2701 = vweird.f32 %v2695
  %vm2702 = vmor %vm2700, %vm2701
  %v2703 = vsel %vm2702, %v2695, %v2699
  %v2704 = vand.u32 2147483647, %v2677
  %vm2705 = vcmp.eq.f32.partialorder %v2704, 8.507059e+37
  %v2706 = vand.u32 %v2677, 2147483648
  %v2707 = vor.u32 1.1754944e-38, %v2706
  %v2708 = vsel %vm2705, %v2707, %v2703
  %v2709 = vmul.f32 1.0, %v2708
  %v2710 = vrcp.pop %v2678
  %v2711 = vmul.f32 %v2678, %v2710
  %v2712 = vsub.f32 1.0, %v2711
  %v2713 = vmul.f32 %v2710, %v2712
  %v2714 = vadd.f32 %v2710, %v2713
  %vm2715 = vweird.f32 %v2678
  %vm2716 = vweird.f32 %v2710
  %vm2717 = vmor %vm2715, %vm2716
  %v2718 = vsel %vm2717, %v2710, %v2714
  %v2719 = vand.u32 2147483647, %v2678
  %vm2720 = vcmp.eq.f32.partialorder %v2719, 8.507059e+37
  %v2721 = vand.u32 %v2678, 2147483648
  %v2722 = vor.u32 1.1754944e-38, %v2721
  %v2723 = vsel %vm2720, %v2722, %v2718
  %v2724 = vmul.f32 1.0, %v2723
  %v2725 = vrcp.pop %v2679
  %v2726 = vmul.f32 %v2679, %v2725
  %v2727 = vsub.f32 1.0, %v2726
  %v2728 = vmul.f32 %v2725, %v2727
  %v2729 = vadd.f32 %v2725, %v2728
  %vm2730 = vweird.f32 %v2679
  %vm2731 = vweird.f32 %v2725
  %vm2732 = vmor %vm2730, %vm2731
  %v2733 = vsel %vm2732, %v2725, %v2729
  %v2734 = vand.u32 2147483647, %v2679
  %vm2735 = vcmp.eq.f32.partialorder %v2734, 8.507059e+37
  %v2736 = vand.u32 %v2679, 2147483648
  %v2737 = vor.u32 1.1754944e-38, %v2736
  %v2738 = vsel %vm2735, %v2737, %v2733
  %v2739 = vmul.f32 1.0, %v2738
  %v2740 = vxor.u32 %v2649, 2147483648
  %v2741 = vxor.u32 %v2653, 2147483648
  %v2742 = vxor.u32 %v2657, 2147483648
  %v2743 = vxor.u32 %v2661, 2147483648
  %v2744 = vmul.f32 %v2740, 1.442695
  %v2745 = vpow.pop %v2744
  %v2746 = vmul.f32 %v2741, 1.442695
  %v2747 = vpow.pop %v2746
  %v2748 = vmul.f32 %v2742, 1.442695
  %v2749 = vpow.pop %v2748
  %v2750 = vmul.f32 %v2743, 1.442695
  %v2751 = vpow.pop %v2750
  %v2752 = vadd.f32 %v2745, 1.0
  %v2753 = vadd.f32 %v2747, 1.0
  %v2754 = vadd.f32 %v2749, 1.0
  %v2755 = vadd.f32 %v2751, 1.0
  %v2756 = vrcp.pop %v2752
  %v2757 = vmul.f32 %v2752, %v2756
  %v2758 = vsub.f32 1.0, %v2757
  %v2759 = vmul.f32 %v2756, %v2758
  %v2760 = vadd.f32 %v2756, %v2759
  %vm2761 = vweird.f32 %v2752
  %vm2762 = vweird.f32 %v2756
  %vm2763 = vmor %vm2761, %vm2762
  %v2764 = vsel %vm2763, %v2756, %v2760
  %v2765 = vand.u32 2147483647, %v2752
  %vm2766 = vcmp.eq.f32.partialorder %v2765, 8.507059e+37
  %v2767 = vand.u32 %v2752, 2147483648
  %v2768 = vor.u32 1.1754944e-38, %v2767
  %v2769 = vsel %vm2766, %v2768, %v2764
  %v2770 = vmul.f32 1.0, %v2769
  %v2771 = vrcp.pop %v2753
  %v2772 = vmul.f32 %v2753, %v2771
  %v2773 = vsub.f32 1.0, %v2772
  %v2774 = vmul.f32 %v2771, %v2773
  %v2775 = vadd.f32 %v2771, %v2774
  %vm2776 = vweird.f32 %v2753
  %vm2777 = vweird.f32 %v2771
  %vm2778 = vmor %vm2776, %vm2777
  %v2779 = vsel %vm2778, %v2771, %v2775
  %v2780 = vand.u32 2147483647, %v2753
  %vm2781 = vcmp.eq.f32.partialorder %v2780, 8.507059e+37
  %v2782 = vand.u32 %v2753, 2147483648
  %v2783 = vor.u32 1.1754944e-38, %v2782
  %v2784 = vsel %vm2781, %v2783, %v2779
  %v2785 = vmul.f32 1.0, %v2784
  %v2786 = vrcp.pop %v2754
  %v2787 = vmul.f32 %v2754, %v2786
  %v2788 = vsub.f32 1.0, %v2787
  %v2789 = vmul.f32 %v2786, %v2788
  %v2790 = vadd.f32 %v2786, %v2789
  %vm2791 = vweird.f32 %v2754
  %vm2792 = vweird.f32 %v2786
  %vm2793 = vmor %vm2791, %vm2792
  %v2794 = vsel %vm2793, %v2786, %v2790
  %v2795 = vand.u32 2147483647, %v2754
  %vm2796 = vcmp.eq.f32.partialorder %v2795, 8.507059e+37
  %v2797 = vand.u32 %v2754, 2147483648
  %v2798 = vor.u32 1.1754944e-38, %v2797
  %v2799 = vsel %vm2796, %v2798, %v2794
  %v2800 = vmul.f32 1.0, %v2799
  %v2801 = vrcp.pop %v2755
  %v2802 = vmul.f32 %v2755, %v2801
  %v2803 = vsub.f32 1.0, %v2802
  %v2804 = vmul.f32 %v2801, %v2803
  %v2805 = vadd.f32 %v2801, %v2804
  %vm2806 = vweird.f32 %v2755
  %vm2807 = vweird.f32 %v2801
  %vm2808 = vmor %vm2806, %vm2807
  %v2809 = vsel %vm2808, %v2801, %v2805
  %v2810 = vand.u32 2147483647, %v2755
  %vm2811 = vcmp.eq.f32.partialorder %v2810, 8.507059e+37
  %v2812 = vand.u32 %v2755, 2147483648
  %v2813 = vor.u32 1.1754944e-38, %v2812
  %v2814 = vsel %vm2811, %v2813, %v2809
  %v2815 = vmul.f32 1.0, %v2814
  %v2816 = vtanh.pop %v2650
  %v2817 = vtanh.pop %v2654
  %v2818 = vtanh.pop %v2658
  %v2819 = vtanh.pop %v2662
  %v2820 = vxor.u32 %v2651, 2147483648
  %v2821 = vxor.u32 %v2655, 2147483648
  %v2822 = vxor.u32 %v2659, 2147483648
  %v2823 = vxor.u32 %v2663, 2147483648
  %v2824 = vmul.f32 %v2820, 1.442695
  %v2825 = vpow.pop %v2824
  %v2826 = vmul.f32 %v2821, 1.442695
  %v2827 = vpow.pop %v2826
  %v2828 = vmul.f32 %v2822, 1.442695
  %v2829 = vpow.pop %v2828
  %v2830 = vmul.f32 %v2823, 1.442695
  %v2831 = vpow.pop %v2830
  %v2832 = vadd.f32 %v2825, 1.0
  %v2833 = vadd.f32 %v2827, 1.0
  %v2834 = vadd.f32 %v2829, 1.0
  %v2835 = vadd.f32 %v2831, 1.0
  %v2836 = vrcp.pop %v2832
  %v2837 = vmul.f32 %v2832, %v2836
  %v2838 = vsub.f32 1.0, %v2837
  %v2839 = vmul.f32 %v2836, %v2838
  %v2840 = vadd.f32 %v2836, %v2839
  %vm2841 = vweird.f32 %v2832
  %vm2842 = vweird.f32 %v2836
  %vm2843 = vmor %vm2841, %vm2842
  %v2844 = vsel %vm2843, %v2836, %v2840
  %v2845 = vand.u32 2147483647, %v2832
  %vm2846 = vcmp.eq.f32.partialorder %v2845, 8.507059e+37
  %v2847 = vand.u32 %v2832, 2147483648
  %v2848 = vor.u32 1.1754944e-38, %v2847
  %v2849 = vsel %vm2846, %v2848, %v2844
  %v2850 = vmul.f32 1.0, %v2849
  %v2851 = vrcp.pop %v2833
  %v2852 = vmul.f32 %v2833, %v2851
  %v2853 = vsub.f32 1.0, %v2852
  %v2854 = vmul.f32 %v2851, %v2853
  %v2855 = vadd.f32 %v2851, %v2854
  %vm2856 = vweird.f32 %v2833
  %vm2857 = vweird.f32 %v2851
  %vm2858 = vmor %vm2856, %vm2857
  %v2859 = vsel %vm2858, %v2851, %v2855
  %v2860 = vand.u32 2147483647, %v2833
  %vm2861 = vcmp.eq.f32.partialorder %v2860, 8.507059e+37
  %v2862 = vand.u32 %v2833, 2147483648
  %v2863 = vor.u32 1.1754944e-38, %v2862
  %v2864 = vsel %vm2861, %v2863, %v2859
  %v2865 = vmul.f32 1.0, %v2864
  %v2866 = vrcp.pop %v2834
  %v2867 = vmul.f32 %v2834, %v2866
  %v2868 = vsub.f32 1.0, %v2867
  %v2869 = vmul.f32 %v2866, %v2868
  %v2870 = vadd.f32 %v2866, %v2869
  %vm2871 = vweird.f32 %v2834
  %vm2872 = vweird.f32 %v2866
  %vm2873 = vmor %vm2871, %vm2872
  %v2874 = vsel %vm2873, %v2866, %v2870
  %v2875 = vand.u32 2147483647, %v2834
  %vm2876 = vcmp.eq.f32.partialorder %v2875, 8.507059e+37
  %v2877 = vand.u32 %v2834, 2147483648
  %v2878 = vor.u32 1.1754944e-38, %v2877
  %v2879 = vsel %vm2876, %v2878, %v2874
  %v2880 = vmul.f32 1.0, %v2879
  %v2881 = vrcp.pop %v2835
  %v2882 = vmul.f32 %v2835, %v2881
  %v2883 = vsub.f32 1.0, %v2882
  %v2884 = vmul.f32 %v2881, %v2883
  %v2885 = vadd.f32 %v2881, %v2884
  %vm2886 = vweird.f32 %v2835
  %vm2887 = vweird.f32 %v2881
  %vm2888 = vmor %vm2886, %vm2887
  %v2889 = vsel %vm2888, %v2881, %v2885
  %v2890 = vand.u32 2147483647, %v2835
  %vm2891 = vcmp.eq.f32.partialorder %v2890, 8.507059e+37
  %v2892 = vand.u32 %v2835, 2147483648
  %v2893 = vor.u32 1.1754944e-38, %v2892
  %v2894 = vsel %vm2891, %v2893, %v2889
  %v2895 = vmul.f32 1.0, %v2894
  %v2896 = vmul.f32 %v2770, %v2498
  %v2897 = vmul.f32 %v2785, %v2499
  %v2898 = vmul.f32 %v2800, %v2500
  %v2899 = vmul.f32 %v2815, %v2501
  %v2900 = vmul.f32 %v2694, %v2816
  %v2901 = vmul.f32 %v2709, %v2817
  %v2902 = vmul.f32 %v2724, %v2818
  %v2903 = vmul.f32 %v2739, %v2819
  %v2904 = vadd.f32 %v2896, %v2900
  %v2905 = vadd.f32 %v2897, %v2901
  %v2906 = vadd.f32 %v2898, %v2902
  %v2907 = vadd.f32 %v2899, %v2903
  %v2908 = vtanh.pop %v2904
  %v2909 = vtanh.pop %v2905
  %v2910 = vtanh.pop %v2906
  %v2911 = vtanh.pop %v2907
  %v2912 = vmul.f32 %v2850, %v2908
  %v2913 = vmul.f32 %v2865, %v2909
  %v2914 = vmul.f32 %v2880, %v2910
  %v2915 = vmul.f32 %v2895, %v2911
  %s2916 = scalar_lea.vmem [#allocation2], 192
  %2917 = vst [vmem:[%s2916] sm:$0xff] %v2912
  %2918 = vst [vmem:[%s2916 + $0x8] sm:$0xff] %v2913
  %2919 = vst [vmem:[%s2916 + $0x10] sm:$0xff] %v2914
  %2920 = vst [vmem:[%s2916 + $0x18] sm:$0x3f] %v2915
  %s2921 = scalar_lea.vmem %s0, 896
  %v2922 = vld [vmem:[%s2921] sm:$0xff]
  %v2923 = vld [vmem:[%s2921 + $0x8] sm:$0xff]
  %v2924 = vld [vmem:[%s2921 + $0x10] sm:$0xff]
  %v2925 = vld [vmem:[%s2921 + $0x18] sm:$0xff]
  %v2926 = vld [vmem:[%s2921 + $0x20] sm:$0xff]
  %v2927 = vld [vmem:[%s2921 + $0x28] sm:$0xff]
  %v2928 = vld [vmem:[%s2921 + $0x30] sm:$0xff]
  %v2929 = vld [vmem:[%s2921 + $0x38] sm:$0xff]
  %v2930 = vld [vmem:[%s2921 + $0x40] sm:$0xff]
  %v2931 = vld [vmem:[%s2921 + $0x48] sm:$0xff]
  %v2932 = vld [vmem:[%s2921 + $0x50] sm:$0xff]
  %v2933 = vld [vmem:[%s2921 + $0x58] sm:$0xff]
  %v2934 = vld [vmem:[%s2921 + $0x60] sm:$0x3f]
  %v2935 = vld [vmem:[%s2921 + $0x68] sm:$0x3f]
  %v2936 = vld [vmem:[%s2921 + $0x70] sm:$0x3f]
  %v2937 = vld [vmem:[%s2921 + $0x78] sm:$0x3f]
  %2938 = vmatpush.msra.mxu0 %v77
  %2939 = vmatpush.msra.mxu0 %v73
  %2940 = vmatpush.msra.mxu0 %v69
  %2941 = vmatpush.msra.mxu0 %v65
  %2942 = vmatpush.msra.mxu0 %v61
  %2943 = vmatpush.msra.mxu0 %v57
  %2944 = vmatpush.msra.mxu0 %v53
  %2945 = vmatpush.msra.mxu0 %v49
  %2946 = vmatpush.msra.mxu0 %v45
  %2947 = vmatpush.msra.mxu0 %v41
  %2948 = vmatpush.msra.mxu0 %v37
  %2949 = vmatpush.msra.mxu0 %v33
  %2950 = vmatpush.msra.mxu0 %v29
  %2951 = vmatpush.msra.mxu0 %v25
  %2952 = vmatpush.msra.mxu0 %v21
  %2953 = vmatpush.msra.mxu0 %v17
  %2954 = vmatmul.f32.gmra.mxu0 %v2912
  %v2955 = vpop.f32.mrf.mxu0
  %v2956 = vadd.f32 0.0, %v2955
  %2957 = vmatmul.f32.gmra.mxu0 %v2913
  %v2958 = vpop.f32.mrf.mxu0
  %v2959 = vadd.f32 0.0, %v2958
  %2960 = vmatmul.f32.gmra.mxu0 %v2914
  %v2961 = vpop.f32.mrf.mxu0
  %v2962 = vadd.f32 0.0, %v2961
  %2963 = vmatmul.f32.gmra.mxu0 %v2915
  %v2964 = vpop.f32.mrf.mxu0
  %v2965 = vadd.f32 0.0, %v2964
  %2966 = vdwg.mxu0
  %2967 = vmatpush.msra.mxu0 %v78
  %2968 = vmatpush.msra.mxu0 %v74
  %2969 = vmatpush.msra.mxu0 %v70
  %2970 = vmatpush.msra.mxu0 %v66
  %2971 = vmatpush.msra.mxu0 %v62
  %2972 = vmatpush.msra.mxu0 %v58
  %2973 = vmatpush.msra.mxu0 %v54
  %2974 = vmatpush.msra.mxu0 %v50
  %2975 = vmatpush.msra.mxu0 %v46
  %2976 = vmatpush.msra.mxu0 %v42
  %2977 = vmatpush.msra.mxu0 %v38
  %2978 = vmatpush.msra.mxu0 %v34
  %2979 = vmatpush.msra.mxu0 %v30
  %2980 = vmatpush.msra.mxu0 %v26
  %2981 = vmatpush.msra.mxu0 %v22
  %2982 = vmatpush.msra.mxu0 %v18
  %2983 = vmatmul.f32.gmra.mxu0 %v2912
  %v2984 = vpop.f32.mrf.mxu0
  %v2985 = vadd.f32 0.0, %v2984
  %2986 = vmatmul.f32.gmra.mxu0 %v2913
  %v2987 = vpop.f32.mrf.mxu0
  %v2988 = vadd.f32 0.0, %v2987
  %2989 = vmatmul.f32.gmra.mxu0 %v2914
  %v2990 = vpop.f32.mrf.mxu0
  %v2991 = vadd.f32 0.0, %v2990
  %2992 = vmatmul.f32.gmra.mxu0 %v2915
  %v2993 = vpop.f32.mrf.mxu0
  %v2994 = vadd.f32 0.0, %v2993
  %2995 = vdwg.mxu0
  %2996 = vmatpush.msra.mxu0 %v79
  %2997 = vmatpush.msra.mxu0 %v75
  %2998 = vmatpush.msra.mxu0 %v71
  %2999 = vmatpush.msra.mxu0 %v67
  %3000 = vmatpush.msra.mxu0 %v63
  %3001 = vmatpush.msra.mxu0 %v59
  %3002 = vmatpush.msra.mxu0 %v55
  %3003 = vmatpush.msra.mxu0 %v51
  %3004 = vmatpush.msra.mxu0 %v47
  %3005 = vmatpush.msra.mxu0 %v43
  %3006 = vmatpush.msra.mxu0 %v39
  %3007 = vmatpush.msra.mxu0 %v35
  %3008 = vmatpush.msra.mxu0 %v31
  %3009 = vmatpush.msra.mxu0 %v27
  %3010 = vmatpush.msra.mxu0 %v23
  %3011 = vmatpush.msra.mxu0 %v19
  %3012 = vmatmul.f32.gmra.mxu0 %v2912
  %v3013 = vpop.f32.mrf.mxu0
  %v3014 = vadd.f32 0.0, %v3013
  %3015 = vmatmul.f32.gmra.mxu0 %v2913
  %v3016 = vpop.f32.mrf.mxu0
  %v3017 = vadd.f32 0.0, %v3016
  %3018 = vmatmul.f32.gmra.mxu0 %v2914
  %v3019 = vpop.f32.mrf.mxu0
  %v3020 = vadd.f32 0.0, %v3019
  %3021 = vmatmul.f32.gmra.mxu0 %v2915
  %v3022 = vpop.f32.mrf.mxu0
  %v3023 = vadd.f32 0.0, %v3022
  %3024 = vdwg.mxu0
  %3025 = vmatpush.msra.mxu0 %v80
  %3026 = vmatpush.msra.mxu0 %v76
  %3027 = vmatpush.msra.mxu0 %v72
  %3028 = vmatpush.msra.mxu0 %v68
  %3029 = vmatpush.msra.mxu0 %v64
  %3030 = vmatpush.msra.mxu0 %v60
  %3031 = vmatpush.msra.mxu0 %v56
  %3032 = vmatpush.msra.mxu0 %v52
  %3033 = vmatpush.msra.mxu0 %v48
  %3034 = vmatpush.msra.mxu0 %v44
  %3035 = vmatpush.msra.mxu0 %v40
  %3036 = vmatpush.msra.mxu0 %v36
  %3037 = vmatpush.msra.mxu0 %v32
  %3038 = vmatpush.msra.mxu0 %v28
  %3039 = vmatpush.msra.mxu0 %v24
  %3040 = vmatpush.msra.mxu0 %v20
  %3041 = vmatmul.f32.gmra.mxu0 %v2912
  %v3042 = vpop.f32.mrf.mxu0
  %v3043 = vadd.f32 0.0, %v3042
  %3044 = vmatmul.f32.gmra.mxu0 %v2913
  %v3045 = vpop.f32.mrf.mxu0
  %v3046 = vadd.f32 0.0, %v3045
  %3047 = vmatmul.f32.gmra.mxu0 %v2914
  %v3048 = vpop.f32.mrf.mxu0
  %v3049 = vadd.f32 0.0, %v3048
  %3050 = vmatmul.f32.gmra.mxu0 %v2915
  %v3051 = vpop.f32.mrf.mxu0
  %v3052 = vadd.f32 0.0, %v3051
  %3053 = vdwg.mxu0
  %v3054 = vadd.f32 %v2922, %v2956
  %v3055 = vadd.f32 %v2923, %v2985
  %v3056 = vadd.f32 %v2924, %v3014
  %v3057 = vadd.f32 %v2925, %v3043
  %v3058 = vadd.f32 %v2926, %v2959
  %v3059 = vadd.f32 %v2927, %v2988
  %v3060 = vadd.f32 %v2928, %v3017
  %v3061 = vadd.f32 %v2929, %v3046
  %v3062 = vadd.f32 %v2930, %v2962
  %v3063 = vadd.f32 %v2931, %v2991
  %v3064 = vadd.f32 %v2932, %v3020
  %v3065 = vadd.f32 %v2933, %v3049
  %v3066 = vadd.f32 %v2934, %v2965
  %v3067 = vadd.f32 %v2935, %v2994
  %v3068 = vadd.f32 %v2936, %v3023
  %v3069 = vadd.f32 %v2937, %v3052
  %v3070 = vxor.u32 %v3054, 2147483648
  %v3071 = vxor.u32 %v3058, 2147483648
  %v3072 = vxor.u32 %v3062, 2147483648
  %v3073 = vxor.u32 %v3066, 2147483648
  %v3074 = vmul.f32 %v3070, 1.442695
  %v3075 = vpow.pop %v3074
  %v3076 = vmul.f32 %v3071, 1.442695
  %v3077 = vpow.pop %v3076
  %v3078 = vmul.f32 %v3072, 1.442695
  %v3079 = vpow.pop %v3078
  %v3080 = vmul.f32 %v3073, 1.442695
  %v3081 = vpow.pop %v3080
  %v3082 = vadd.f32 %v3075, 1.0
  %v3083 = vadd.f32 %v3077, 1.0
  %v3084 = vadd.f32 %v3079, 1.0
  %v3085 = vadd.f32 %v3081, 1.0
  %v3086 = vrcp.pop %v3082
  %v3087 = vmul.f32 %v3082, %v3086
  %v3088 = vsub.f32 1.0, %v3087
  %v3089 = vmul.f32 %v3086, %v3088
  %v3090 = vadd.f32 %v3086, %v3089
  %vm3091 = vweird.f32 %v3082
  %vm3092 = vweird.f32 %v3086
  %vm3093 = vmor %vm3091, %vm3092
  %v3094 = vsel %vm3093, %v3086, %v3090
  %v3095 = vand.u32 2147483647, %v3082
  %vm3096 = vcmp.eq.f32.partialorder %v3095, 8.507059e+37
  %v3097 = vand.u32 %v3082, 2147483648
  %v3098 = vor.u32 1.1754944e-38, %v3097
  %v3099 = vsel %vm3096, %v3098, %v3094
  %v3100 = vmul.f32 1.0, %v3099
  %v3101 = vrcp.pop %v3083
  %v3102 = vmul.f32 %v3083, %v3101
  %v3103 = vsub.f32 1.0, %v3102
  %v3104 = vmul.f32 %v3101, %v3103
  %v3105 = vadd.f32 %v3101, %v3104
  %vm3106 = vweird.f32 %v3083
  %vm3107 = vweird.f32 %v3101
  %vm3108 = vmor %vm3106, %vm3107
  %v3109 = vsel %vm3108, %v3101, %v3105
  %v3110 = vand.u32 2147483647, %v3083
  %vm3111 = vcmp.eq.f32.partialorder %v3110, 8.507059e+37
  %v3112 = vand.u32 %v3083, 2147483648
  %v3113 = vor.u32 1.1754944e-38, %v3112
  %v3114 = vsel %vm3111, %v3113, %v3109
  %v3115 = vmul.f32 1.0, %v3114
  %v3116 = vrcp.pop %v3084
  %v3117 = vmul.f32 %v3084, %v3116
  %v3118 = vsub.f32 1.0, %v3117
  %v3119 = vmul.f32 %v3116, %v3118
  %v3120 = vadd.f32 %v3116, %v3119
  %vm3121 = vweird.f32 %v3084
  %vm3122 = vweird.f32 %v3116
  %vm3123 = vmor %vm3121, %vm3122
  %v3124 = vsel %vm3123, %v3116, %v3120
  %v3125 = vand.u32 2147483647, %v3084
  %vm3126 = vcmp.eq.f32.partialorder %v3125, 8.507059e+37
  %v3127 = vand.u32 %v3084, 2147483648
  %v3128 = vor.u32 1.1754944e-38, %v3127
  %v3129 = vsel %vm3126, %v3128, %v3124
  %v3130 = vmul.f32 1.0, %v3129
  %v3131 = vrcp.pop %v3085
  %v3132 = vmul.f32 %v3085, %v3131
  %v3133 = vsub.f32 1.0, %v3132
  %v3134 = vmul.f32 %v3131, %v3133
  %v3135 = vadd.f32 %v3131, %v3134
  %vm3136 = vweird.f32 %v3085
  %vm3137 = vweird.f32 %v3131
  %vm3138 = vmor %vm3136, %vm3137
  %v3139 = vsel %vm3138, %v3131, %v3135
  %v3140 = vand.u32 2147483647, %v3085
  %vm3141 = vcmp.eq.f32.partialorder %v3140, 8.507059e+37
  %v3142 = vand.u32 %v3085, 2147483648
  %v3143 = vor.u32 1.1754944e-38, %v3142
  %v3144 = vsel %vm3141, %v3143, %v3139
  %v3145 = vmul.f32 1.0, %v3144
  %v3146 = vxor.u32 %v3055, 2147483648
  %v3147 = vxor.u32 %v3059, 2147483648
  %v3148 = vxor.u32 %v3063, 2147483648
  %v3149 = vxor.u32 %v3067, 2147483648
  %v3150 = vmul.f32 %v3146, 1.442695
  %v3151 = vpow.pop %v3150
  %v3152 = vmul.f32 %v3147, 1.442695
  %v3153 = vpow.pop %v3152
  %v3154 = vmul.f32 %v3148, 1.442695
  %v3155 = vpow.pop %v3154
  %v3156 = vmul.f32 %v3149, 1.442695
  %v3157 = vpow.pop %v3156
  %v3158 = vadd.f32 %v3151, 1.0
  %v3159 = vadd.f32 %v3153, 1.0
  %v3160 = vadd.f32 %v3155, 1.0
  %v3161 = vadd.f32 %v3157, 1.0
  %v3162 = vrcp.pop %v3158
  %v3163 = vmul.f32 %v3158, %v3162
  %v3164 = vsub.f32 1.0, %v3163
  %v3165 = vmul.f32 %v3162, %v3164
  %v3166 = vadd.f32 %v3162, %v3165
  %vm3167 = vweird.f32 %v3158
  %vm3168 = vweird.f32 %v3162
  %vm3169 = vmor %vm3167, %vm3168
  %v3170 = vsel %vm3169, %v3162, %v3166
  %v3171 = vand.u32 2147483647, %v3158
  %vm3172 = vcmp.eq.f32.partialorder %v3171, 8.507059e+37
  %v3173 = vand.u32 %v3158, 2147483648
  %v3174 = vor.u32 1.1754944e-38, %v3173
  %v3175 = vsel %vm3172, %v3174, %v3170
  %v3176 = vmul.f32 1.0, %v3175
  %v3177 = vrcp.pop %v3159
  %v3178 = vmul.f32 %v3159, %v3177
  %v3179 = vsub.f32 1.0, %v3178
  %v3180 = vmul.f32 %v3177, %v3179
  %v3181 = vadd.f32 %v3177, %v3180
  %vm3182 = vweird.f32 %v3159
  %vm3183 = vweird.f32 %v3177
  %vm3184 = vmor %vm3182, %vm3183
  %v3185 = vsel %vm3184, %v3177, %v3181
  %v3186 = vand.u32 2147483647, %v3159
  %vm3187 = vcmp.eq.f32.partialorder %v3186, 8.507059e+37
  %v3188 = vand.u32 %v3159, 2147483648
  %v3189 = vor.u32 1.1754944e-38, %v3188
  %v3190 = vsel %vm3187, %v3189, %v3185
  %v3191 = vmul.f32 1.0, %v3190
  %v3192 = vrcp.pop %v3160
  %v3193 = vmul.f32 %v3160, %v3192
  %v3194 = vsub.f32 1.0, %v3193
  %v3195 = vmul.f32 %v3192, %v3194
  %v3196 = vadd.f32 %v3192, %v3195
  %vm3197 = vweird.f32 %v3160
  %vm3198 = vweird.f32 %v3192
  %vm3199 = vmor %vm3197, %vm3198
  %v3200 = vsel %vm3199, %v3192, %v3196
  %v3201 = vand.u32 2147483647, %v3160
  %vm3202 = vcmp.eq.f32.partialorder %v3201, 8.507059e+37
  %v3203 = vand.u32 %v3160, 2147483648
  %v3204 = vor.u32 1.1754944e-38, %v3203
  %v3205 = vsel %vm3202, %v3204, %v3200
  %v3206 = vmul.f32 1.0, %v3205
  %v3207 = vrcp.pop %v3161
  %v3208 = vmul.f32 %v3161, %v3207
  %v3209 = vsub.f32 1.0, %v3208
  %v3210 = vmul.f32 %v3207, %v3209
  %v3211 = vadd.f32 %v3207, %v3210
  %vm3212 = vweird.f32 %v3161
  %vm3213 = vweird.f32 %v3207
  %vm3214 = vmor %vm3212, %vm3213
  %v3215 = vsel %vm3214, %v3207, %v3211
  %v3216 = vand.u32 2147483647, %v3161
  %vm3217 = vcmp.eq.f32.partialorder %v3216, 8.507059e+37
  %v3218 = vand.u32 %v3161, 2147483648
  %v3219 = vor.u32 1.1754944e-38, %v3218
  %v3220 = vsel %vm3217, %v3219, %v3215
  %v3221 = vmul.f32 1.0, %v3220
  %v3222 = vtanh.pop %v3056
  %v3223 = vtanh.pop %v3060
  %v3224 = vtanh.pop %v3064
  %v3225 = vtanh.pop %v3068
  %v3226 = vxor.u32 %v3057, 2147483648
  %v3227 = vxor.u32 %v3061, 2147483648
  %v3228 = vxor.u32 %v3065, 2147483648
  %v3229 = vxor.u32 %v3069, 2147483648
  %v3230 = vmul.f32 %v3226, 1.442695
  %v3231 = vpow.pop %v3230
  %v3232 = vmul.f32 %v3227, 1.442695
  %v3233 = vpow.pop %v3232
  %v3234 = vmul.f32 %v3228, 1.442695
  %v3235 = vpow.pop %v3234
  %v3236 = vmul.f32 %v3229, 1.442695
  %v3237 = vpow.pop %v3236
  %v3238 = vadd.f32 %v3231, 1.0
  %v3239 = vadd.f32 %v3233, 1.0
  %v3240 = vadd.f32 %v3235, 1.0
  %v3241 = vadd.f32 %v3237, 1.0
  %v3242 = vrcp.pop %v3238
  %v3243 = vmul.f32 %v3238, %v3242
  %v3244 = vsub.f32 1.0, %v3243
  %v3245 = vmul.f32 %v3242, %v3244
  %v3246 = vadd.f32 %v3242, %v3245
  %vm3247 = vweird.f32 %v3238
  %vm3248 = vweird.f32 %v3242
  %vm3249 = vmor %vm3247, %vm3248
  %v3250 = vsel %vm3249, %v3242, %v3246
  %v3251 = vand.u32 2147483647, %v3238
  %vm3252 = vcmp.eq.f32.partialorder %v3251, 8.507059e+37
  %v3253 = vand.u32 %v3238, 2147483648
  %v3254 = vor.u32 1.1754944e-38, %v3253
  %v3255 = vsel %vm3252, %v3254, %v3250
  %v3256 = vmul.f32 1.0, %v3255
  %v3257 = vrcp.pop %v3239
  %v3258 = vmul.f32 %v3239, %v3257
  %v3259 = vsub.f32 1.0, %v3258
  %v3260 = vmul.f32 %v3257, %v3259
  %v3261 = vadd.f32 %v3257, %v3260
  %vm3262 = vweird.f32 %v3239
  %vm3263 = vweird.f32 %v3257
  %vm3264 = vmor %vm3262, %vm3263
  %v3265 = vsel %vm3264, %v3257, %v3261
  %v3266 = vand.u32 2147483647, %v3239
  %vm3267 = vcmp.eq.f32.partialorder %v3266, 8.507059e+37
  %v3268 = vand.u32 %v3239, 2147483648
  %v3269 = vor.u32 1.1754944e-38, %v3268
  %v3270 = vsel %vm3267, %v3269, %v3265
  %v3271 = vmul.f32 1.0, %v3270
  %v3272 = vrcp.pop %v3240
  %v3273 = vmul.f32 %v3240, %v3272
  %v3274 = vsub.f32 1.0, %v3273
  %v3275 = vmul.f32 %v3272, %v3274
  %v3276 = vadd.f32 %v3272, %v3275
  %vm3277 = vweird.f32 %v3240
  %vm3278 = vweird.f32 %v3272
  %vm3279 = vmor %vm3277, %vm3278
  %v3280 = vsel %vm3279, %v3272, %v3276
  %v3281 = vand.u32 2147483647, %v3240
  %vm3282 = vcmp.eq.f32.partialorder %v3281, 8.507059e+37
  %v3283 = vand.u32 %v3240, 2147483648
  %v3284 = vor.u32 1.1754944e-38, %v3283
  %v3285 = vsel %vm3282, %v3284, %v3280
  %v3286 = vmul.f32 1.0, %v3285
  %v3287 = vrcp.pop %v3241
  %v3288 = vmul.f32 %v3241, %v3287
  %v3289 = vsub.f32 1.0, %v3288
  %v3290 = vmul.f32 %v3287, %v3289
  %v3291 = vadd.f32 %v3287, %v3290
  %vm3292 = vweird.f32 %v3241
  %vm3293 = vweird.f32 %v3287
  %vm3294 = vmor %vm3292, %vm3293
  %v3295 = vsel %vm3294, %v3287, %v3291
  %v3296 = vand.u32 2147483647, %v3241
  %vm3297 = vcmp.eq.f32.partialorder %v3296, 8.507059e+37
  %v3298 = vand.u32 %v3241, 2147483648
  %v3299 = vor.u32 1.1754944e-38, %v3298
  %v3300 = vsel %vm3297, %v3299, %v3295
  %v3301 = vmul.f32 1.0, %v3300
  %v3302 = vmul.f32 %v3176, %v2904
  %v3303 = vmul.f32 %v3191, %v2905
  %v3304 = vmul.f32 %v3206, %v2906
  %v3305 = vmul.f32 %v3221, %v2907
  %v3306 = vmul.f32 %v3100, %v3222
  %v3307 = vmul.f32 %v3115, %v3223
  %v3308 = vmul.f32 %v3130, %v3224
  %v3309 = vmul.f32 %v3145, %v3225
  %v3310 = vadd.f32 %v3302, %v3306
  %v3311 = vadd.f32 %v3303, %v3307
  %v3312 = vadd.f32 %v3304, %v3308
  %v3313 = vadd.f32 %v3305, %v3309
  %v3314 = vtanh.pop %v3310
  %v3315 = vtanh.pop %v3311
  %v3316 = vtanh.pop %v3312
  %v3317 = vtanh.pop %v3313
  %v3318 = vmul.f32 %v3256, %v3314
  %v3319 = vmul.f32 %v3271, %v3315
  %v3320 = vmul.f32 %v3286, %v3316
  %v3321 = vmul.f32 %v3301, %v3317
  %s3322 = scalar_lea.vmem [#allocation2], 224
  %3323 = vst [vmem:[%s3322] sm:$0xff] %v3318
  %3324 = vst [vmem:[%s3322 + $0x8] sm:$0xff] %v3319
  %3325 = vst [vmem:[%s3322 + $0x10] sm:$0xff] %v3320
  %3326 = vst [vmem:[%s3322 + $0x18] sm:$0x3f] %v3321
  %v3327 = vld [vmem:[#allocation2] sm:$0xff]
  %v3328 = vld [vmem:[#allocation2 + $0x8] sm:$0xff]
  %v3329 = vld [vmem:[#allocation2 + $0x10] sm:$0xff]
  %v3330 = vld [vmem:[#allocation2 + $0x18] sm:$0x3f]
  %v3331 = vld [vmem:[#allocation2 + $0x20] sm:$0xff]
  %v3332 = vld [vmem:[#allocation2 + $0x28] sm:$0xff]
  %v3333 = vld [vmem:[#allocation2 + $0x30] sm:$0xff]
  %v3334 = vld [vmem:[#allocation2 + $0x38] sm:$0x3f]
  %v3335 = vld [vmem:[#allocation2 + $0x40] sm:$0xff]
  %v3336 = vld [vmem:[#allocation2 + $0x48] sm:$0xff]
  %v3337 = vld [vmem:[#allocation2 + $0x50] sm:$0xff]
  %v3338 = vld [vmem:[#allocation2 + $0x58] sm:$0x3f]
  %v3339 = vld [vmem:[#allocation2 + $0x60] sm:$0xff]
  %v3340 = vld [vmem:[#allocation2 + $0x68] sm:$0xff]
  %v3341 = vld [vmem:[#allocation2 + $0x70] sm:$0xff]
  %v3342 = vld [vmem:[#allocation2 + $0x78] sm:$0x3f]
  %v3343 = vld [vmem:[#allocation2 + $0x80] sm:$0xff]
  %v3344 = vld [vmem:[#allocation2 + $0x88] sm:$0xff]
  %v3345 = vld [vmem:[#allocation2 + $0x90] sm:$0xff]
  %v3346 = vld [vmem:[#allocation2 + $0x98] sm:$0x3f]
  %v3347 = vld [vmem:[#allocation2 + $0xa0] sm:$0xff]
  %v3348 = vld [vmem:[#allocation2 + $0xa8] sm:$0xff]
  %v3349 = vld [vmem:[#allocation2 + $0xb0] sm:$0xff]
  %v3350 = vld [vmem:[#allocation2 + $0xb8] sm:$0x3f]
  %v3351 = vld [vmem:[#allocation2 + $0xc0] sm:$0xff]
  %v3352 = vld [vmem:[#allocation2 + $0xc8] sm:$0xff]
  %v3353 = vld [vmem:[#allocation2 + $0xd0] sm:$0xff]
  %v3354 = vld [vmem:[#allocation2 + $0xd8] sm:$0x3f]
  %v3355 = vld [vmem:[#allocation2 + $0xe0] sm:$0xff]
  %v3356 = vld [vmem:[#allocation2 + $0xe8] sm:$0xff]
  %v3357 = vld [vmem:[#allocation2 + $0xf0] sm:$0xff]
  %v3358 = vld [vmem:[#allocation2 + $0xf8] sm:$0x3f]
  %v3359 = vlaneseq
  %v3360 = vand.u32 %v3359, 127
  %v3361 = vld [vmem:[%s2] sm:$0xff]
  %v3362 = vld [vmem:[%s2 + $0x8] sm:$0xff]
  %v3363 = vld [vmem:[%s2 + $0x10] sm:$0xff]
  %v3364 = vld [vmem:[%s2 + $0x18] sm:$0x3f]
  %v3365 = vmul.f32 %v3327, %v3361
  %v3366 = vmul.f32 %v3328, %v3362
  %v3367 = vmul.f32 %v3329, %v3363
  %v3368 = vmul.f32 %v3330, %v3364
  %v3369 = vmul.f32 %v3331, %v3361
  %v3370 = vmul.f32 %v3332, %v3362
  %v3371 = vmul.f32 %v3333, %v3363
  %v3372 = vmul.f32 %v3334, %v3364
  %v3373 = vmul.f32 %v3335, %v3361
  %v3374 = vmul.f32 %v3336, %v3362
  %v3375 = vmul.f32 %v3337, %v3363
  %v3376 = vmul.f32 %v3338, %v3364
  %v3377 = vmul.f32 %v3339, %v3361
  %v3378 = vmul.f32 %v3340, %v3362
  %v3379 = vmul.f32 %v3341, %v3363
  %v3380 = vmul.f32 %v3342, %v3364
  %v3381 = vmul.f32 %v3343, %v3361
  %v3382 = vmul.f32 %v3344, %v3362
  %v3383 = vmul.f32 %v3345, %v3363
  %v3384 = vmul.f32 %v3346, %v3364
  %v3385 = vmul.f32 %v3347, %v3361
  %v3386 = vmul.f32 %v3348, %v3362
  %v3387 = vmul.f32 %v3349, %v3363
  %v3388 = vmul.f32 %v3350, %v3364
  %v3389 = vmul.f32 %v3351, %v3361
  %v3390 = vmul.f32 %v3352, %v3362
  %v3391 = vmul.f32 %v3353, %v3363
  %v3392 = vmul.f32 %v3354, %v3364
  %v3393 = vmul.f32 %v3355, %v3361
  %v3394 = vmul.f32 %v3356, %v3362
  %v3395 = vmul.f32 %v3357, %v3363
  %v3396 = vmul.f32 %v3358, %v3364
  %3397 = vadd.xlane.f32.xlu0 %v3365
  %v3398 = vpop.xlane.xlu0 %3397
  %3399 = vadd.xlane.f32.xlu0 %v3366
  %v3400 = vpop.xlane.xlu0 %3399
  %3401 = vadd.xlane.f32.xlu0 %v3367
  %v3402 = vpop.xlane.xlu0 %3401
  %vm3403 = vcmask 1045504
  %v3404 = vsel %vm3403, %v3368, 0.0
  %3405 = vadd.xlane.f32.xlu0 %v3404
  %v3406 = vpop.xlane.xlu0 %3405
  %3407 = vadd.xlane.f32.xlu0 %v3369
  %v3408 = vpop.xlane.xlu0 %3407
  %3409 = vadd.xlane.f32.xlu0 %v3370
  %v3410 = vpop.xlane.xlu0 %3409
  %3411 = vadd.xlane.f32.xlu0 %v3371
  %v3412 = vpop.xlane.xlu0 %3411
  %v3413 = vsel %vm3403, %v3372, 0.0
  %3414 = vadd.xlane.f32.xlu0 %v3413
  %v3415 = vpop.xlane.xlu0 %3414
  %3416 = vadd.xlane.f32.xlu0 %v3373
  %v3417 = vpop.xlane.xlu0 %3416
  %3418 = vadd.xlane.f32.xlu0 %v3374
  %v3419 = vpop.xlane.xlu0 %3418
  %3420 = vadd.xlane.f32.xlu0 %v3375
  %v3421 = vpop.xlane.xlu0 %3420
  %v3422 = vsel %vm3403, %v3376, 0.0
  %3423 = vadd.xlane.f32.xlu0 %v3422
  %v3424 = vpop.xlane.xlu0 %3423
  %3425 = vadd.xlane.f32.xlu0 %v3377
  %v3426 = vpop.xlane.xlu0 %3425
  %3427 = vadd.xlane.f32.xlu0 %v3378
  %v3428 = vpop.xlane.xlu0 %3427
  %3429 = vadd.xlane.f32.xlu0 %v3379
  %v3430 = vpop.xlane.xlu0 %3429
  %v3431 = vsel %vm3403, %v3380, 0.0
  %3432 = vadd.xlane.f32.xlu0 %v3431
  %v3433 = vpop.xlane.xlu0 %3432
  %3434 = vadd.xlane.f32.xlu0 %v3381
  %v3435 = vpop.xlane.xlu0 %3434
  %3436 = vadd.xlane.f32.xlu0 %v3382
  %v3437 = vpop.xlane.xlu0 %3436
  %3438 = vadd.xlane.f32.xlu0 %v3383
  %v3439 = vpop.xlane.xlu0 %3438
  %v3440 = vsel %vm3403, %v3384, 0.0
  %3441 = vadd.xlane.f32.xlu0 %v3440
  %v3442 = vpop.xlane.xlu0 %3441
  %3443 = vadd.xlane.f32.xlu0 %v3385
  %v3444 = vpop.xlane.xlu0 %3443
  %3445 = vadd.xlane.f32.xlu0 %v3386
  %v3446 = vpop.xlane.xlu0 %3445
  %3447 = vadd.xlane.f32.xlu0 %v3387
  %v3448 = vpop.xlane.xlu0 %3447
  %v3449 = vsel %vm3403, %v3388, 0.0
  %3450 = vadd.xlane.f32.xlu0 %v3449
  %v3451 = vpop.xlane.xlu0 %3450
  %3452 = vadd.xlane.f32.xlu0 %v3389
  %v3453 = vpop.xlane.xlu0 %3452
  %3454 = vadd.xlane.f32.xlu0 %v3390
  %v3455 = vpop.xlane.xlu0 %3454
  %3456 = vadd.xlane.f32.xlu0 %v3391
  %v3457 = vpop.xlane.xlu0 %3456
  %v3458 = vsel %vm3403, %v3392, 0.0
  %3459 = vadd.xlane.f32.xlu0 %v3458
  %v3460 = vpop.xlane.xlu0 %3459
  %3461 = vadd.xlane.f32.xlu0 %v3393
  %v3462 = vpop.xlane.xlu0 %3461
  %3463 = vadd.xlane.f32.xlu0 %v3394
  %v3464 = vpop.xlane.xlu0 %3463
  %3465 = vadd.xlane.f32.xlu0 %v3395
  %v3466 = vpop.xlane.xlu0 %3465
  %v3467 = vsel %vm3403, %v3396, 0.0
  %3468 = vadd.xlane.f32.xlu0 %v3467
  %v3469 = vpop.xlane.xlu0 %3468
  %v3470 = vadd.f32 %v3398, %v3400
  %v3471 = vadd.f32 %v3470, %v3402
  %v3472 = vsel %vm3403, %v3406, 0.0
  %v3473 = vadd.f32 %v3471, %v3472
  %v3474 = vrot.slane %v3473, 4
  %v3475 = vadd.f32 %v3473, %v3474
  %v3476 = vrot.slane %v3475, 2
  %v3477 = vadd.f32 %v3475, %v3476
  %v3478 = vrot.slane %v3477, 1
  %v3479 = vadd.f32 %v3477, %v3478
  %v3480 = vadd.f32 %v3408, %v3410
  %v3481 = vadd.f32 %v3480, %v3412
  %v3482 = vsel %vm3403, %v3415, 0.0
  %v3483 = vadd.f32 %v3481, %v3482
  %v3484 = vrot.slane %v3483, 4
  %v3485 = vadd.f32 %v3483, %v3484
  %v3486 = vrot.slane %v3485, 2
  %v3487 = vadd.f32 %v3485, %v3486
  %v3488 = vrot.slane %v3487, 1
  %v3489 = vadd.f32 %v3487, %v3488
  %v3490 = vadd.f32 %v3417, %v3419
  %v3491 = vadd.f32 %v3490, %v3421
  %v3492 = vsel %vm3403, %v3424, 0.0
  %v3493 = vadd.f32 %v3491, %v3492
  %v3494 = vrot.slane %v3493, 4
  %v3495 = vadd.f32 %v3493, %v3494
  %v3496 = vrot.slane %v3495, 2
  %v3497 = vadd.f32 %v3495, %v3496
  %v3498 = vrot.slane %v3497, 1
  %v3499 = vadd.f32 %v3497, %v3498
  %v3500 = vadd.f32 %v3426, %v3428
  %v3501 = vadd.f32 %v3500, %v3430
  %v3502 = vsel %vm3403, %v3433, 0.0
  %v3503 = vadd.f32 %v3501, %v3502
  %v3504 = vrot.slane %v3503, 4
  %v3505 = vadd.f32 %v3503, %v3504
  %v3506 = vrot.slane %v3505, 2
  %v3507 = vadd.f32 %v3505, %v3506
  %v3508 = vrot.slane %v3507, 1
  %v3509 = vadd.f32 %v3507, %v3508
  %v3510 = vadd.f32 %v3435, %v3437
  %v3511 = vadd.f32 %v3510, %v3439
  %v3512 = vsel %vm3403, %v3442, 0.0
  %v3513 = vadd.f32 %v3511, %v3512
  %v3514 = vrot.slane %v3513, 4
  %v3515 = vadd.f32 %v3513, %v3514
  %v3516 = vrot.slane %v3515, 2
  %v3517 = vadd.f32 %v3515, %v3516
  %v3518 = vrot.slane %v3517, 1
  %v3519 = vadd.f32 %v3517, %v3518
  %v3520 = vadd.f32 %v3444, %v3446
  %v3521 = vadd.f32 %v3520, %v3448
  %v3522 = vsel %vm3403, %v3451, 0.0
  %v3523 = vadd.f32 %v3521, %v3522
  %v3524 = vrot.slane %v3523, 4
  %v3525 = vadd.f32 %v3523, %v3524
  %v3526 = vrot.slane %v3525, 2
  %v3527 = vadd.f32 %v3525, %v3526
  %v3528 = vrot.slane %v3527, 1
  %v3529 = vadd.f32 %v3527, %v3528
  %v3530 = vadd.f32 %v3453, %v3455
  %v3531 = vadd.f32 %v3530, %v3457
  %v3532 = vsel %vm3403, %v3460, 0.0
  %v3533 = vadd.f32 %v3531, %v3532
  %v3534 = vrot.slane %v3533, 4
  %v3535 = vadd.f32 %v3533, %v3534
  %v3536 = vrot.slane %v3535, 2
  %v3537 = vadd.f32 %v3535, %v3536
  %v3538 = vrot.slane %v3537, 1
  %v3539 = vadd.f32 %v3537, %v3538
  %v3540 = vadd.f32 %v3462, %v3464
  %v3541 = vadd.f32 %v3540, %v3466
  %v3542 = vsel %vm3403, %v3469, 0.0
  %v3543 = vadd.f32 %v3541, %v3542
  %v3544 = vrot.slane %v3543, 4
  %v3545 = vadd.f32 %v3543, %v3544
  %v3546 = vrot.slane %v3545, 2
  %v3547 = vadd.f32 %v3545, %v3546
  %v3548 = vrot.slane %v3547, 1
  %v3549 = vadd.f32 %v3547, %v3548
  %vm3550 = vcmp.eq.s32.totalorder %v3360, 0
  %v3551 = vsel %vm3550, 1, 0
  %v3552 = vcvt.s32.f32 %v3551
  %v3553 = vmul.f32 %v3479, %v3552
  %v3554 = vmul.f32 %v3489, %v3552
  %v3555 = vmul.f32 %v3499, %v3552
  %v3556 = vmul.f32 %v3509, %v3552
  %v3557 = vmul.f32 %v3519, %v3552
  %v3558 = vmul.f32 %v3529, %v3552
  %v3559 = vmul.f32 %v3539, %v3552
  %v3560 = vmul.f32 %v3549, %v3552
  %v3561 = vadd.f32 %v3553, 0.0
  %v3562 = vadd.f32 %v3554, 0.0
  %v3563 = vadd.f32 %v3555, 0.0
  %v3564 = vadd.f32 %v3556, 0.0
  %v3565 = vadd.f32 %v3557, 0.0
  %v3566 = vadd.f32 %v3558, 0.0
  %v3567 = vadd.f32 %v3559, 0.0
  %v3568 = vadd.f32 %v3560, 0.0
  %s3569 = scalar_lea.vmem %s2, 32
  %v3570 = vld [vmem:[%s3569] sm:$0xff]
  %v3571 = vld [vmem:[%s3569 + $0x8] sm:$0xff]
  %v3572 = vld [vmem:[%s3569 + $0x10] sm:$0xff]
  %v3573 = vld [vmem:[%s3569 + $0x18] sm:$0x3f]
  %v3574 = vmul.f32 %v3327, %v3570
  %v3575 = vmul.f32 %v3328, %v3571
  %v3576 = vmul.f32 %v3329, %v3572
  %v3577 = vmul.f32 %v3330, %v3573
  %v3578 = vmul.f32 %v3331, %v3570
  %v3579 = vmul.f32 %v3332, %v3571
  %v3580 = vmul.f32 %v3333, %v3572
  %v3581 = vmul.f32 %v3334, %v3573
  %v3582 = vmul.f32 %v3335, %v3570
  %v3583 = vmul.f32 %v3336, %v3571
  %v3584 = vmul.f32 %v3337, %v3572
  %v3585 = vmul.f32 %v3338, %v3573
  %v3586 = vmul.f32 %v3339, %v3570
  %v3587 = vmul.f32 %v3340, %v3571
  %v3588 = vmul.f32 %v3341, %v3572
  %v3589 = vmul.f32 %v3342, %v3573
  %v3590 = vmul.f32 %v3343, %v3570
  %v3591 = vmul.f32 %v3344, %v3571
  %v3592 = vmul.f32 %v3345, %v3572
  %v3593 = vmul.f32 %v3346, %v3573
  %v3594 = vmul.f32 %v3347, %v3570
  %v3595 = vmul.f32 %v3348, %v3571
  %v3596 = vmul.f32 %v3349, %v3572
  %v3597 = vmul.f32 %v3350, %v3573
  %v3598 = vmul.f32 %v3351, %v3570
  %v3599 = vmul.f32 %v3352, %v3571
  %v3600 = vmul.f32 %v3353, %v3572
  %v3601 = vmul.f32 %v3354, %v3573
  %v3602 = vmul.f32 %v3355, %v3570
  %v3603 = vmul.f32 %v3356, %v3571
  %v3604 = vmul.f32 %v3357, %v3572
  %v3605 = vmul.f32 %v3358, %v3573
  %3606 = vadd.xlane.f32.xlu0 %v3574
  %v3607 = vpop.xlane.xlu0 %3606
  %3608 = vadd.xlane.f32.xlu0 %v3575
  %v3609 = vpop.xlane.xlu0 %3608
  %3610 = vadd.xlane.f32.xlu0 %v3576
  %v3611 = vpop.xlane.xlu0 %3610
  %v3612 = vsel %vm3403, %v3577, 0.0
  %3613 = vadd.xlane.f32.xlu0 %v3612
  %v3614 = vpop.xlane.xlu0 %3613
  %3615 = vadd.xlane.f32.xlu0 %v3578
  %v3616 = vpop.xlane.xlu0 %3615
  %3617 = vadd.xlane.f32.xlu0 %v3579
  %v3618 = vpop.xlane.xlu0 %3617
  %3619 = vadd.xlane.f32.xlu0 %v3580
  %v3620 = vpop.xlane.xlu0 %3619
  %v3621 = vsel %vm3403, %v3581, 0.0
  %3622 = vadd.xlane.f32.xlu0 %v3621
  %v3623 = vpop.xlane.xlu0 %3622
  %3624 = vadd.xlane.f32.xlu0 %v3582
  %v3625 = vpop.xlane.xlu0 %3624
  %3626 = vadd.xlane.f32.xlu0 %v3583
  %v3627 = vpop.xlane.xlu0 %3626
  %3628 = vadd.xlane.f32.xlu0 %v3584
  %v3629 = vpop.xlane.xlu0 %3628
  %v3630 = vsel %vm3403, %v3585, 0.0
  %3631 = vadd.xlane.f32.xlu0 %v3630
  %v3632 = vpop.xlane.xlu0 %3631
  %3633 = vadd.xlane.f32.xlu0 %v3586
  %v3634 = vpop.xlane.xlu0 %3633
  %3635 = vadd.xlane.f32.xlu0 %v3587
  %v3636 = vpop.xlane.xlu0 %3635
  %3637 = vadd.xlane.f32.xlu0 %v3588
  %v3638 = vpop.xlane.xlu0 %3637
  %v3639 = vsel %vm3403, %v3589, 0.0
  %3640 = vadd.xlane.f32.xlu0 %v3639
  %v3641 = vpop.xlane.xlu0 %3640
  %3642 = vadd.xlane.f32.xlu0 %v3590
  %v3643 = vpop.xlane.xlu0 %3642
  %3644 = vadd.xlane.f32.xlu0 %v3591
  %v3645 = vpop.xlane.xlu0 %3644
  %3646 = vadd.xlane.f32.xlu0 %v3592
  %v3647 = vpop.xlane.xlu0 %3646
  %v3648 = vsel %vm3403, %v3593, 0.0
  %3649 = vadd.xlane.f32.xlu0 %v3648
  %v3650 = vpop.xlane.xlu0 %3649
  %3651 = vadd.xlane.f32.xlu0 %v3594
  %v3652 = vpop.xlane.xlu0 %3651
  %3653 = vadd.xlane.f32.xlu0 %v3595
  %v3654 = vpop.xlane.xlu0 %3653
  %3655 = vadd.xlane.f32.xlu0 %v3596
  %v3656 = vpop.xlane.xlu0 %3655
  %v3657 = vsel %vm3403, %v3597, 0.0
  %3658 = vadd.xlane.f32.xlu0 %v3657
  %v3659 = vpop.xlane.xlu0 %3658
  %3660 = vadd.xlane.f32.xlu0 %v3598
  %v3661 = vpop.xlane.xlu0 %3660
  %3662 = vadd.xlane.f32.xlu0 %v3599
  %v3663 = vpop.xlane.xlu0 %3662
  %3664 = vadd.xlane.f32.xlu0 %v3600
  %v3665 = vpop.xlane.xlu0 %3664
  %v3666 = vsel %vm3403, %v3601, 0.0
  %3667 = vadd.xlane.f32.xlu0 %v3666
  %v3668 = vpop.xlane.xlu0 %3667
  %3669 = vadd.xlane.f32.xlu0 %v3602
  %v3670 = vpop.xlane.xlu0 %3669
  %3671 = vadd.xlane.f32.xlu0 %v3603
  %v3672 = vpop.xlane.xlu0 %3671
  %3673 = vadd.xlane.f32.xlu0 %v3604
  %v3674 = vpop.xlane.xlu0 %3673
  %v3675 = vsel %vm3403, %v3605, 0.0
  %3676 = vadd.xlane.f32.xlu0 %v3675
  %v3677 = vpop.xlane.xlu0 %3676
  %v3678 = vadd.f32 %v3607, %v3609
  %v3679 = vadd.f32 %v3678, %v3611
  %v3680 = vsel %vm3403, %v3614, 0.0
  %v3681 = vadd.f32 %v3679, %v3680
  %v3682 = vrot.slane %v3681, 4
  %v3683 = vadd.f32 %v3681, %v3682
  %v3684 = vrot.slane %v3683, 2
  %v3685 = vadd.f32 %v3683, %v3684
  %v3686 = vrot.slane %v3685, 1
  %v3687 = vadd.f32 %v3685, %v3686
  %v3688 = vadd.f32 %v3616, %v3618
  %v3689 = vadd.f32 %v3688, %v3620
  %v3690 = vsel %vm3403, %v3623, 0.0
  %v3691 = vadd.f32 %v3689, %v3690
  %v3692 = vrot.slane %v3691, 4
  %v3693 = vadd.f32 %v3691, %v3692
  %v3694 = vrot.slane %v3693, 2
  %v3695 = vadd.f32 %v3693, %v3694
  %v3696 = vrot.slane %v3695, 1
  %v3697 = vadd.f32 %v3695, %v3696
  %v3698 = vadd.f32 %v3625, %v3627
  %v3699 = vadd.f32 %v3698, %v3629
  %v3700 = vsel %vm3403, %v3632, 0.0
  %v3701 = vadd.f32 %v3699, %v3700
  %v3702 = vrot.slane %v3701, 4
  %v3703 = vadd.f32 %v3701, %v3702
  %v3704 = vrot.slane %v3703, 2
  %v3705 = vadd.f32 %v3703, %v3704
  %v3706 = vrot.slane %v3705, 1
  %v3707 = vadd.f32 %v3705, %v3706
  %v3708 = vadd.f32 %v3634, %v3636
  %v3709 = vadd.f32 %v3708, %v3638
  %v3710 = vsel %vm3403, %v3641, 0.0
  %v3711 = vadd.f32 %v3709, %v3710
  %v3712 = vrot.slane %v3711, 4
  %v3713 = vadd.f32 %v3711, %v3712
  %v3714 = vrot.slane %v3713, 2
  %v3715 = vadd.f32 %v3713, %v3714
  %v3716 = vrot.slane %v3715, 1
  %v3717 = vadd.f32 %v3715, %v3716
  %v3718 = vadd.f32 %v3643, %v3645
  %v3719 = vadd.f32 %v3718, %v3647
  %v3720 = vsel %vm3403, %v3650, 0.0
  %v3721 = vadd.f32 %v3719, %v3720
  %v3722 = vrot.slane %v3721, 4
  %v3723 = vadd.f32 %v3721, %v3722
  %v3724 = vrot.slane %v3723, 2
  %v3725 = vadd.f32 %v3723, %v3724
  %v3726 = vrot.slane %v3725, 1
  %v3727 = vadd.f32 %v3725, %v3726
  %v3728 = vadd.f32 %v3652, %v3654
  %v3729 = vadd.f32 %v3728, %v3656
  %v3730 = vsel %vm3403, %v3659, 0.0
  %v3731 = vadd.f32 %v3729, %v3730
  %v3732 = vrot.slane %v3731, 4
  %v3733 = vadd.f32 %v3731, %v3732
  %v3734 = vrot.slane %v3733, 2
  %v3735 = vadd.f32 %v3733, %v3734
  %v3736 = vrot.slane %v3735, 1
  %v3737 = vadd.f32 %v3735, %v3736
  %v3738 = vadd.f32 %v3661, %v3663
  %v3739 = vadd.f32 %v3738, %v3665
  %v3740 = vsel %vm3403, %v3668, 0.0
  %v3741 = vadd.f32 %v3739, %v3740
  %v3742 = vrot.slane %v3741, 4
  %v3743 = vadd.f32 %v3741, %v3742
  %v3744 = vrot.slane %v3743, 2
  %v3745 = vadd.f32 %v3743, %v3744
  %v3746 = vrot.slane %v3745, 1
  %v3747 = vadd.f32 %v3745, %v3746
  %v3748 = vadd.f32 %v3670, %v3672
  %v3749 = vadd.f32 %v3748, %v3674
  %v3750 = vsel %vm3403, %v3677, 0.0
  %v3751 = vadd.f32 %v3749, %v3750
  %v3752 = vrot.slane %v3751, 4
  %v3753 = vadd.f32 %v3751, %v3752
  %v3754 = vrot.slane %v3753, 2
  %v3755 = vadd.f32 %v3753, %v3754
  %v3756 = vrot.slane %v3755, 1
  %v3757 = vadd.f32 %v3755, %v3756
  %vm3758 = vcmp.eq.s32.totalorder %v3360, 1
  %v3759 = vsel %vm3758, 1, 0
  %v3760 = vcvt.s32.f32 %v3759
  %v3761 = vmul.f32 %v3687, %v3760
  %v3762 = vmul.f32 %v3697, %v3760
  %v3763 = vmul.f32 %v3707, %v3760
  %v3764 = vmul.f32 %v3717, %v3760
  %v3765 = vmul.f32 %v3727, %v3760
  %v3766 = vmul.f32 %v3737, %v3760
  %v3767 = vmul.f32 %v3747, %v3760
  %v3768 = vmul.f32 %v3757, %v3760
  %v3769 = vadd.f32 %v3561, %v3761
  %v3770 = vadd.f32 %v3562, %v3762
  %v3771 = vadd.f32 %v3563, %v3763
  %v3772 = vadd.f32 %v3564, %v3764
  %v3773 = vadd.f32 %v3565, %v3765
  %v3774 = vadd.f32 %v3566, %v3766
  %v3775 = vadd.f32 %v3567, %v3767
  %v3776 = vadd.f32 %v3568, %v3768
  %s3777 = scalar_lea.vmem %s2, 64
  %v3778 = vld [vmem:[%s3777] sm:$0xff]
  %v3779 = vld [vmem:[%s3777 + $0x8] sm:$0xff]
  %v3780 = vld [vmem:[%s3777 + $0x10] sm:$0xff]
  %v3781 = vld [vmem:[%s3777 + $0x18] sm:$0x3f]
  %v3782 = vmul.f32 %v3327, %v3778
  %v3783 = vmul.f32 %v3328, %v3779
  %v3784 = vmul.f32 %v3329, %v3780
  %v3785 = vmul.f32 %v3330, %v3781
  %v3786 = vmul.f32 %v3331, %v3778
  %v3787 = vmul.f32 %v3332, %v3779
  %v3788 = vmul.f32 %v3333, %v3780
  %v3789 = vmul.f32 %v3334, %v3781
  %v3790 = vmul.f32 %v3335, %v3778
  %v3791 = vmul.f32 %v3336, %v3779
  %v3792 = vmul.f32 %v3337, %v3780
  %v3793 = vmul.f32 %v3338, %v3781
  %v3794 = vmul.f32 %v3339, %v3778
  %v3795 = vmul.f32 %v3340, %v3779
  %v3796 = vmul.f32 %v3341, %v3780
  %v3797 = vmul.f32 %v3342, %v3781
  %v3798 = vmul.f32 %v3343, %v3778
  %v3799 = vmul.f32 %v3344, %v3779
  %v3800 = vmul.f32 %v3345, %v3780
  %v3801 = vmul.f32 %v3346, %v3781
  %v3802 = vmul.f32 %v3347, %v3778
  %v3803 = vmul.f32 %v3348, %v3779
  %v3804 = vmul.f32 %v3349, %v3780
  %v3805 = vmul.f32 %v3350, %v3781
  %v3806 = vmul.f32 %v3351, %v3778
  %v3807 = vmul.f32 %v3352, %v3779
  %v3808 = vmul.f32 %v3353, %v3780
  %v3809 = vmul.f32 %v3354, %v3781
  %v3810 = vmul.f32 %v3355, %v3778
  %v3811 = vmul.f32 %v3356, %v3779
  %v3812 = vmul.f32 %v3357, %v3780
  %v3813 = vmul.f32 %v3358, %v3781
  %3814 = vadd.xlane.f32.xlu0 %v3782
  %v3815 = vpop.xlane.xlu0 %3814
  %3816 = vadd.xlane.f32.xlu0 %v3783
  %v3817 = vpop.xlane.xlu0 %3816
  %3818 = vadd.xlane.f32.xlu0 %v3784
  %v3819 = vpop.xlane.xlu0 %3818
  %v3820 = vsel %vm3403, %v3785, 0.0
  %3821 = vadd.xlane.f32.xlu0 %v3820
  %v3822 = vpop.xlane.xlu0 %3821
  %3823 = vadd.xlane.f32.xlu0 %v3786
  %v3824 = vpop.xlane.xlu0 %3823
  %3825 = vadd.xlane.f32.xlu0 %v3787
  %v3826 = vpop.xlane.xlu0 %3825
  %3827 = vadd.xlane.f32.xlu0 %v3788
  %v3828 = vpop.xlane.xlu0 %3827
  %v3829 = vsel %vm3403, %v3789, 0.0
  %3830 = vadd.xlane.f32.xlu0 %v3829
  %v3831 = vpop.xlane.xlu0 %3830
  %3832 = vadd.xlane.f32.xlu0 %v3790
  %v3833 = vpop.xlane.xlu0 %3832
  %3834 = vadd.xlane.f32.xlu0 %v3791
  %v3835 = vpop.xlane.xlu0 %3834
  %3836 = vadd.xlane.f32.xlu0 %v3792
  %v3837 = vpop.xlane.xlu0 %3836
  %v3838 = vsel %vm3403, %v3793, 0.0
  %3839 = vadd.xlane.f32.xlu0 %v3838
  %v3840 = vpop.xlane.xlu0 %3839
  %3841 = vadd.xlane.f32.xlu0 %v3794
  %v3842 = vpop.xlane.xlu0 %3841
  %3843 = vadd.xlane.f32.xlu0 %v3795
  %v3844 = vpop.xlane.xlu0 %3843
  %3845 = vadd.xlane.f32.xlu0 %v3796
  %v3846 = vpop.xlane.xlu0 %3845
  %v3847 = vsel %vm3403, %v3797, 0.0
  %3848 = vadd.xlane.f32.xlu0 %v3847
  %v3849 = vpop.xlane.xlu0 %3848
  %3850 = vadd.xlane.f32.xlu0 %v3798
  %v3851 = vpop.xlane.xlu0 %3850
  %3852 = vadd.xlane.f32.xlu0 %v3799
  %v3853 = vpop.xlane.xlu0 %3852
  %3854 = vadd.xlane.f32.xlu0 %v3800
  %v3855 = vpop.xlane.xlu0 %3854
  %v3856 = vsel %vm3403, %v3801, 0.0
  %3857 = vadd.xlane.f32.xlu0 %v3856
  %v3858 = vpop.xlane.xlu0 %3857
  %3859 = vadd.xlane.f32.xlu0 %v3802
  %v3860 = vpop.xlane.xlu0 %3859
  %3861 = vadd.xlane.f32.xlu0 %v3803
  %v3862 = vpop.xlane.xlu0 %3861
  %3863 = vadd.xlane.f32.xlu0 %v3804
  %v3864 = vpop.xlane.xlu0 %3863
  %v3865 = vsel %vm3403, %v3805, 0.0
  %3866 = vadd.xlane.f32.xlu0 %v3865
  %v3867 = vpop.xlane.xlu0 %3866
  %3868 = vadd.xlane.f32.xlu0 %v3806
  %v3869 = vpop.xlane.xlu0 %3868
  %3870 = vadd.xlane.f32.xlu0 %v3807
  %v3871 = vpop.xlane.xlu0 %3870
  %3872 = vadd.xlane.f32.xlu0 %v3808
  %v3873 = vpop.xlane.xlu0 %3872
  %v3874 = vsel %vm3403, %v3809, 0.0
  %3875 = vadd.xlane.f32.xlu0 %v3874
  %v3876 = vpop.xlane.xlu0 %3875
  %3877 = vadd.xlane.f32.xlu0 %v3810
  %v3878 = vpop.xlane.xlu0 %3877
  %3879 = vadd.xlane.f32.xlu0 %v3811
  %v3880 = vpop.xlane.xlu0 %3879
  %3881 = vadd.xlane.f32.xlu0 %v3812
  %v3882 = vpop.xlane.xlu0 %3881
  %v3883 = vsel %vm3403, %v3813, 0.0
  %3884 = vadd.xlane.f32.xlu0 %v3883
  %v3885 = vpop.xlane.xlu0 %3884
  %v3886 = vadd.f32 %v3815, %v3817
  %v3887 = vadd.f32 %v3886, %v3819
  %v3888 = vsel %vm3403, %v3822, 0.0
  %v3889 = vadd.f32 %v3887, %v3888
  %v3890 = vrot.slane %v3889, 4
  %v3891 = vadd.f32 %v3889, %v3890
  %v3892 = vrot.slane %v3891, 2
  %v3893 = vadd.f32 %v3891, %v3892
  %v3894 = vrot.slane %v3893, 1
  %v3895 = vadd.f32 %v3893, %v3894
  %v3896 = vadd.f32 %v3824, %v3826
  %v3897 = vadd.f32 %v3896, %v3828
  %v3898 = vsel %vm3403, %v3831, 0.0
  %v3899 = vadd.f32 %v3897, %v3898
  %v3900 = vrot.slane %v3899, 4
  %v3901 = vadd.f32 %v3899, %v3900
  %v3902 = vrot.slane %v3901, 2
  %v3903 = vadd.f32 %v3901, %v3902
  %v3904 = vrot.slane %v3903, 1
  %v3905 = vadd.f32 %v3903, %v3904
  %v3906 = vadd.f32 %v3833, %v3835
  %v3907 = vadd.f32 %v3906, %v3837
  %v3908 = vsel %vm3403, %v3840, 0.0
  %v3909 = vadd.f32 %v3907, %v3908
  %v3910 = vrot.slane %v3909, 4
  %v3911 = vadd.f32 %v3909, %v3910
  %v3912 = vrot.slane %v3911, 2
  %v3913 = vadd.f32 %v3911, %v3912
  %v3914 = vrot.slane %v3913, 1
  %v3915 = vadd.f32 %v3913, %v3914
  %v3916 = vadd.f32 %v3842, %v3844
  %v3917 = vadd.f32 %v3916, %v3846
  %v3918 = vsel %vm3403, %v3849, 0.0
  %v3919 = vadd.f32 %v3917, %v3918
  %v3920 = vrot.slane %v3919, 4
  %v3921 = vadd.f32 %v3919, %v3920
  %v3922 = vrot.slane %v3921, 2
  %v3923 = vadd.f32 %v3921, %v3922
  %v3924 = vrot.slane %v3923, 1
  %v3925 = vadd.f32 %v3923, %v3924
  %v3926 = vadd.f32 %v3851, %v3853
  %v3927 = vadd.f32 %v3926, %v3855
  %v3928 = vsel %vm3403, %v3858, 0.0
  %v3929 = vadd.f32 %v3927, %v3928
  %v3930 = vrot.slane %v3929, 4
  %v3931 = vadd.f32 %v3929, %v3930
  %v3932 = vrot.slane %v3931, 2
  %v3933 = vadd.f32 %v3931, %v3932
  %v3934 = vrot.slane %v3933, 1
  %v3935 = vadd.f32 %v3933, %v3934
  %v3936 = vadd.f32 %v3860, %v3862
  %v3937 = vadd.f32 %v3936, %v3864
  %v3938 = vsel %vm3403, %v3867, 0.0
  %v3939 = vadd.f32 %v3937, %v3938
  %v3940 = vrot.slane %v3939, 4
  %v3941 = vadd.f32 %v3939, %v3940
  %v3942 = vrot.slane %v3941, 2
  %v3943 = vadd.f32 %v3941, %v3942
  %v3944 = vrot.slane %v3943, 1
  %v3945 = vadd.f32 %v3943, %v3944
  %v3946 = vadd.f32 %v3869, %v3871
  %v3947 = vadd.f32 %v3946, %v3873
  %v3948 = vsel %vm3403, %v3876, 0.0
  %v3949 = vadd.f32 %v3947, %v3948
  %v3950 = vrot.slane %v3949, 4
  %v3951 = vadd.f32 %v3949, %v3950
  %v3952 = vrot.slane %v3951, 2
  %v3953 = vadd.f32 %v3951, %v3952
  %v3954 = vrot.slane %v3953, 1
  %v3955 = vadd.f32 %v3953, %v3954
  %v3956 = vadd.f32 %v3878, %v3880
  %v3957 = vadd.f32 %v3956, %v3882
  %v3958 = vsel %vm3403, %v3885, 0.0
  %v3959 = vadd.f32 %v3957, %v3958
  %v3960 = vrot.slane %v3959, 4
  %v3961 = vadd.f32 %v3959, %v3960
  %v3962 = vrot.slane %v3961, 2
  %v3963 = vadd.f32 %v3961, %v3962
  %v3964 = vrot.slane %v3963, 1
  %v3965 = vadd.f32 %v3963, %v3964
  %vm3966 = vcmp.eq.s32.totalorder %v3360, 2
  %v3967 = vsel %vm3966, 1, 0
  %v3968 = vcvt.s32.f32 %v3967
  %v3969 = vmul.f32 %v3895, %v3968
  %v3970 = vmul.f32 %v3905, %v3968
  %v3971 = vmul.f32 %v3915, %v3968
  %v3972 = vmul.f32 %v3925, %v3968
  %v3973 = vmul.f32 %v3935, %v3968
  %v3974 = vmul.f32 %v3945, %v3968
  %v3975 = vmul.f32 %v3955, %v3968
  %v3976 = vmul.f32 %v3965, %v3968
  %v3977 = vadd.f32 %v3769, %v3969
  %v3978 = vadd.f32 %v3770, %v3970
  %v3979 = vadd.f32 %v3771, %v3971
  %v3980 = vadd.f32 %v3772, %v3972
  %v3981 = vadd.f32 %v3773, %v3973
  %v3982 = vadd.f32 %v3774, %v3974
  %v3983 = vadd.f32 %v3775, %v3975
  %v3984 = vadd.f32 %v3776, %v3976
  %v3985 = vld [vmem:[%s3] sm:$0x1]
  %v3986 = vadd.f32 %v3977, %v3985
  %v3987 = vadd.f32 %v3978, %v3985
  %v3988 = vadd.f32 %v3979, %v3985
  %v3989 = vadd.f32 %v3980, %v3985
  %v3990 = vadd.f32 %v3981, %v3985
  %v3991 = vadd.f32 %v3982, %v3985
  %v3992 = vadd.f32 %v3983, %v3985
  %v3993 = vadd.f32 %v3984, %v3985
  %vm3994 = vcmask 16384
  %v3995 = vsel %vm3994, %v3986, -inf
  %3996 = vmax.xlane.f32.xlu0 %v3995
  %v3997 = vpop.xlane.xlu0 %3996
  %v3998 = vsel %vm3994, %v3987, -inf
  %3999 = vmax.xlane.f32.xlu0 %v3998
  %v4000 = vpop.xlane.xlu0 %3999
  %v4001 = vsel %vm3994, %v3988, -inf
  %4002 = vmax.xlane.f32.xlu0 %v4001
  %v4003 = vpop.xlane.xlu0 %4002
  %v4004 = vsel %vm3994, %v3989, -inf
  %4005 = vmax.xlane.f32.xlu0 %v4004
  %v4006 = vpop.xlane.xlu0 %4005
  %v4007 = vsel %vm3994, %v3990, -inf
  %4008 = vmax.xlane.f32.xlu0 %v4007
  %v4009 = vpop.xlane.xlu0 %4008
  %v4010 = vsel %vm3994, %v3991, -inf
  %4011 = vmax.xlane.f32.xlu0 %v4010
  %v4012 = vpop.xlane.xlu0 %4011
  %v4013 = vsel %vm3994, %v3992, -inf
  %4014 = vmax.xlane.f32.xlu0 %v4013
  %v4015 = vpop.xlane.xlu0 %4014
  %v4016 = vsel %vm3994, %v3993, -inf
  %4017 = vmax.xlane.f32.xlu0 %v4016
  %v4018 = vpop.xlane.xlu0 %4017
  %v4019 = vsub.f32 %v3986, %v3997
  %v4020 = vsub.f32 %v3987, %v4000
  %v4021 = vsub.f32 %v3988, %v4003
  %v4022 = vsub.f32 %v3989, %v4006
  %v4023 = vsub.f32 %v3990, %v4009
  %v4024 = vsub.f32 %v3991, %v4012
  %v4025 = vsub.f32 %v3992, %v4015
  %v4026 = vsub.f32 %v3993, %v4018
  %v4027 = vmul.f32 %v4019, 1.442695
  %v4028 = vpow.pop %v4027
  %v4029 = vmul.f32 %v4020, 1.442695
  %v4030 = vpow.pop %v4029
  %v4031 = vmul.f32 %v4021, 1.442695
  %v4032 = vpow.pop %v4031
  %v4033 = vmul.f32 %v4022, 1.442695
  %v4034 = vpow.pop %v4033
  %v4035 = vmul.f32 %v4023, 1.442695
  %v4036 = vpow.pop %v4035
  %v4037 = vmul.f32 %v4024, 1.442695
  %v4038 = vpow.pop %v4037
  %v4039 = vmul.f32 %v4025, 1.442695
  %v4040 = vpow.pop %v4039
  %v4041 = vmul.f32 %v4026, 1.442695
  %v4042 = vpow.pop %v4041
  %v4043 = vsel %vm3994, %v4028, 0.0
  %4044 = vadd.xlane.f32.xlu0 %v4043
  %v4045 = vpop.xlane.xlu0 %4044
  %v4046 = vsel %vm3994, %v4030, 0.0
  %4047 = vadd.xlane.f32.xlu0 %v4046
  %v4048 = vpop.xlane.xlu0 %4047
  %v4049 = vsel %vm3994, %v4032, 0.0
  %4050 = vadd.xlane.f32.xlu0 %v4049
  %v4051 = vpop.xlane.xlu0 %4050
  %v4052 = vsel %vm3994, %v4034, 0.0
  %4053 = vadd.xlane.f32.xlu0 %v4052
  %v4054 = vpop.xlane.xlu0 %4053
  %v4055 = vsel %vm3994, %v4036, 0.0
  %4056 = vadd.xlane.f32.xlu0 %v4055
  %v4057 = vpop.xlane.xlu0 %4056
  %v4058 = vsel %vm3994, %v4038, 0.0
  %4059 = vadd.xlane.f32.xlu0 %v4058
  %v4060 = vpop.xlane.xlu0 %4059
  %v4061 = vsel %vm3994, %v4040, 0.0
  %4062 = vadd.xlane.f32.xlu0 %v4061
  %v4063 = vpop.xlane.xlu0 %4062
  %v4064 = vsel %vm3994, %v4042, 0.0
  %4065 = vadd.xlane.f32.xlu0 %v4064
  %v4066 = vpop.xlane.xlu0 %4065
  %v4067 = vlog2.pop %v4045
  %v4068 = vmul.f32 %v4067, 0.6931472
  %v4069 = vlog2.pop %v4048
  %v4070 = vmul.f32 %v4069, 0.6931472
  %v4071 = vlog2.pop %v4051
  %v4072 = vmul.f32 %v4071, 0.6931472
  %v4073 = vlog2.pop %v4054
  %v4074 = vmul.f32 %v4073, 0.6931472
  %v4075 = vlog2.pop %v4057
  %v4076 = vmul.f32 %v4075, 0.6931472
  %v4077 = vlog2.pop %v4060
  %v4078 = vmul.f32 %v4077, 0.6931472
  %v4079 = vlog2.pop %v4063
  %v4080 = vmul.f32 %v4079, 0.6931472
  %v4081 = vlog2.pop %v4066
  %v4082 = vmul.f32 %v4081, 0.6931472
  %v4083 = vsub.f32 %v4019, %v4068
  %v4084 = vsub.f32 %v4020, %v4070
  %v4085 = vsub.f32 %v4021, %v4072
  %v4086 = vsub.f32 %v4022, %v4074
  %v4087 = vsub.f32 %v4023, %v4076
  %v4088 = vsub.f32 %v4024, %v4078
  %v4089 = vsub.f32 %v4025, %v4080
  %v4090 = vsub.f32 %v4026, %v4082
  %4091 = vst.msk [vmem:[%s4] sm:$0x1] %vm3994, %v4083
  %4092 = vst.msk [vmem:[%s4 + $0x1] sm:$0x1] %vm3994, %v4084
  %4093 = vst.msk [vmem:[%s4 + $0x2] sm:$0x1] %vm3994, %v4085
  %4094 = vst.msk [vmem:[%s4 + $0x3] sm:$0x1] %vm3994, %v4086
  %4095 = vst.msk [vmem:[%s4 + $0x4] sm:$0x1] %vm3994, %v4087
  %4096 = vst.msk [vmem:[%s4 + $0x5] sm:$0x1] %vm3994, %v4088
  %4097 = vst.msk [vmem:[%s4 + $0x6] sm:$0x1] %vm3994, %v4089
  %4098 = vst.msk [vmem:[%s4 + $0x7] sm:$0x1] %vm3994, %v4090
  // Predicated region
  $region18: #{model_forward.1} parent=0 // pred_check
    _
  $region19: #{model_forward.1} parent=0 // pred_check_branch
    %4100 = sbr.rel (0) target = $region21
  $region20: #{model_forward.1} parent=0 // pred_region
    _
  $region21: #{model_forward.1} parent=0 // pred_fallthru
    _
  // Predicated region
  $region22: #{model_forward.1} parent=0 // pred_check
    _
  $region23: #{model_forward.1} parent=0 // pred_check_branch
    %4102 = sbr.rel (0) target = $region25
  $region24: #{model_forward.1} parent=0 // pred_region
    _
  $region25: #{model_forward.1} parent=0 // pred_fallthru
    _

</llo_original>
